<compile_context>
chip_gen: v7x
topology: tpu7x:2x2x1
jax: 0.10.0
libtpu: 0.0.40
codegen_flags: <defaults>
</compile_context>

<pallas_src>
import math
import functools

import numpy as np
import jax
import jax.numpy as jnp
from jax.experimental import pallas as pl
from jax.experimental.pallas import tpu as pltpu


# MXU inputs in bf16 (f32 accumulation); elementwise math stays f32 (v5e-safe).
MXU_DTYPE = jnp.bfloat16
# Row tile for the token (B*S) dimension of the gridded matmul / LN kernels.
# <= 512 keeps double-buffered tiles well inside v7x's scoped-VMEM budget at D=512.
TILE_ROWS = 256
VMEM_LIMIT_BYTES = 32 * 1024 * 1024


def _cparams(n_parallel_axes):
    return pltpu.CompilerParams(
        dimension_semantics=tuple(["parallel"] * n_parallel_axes),
        vmem_limit_bytes=VMEM_LIMIT_BYTES)


def _row_tile(n):
    return min(n, TILE_ROWS)


# ----------------------------------------------------------------------------
# Pallas kernels
# ----------------------------------------------------------------------------

def _linear_kernel(x_ref, w_ref, b_ref, o_ref, *, relu):
    """y = x @ w + b (optional ReLU). x:(tn,Din) w:(Din,Dout) b:(1,Dout)."""
    y = jnp.dot(x_ref[...].astype(MXU_DTYPE), w_ref[...].astype(MXU_DTYPE),
                preferred_element_type=jnp.float32)
    y = y + b_ref[...]
    if relu:
        y = jnp.maximum(y, 0.0)
    o_ref[...] = y


def linear(x2d, w, b, relu=False):
    n, din = x2d.shape
    dout = w.shape[1]
    tn = _row_tile(n)
    return pl.pallas_call(
        functools.partial(_linear_kernel, relu=relu),
        out_shape=jax.ShapeDtypeStruct((n, dout), jnp.float32),
        grid=(pl.cdiv(n, tn),),
        in_specs=[
            pl.BlockSpec((tn, din), lambda i: (i, 0)),
            pl.BlockSpec((din, dout), lambda i: (0, 0)),
            pl.BlockSpec((1, dout), lambda i: (0, 0)),
        ],
        out_specs=pl.BlockSpec((tn, dout), lambda i: (i, 0)),
        compiler_params=_cparams(1),
    )(x2d, w, b.reshape(1, dout))


def _linear_res_ln_kernel(x_ref, r_ref, w_ref, b_ref, g_ref, bt_ref, o_ref):
    """LayerNorm(x @ w + b + res) — fused projection + residual + LN epilogue."""
    y = jnp.dot(x_ref[...].astype(MXU_DTYPE), w_ref[...].astype(MXU_DTYPE),
                preferred_element_type=jnp.float32)
    y = y + b_ref[...] + r_ref[...]
    mu = jnp.mean(y, axis=-1, keepdims=True)
    yc = y - mu
    var = jnp.mean(yc * yc, axis=-1, keepdims=True)
    o_ref[...] = yc * jax.lax.rsqrt(var + 1e-5) * g_ref[...] + bt_ref[...]


def linear_res_layernorm(x2d, res2d, w, b, gamma, beta):
    n, din = x2d.shape
    dout = w.shape[1]
    tn = _row_tile(n)
    return pl.pallas_call(
        _linear_res_ln_kernel,
        out_shape=jax.ShapeDtypeStruct((n, dout), jnp.float32),
        grid=(pl.cdiv(n, tn),),
        in_specs=[
            pl.BlockSpec((tn, din), lambda i: (i, 0)),
            pl.BlockSpec((tn, dout), lambda i: (i, 0)),
            pl.BlockSpec((din, dout), lambda i: (0, 0)),
            pl.BlockSpec((1, dout), lambda i: (0, 0)),
            pl.BlockSpec((1, dout), lambda i: (0, 0)),
            pl.BlockSpec((1, dout), lambda i: (0, 0)),
        ],
        out_specs=pl.BlockSpec((tn, dout), lambda i: (i, 0)),
        compiler_params=_cparams(1),
    )(x2d, res2d, w, b.reshape(1, dout), gamma.reshape(1, dout), beta.reshape(1, dout))


def _layernorm_kernel(x_ref, g_ref, b_ref, o_ref):
    """LayerNorm over the last dim, eps=1e-5 (PyTorch default)."""
    x = x_ref[...]
    mu = jnp.mean(x, axis=-1, keepdims=True)
    xc = x - mu
    var = jnp.mean(xc * xc, axis=-1, keepdims=True)
    o_ref[...] = xc * jax.lax.rsqrt(var + 1e-5) * g_ref[...] + b_ref[...]


def layernorm(x2d, gamma, beta):
    n, d = x2d.shape
    tn = _row_tile(n)
    return pl.pallas_call(
        _layernorm_kernel,
        out_shape=jax.ShapeDtypeStruct((n, d), jnp.float32),
        grid=(pl.cdiv(n, tn),),
        in_specs=[
            pl.BlockSpec((tn, d), lambda i: (i, 0)),
            pl.BlockSpec((1, d), lambda i: (0, 0)),
            pl.BlockSpec((1, d), lambda i: (0, 0)),
        ],
        out_specs=pl.BlockSpec((tn, d), lambda i: (i, 0)),
        compiler_params=_cparams(1),
    )(x2d, gamma.reshape(1, d), beta.reshape(1, d))


def _attn_kernel(q_ref, k_ref, v_ref, bias_ref, o_ref, *, scale):
    """All heads of one batch element: softmax(q k^T * scale + bias) v."""
    q = q_ref[0].astype(MXU_DTYPE)            # (H, Sq, Dh)
    k = k_ref[0].astype(MXU_DTYPE)            # (H, Sk, Dh)
    v = v_ref[0].astype(MXU_DTYPE)            # (H, Sk, Dh)
    s = jnp.einsum('hqd,hkd->hqk', q, k,
                   preferred_element_type=jnp.float32) * scale
    s = s + bias_ref[0]                       # (1, Sk) additive key bias (float mask)
    m = jnp.max(s, axis=-1, keepdims=True)
    e = jnp.exp(s - m)
    denom = jnp.sum(e, axis=-1, keepdims=True)
    p = e * pl.reciprocal(denom, approx=True)
    o_ref[0] = jnp.einsum('hqk,hkd->hqd', p.astype(MXU_DTYPE), v,
                          preferred_element_type=jnp.float32)


def _attention(q, k, v, key_bias):
    """q: (B,H,Sq,Dh)  k,v: (B,H,Sk,Dh)  key_bias: (B,1,Sk) additive."""
    b, h, sq, dh = q.shape
    sk = k.shape[2]
    scale = 1.0 / math.sqrt(dh)
    return pl.pallas_call(
        functools.partial(_attn_kernel, scale=scale),
        out_shape=jax.ShapeDtypeStruct((b, h, sq, dh), jnp.float32),
        grid=(b,),
        in_specs=[
            pl.BlockSpec((1, h, sq, dh), lambda bi: (bi, 0, 0, 0)),
            pl.BlockSpec((1, h, sk, dh), lambda bi: (bi, 0, 0, 0)),
            pl.BlockSpec((1, h, sk, dh), lambda bi: (bi, 0, 0, 0)),
            pl.BlockSpec((1, 1, sk), lambda bi: (bi, 0, 0)),
        ],
        out_specs=pl.BlockSpec((1, h, sq, dh), lambda bi: (bi, 0, 0, 0)),
        compiler_params=_cparams(1),
    )(q, k, v, key_bias)


def _dwconv_pw_relu_kernel(xp_ref, dw_ref, db_ref, w_ref, b_ref, o_ref, *, ksize):
    """Depthwise Conv1d (channels-last) + pointwise matmul + ReLU, one batch."""
    s = o_ref.shape[1]
    xp = xp_ref[0]                            # (S + K - 1, C)
    dw = dw_ref[0]                            # (K, C)
    acc = xp[0:s, :] * dw[0:1, :]
    for j in range(1, ksize):
        acc = acc + xp[j:j + s, :] * dw[j:j + 1, :]
    acc = acc + db_ref[0]                     # (1, C) broadcast
    y = jnp.dot(acc.astype(MXU_DTYPE), w_ref[...].astype(MXU_DTYPE),
                preferred_element_type=jnp.float32) + b_ref[...]
    o_ref[0] = jnp.maximum(y, 0.0)


def depthwise_pointwise_relu(x, dw, db, pw_w, pw_b, ksize, padding):
    """x: (B, S, C) channels-last.  dw: (1,K,C)  db: (1,1,C)  pw_w: (C,Dout)."""
    b, s, c = x.shape
    dout = pw_w.shape[1]
    xp = jnp.pad(x, ((0, 0), (padding, padding), (0, 0))) if padding > 0 else x
    sp = s + 2 * padding
    return pl.pallas_call(
        functools.partial(_dwconv_pw_relu_kernel, ksize=ksize),
        out_shape=jax.ShapeDtypeStruct((b, s, dout), jnp.float32),
        grid=(b,),
        in_specs=[
            pl.BlockSpec((1, sp, c), lambda bi: (bi, 0, 0)),
            pl.BlockSpec((1, ksize, c), lambda bi: (0, 0, 0)),
            pl.BlockSpec((1, 1, c), lambda bi: (0, 0, 0)),
            pl.BlockSpec((c, dout), lambda bi: (0, 0)),
            pl.BlockSpec((1, dout), lambda bi: (0, 0)),
        ],
        out_specs=pl.BlockSpec((1, s, dout), lambda bi: (bi, 0, 0)),
        compiler_params=_cparams(1),
    )(xp, dw, db, pw_w, pw_b.reshape(1, dout))


def _postnet_kernel(oi_ref, x_ref, t_ref, wt_ref, bt_ref, w0_ref, w1_ref, o_ref):
    """Fused postnet for one batch element (single broadcast store, P in lanes):

      out[s, m, p] = clamp(oi[s,m])*w0[p] + x[s,m]*w1[p] + (t[s,:] @ wt)[p] + bt[p]
    """
    oc = jnp.clip(oi_ref[0], -5.0, 5.0)                         # (S, M, 1)
    xm = x_ref[0]                                               # (S, M, 1)
    tc = jnp.dot(t_ref[0].astype(MXU_DTYPE), wt_ref[...].astype(MXU_DTYPE),
                 preferred_element_type=jnp.float32) + bt_ref[0]  # (S, P)
    out = oc * w0_ref[0] + xm * w1_ref[0] + tc[:, None, :]
    o_ref[0] = out                                              # (S, M, P)


def postnet_fused(out_intermediate, x, t, wt, bt_total, w0, w1):
    """Returns (B, S, M, P); the NCHW permute is done in glue."""
    B, S, M = out_intermediate.shape
    D = t.shape[-1]
    P = wt.shape[1]
    oi4 = out_intermediate.reshape(B, S, M, 1)   # free reshape
    x4 = x.reshape(B, S, M, 1)                   # free reshape
    return pl.pallas_call(
        _postnet_kernel,
        out_shape=jax.ShapeDtypeStruct((B, S, M, P), jnp.float32),
        grid=(B,),
        in_specs=[
            pl.BlockSpec((1, S, M, 1), lambda bi: (bi, 0, 0, 0)),
            pl.BlockSpec((1, S, M, 1), lambda bi: (bi, 0, 0, 0)),
            pl.BlockSpec((1, S, D), lambda bi: (bi, 0, 0)),
            pl.BlockSpec((D, P), lambda bi: (0, 0)),
            pl.BlockSpec((1, 1, P), lambda bi: (0, 0, 0)),
            pl.BlockSpec((1, 1, P), lambda bi: (0, 0, 0)),
            pl.BlockSpec((1, 1, P), lambda bi: (0, 0, 0)),
        ],
        out_specs=pl.BlockSpec((1, S, M, P), lambda bi: (bi, 0, 0, 0)),
        compiler_params=_cparams(1),
    )(oi4, x4, t, wt, bt_total.reshape(1, 1, P),
      w0.reshape(1, 1, P), w1.reshape(1, 1, P))


# ----------------------------------------------------------------------------
# Composite modules (glue around the kernels)
# ----------------------------------------------------------------------------

def self_attention_heads(x, p, n_heads, key_bias):
    """Fused QKV projection + attention.  Returns merged heads (B*S, D) BEFORE
    the output projection (which is fused into the residual+LN epilogue)."""
    b, s, d = x.shape
    dh = d // n_heads
    qkv = linear(x.reshape(b * s, d), p['wqkv'], p['bqkv'])        # (B*S, 3D)
    qkv = qkv.reshape(b, s, 3, n_heads, dh)
    q = qkv[:, :, 0].transpose(0, 2, 1, 3)                          # (B,H,S,Dh)
    k = qkv[:, :, 1].transpose(0, 2, 1, 3)
    v = qkv[:, :, 2].transpose(0, 2, 1, 3)
    o = _attention(q, k, v, key_bias)
    return o.transpose(0, 2, 1, 3).reshape(b * s, d)


def cross_attention_heads(x_q, x_kv, p, n_heads, key_bias):
    """Q from x_q, fused KV from x_kv.  Returns merged heads (B*Sq, D)."""
    b, sq, d = x_q.shape
    sk = x_kv.shape[1]
    dh = d // n_heads
    q = linear(x_q.reshape(b * sq, d), p['wq'], p['bq'])
    q = q.reshape(b, sq, n_heads, dh).transpose(0, 2, 1, 3)
    kv = linear(x_kv.reshape(b * sk, d), p['wkv'], p['bkv'])
    kv = kv.reshape(b, sk, 2, n_heads, dh)
    k = kv[:, :, 0].transpose(0, 2, 1, 3)
    v = kv[:, :, 1].transpose(0, 2, 1, 3)
    o = _attention(q, k, v, key_bias)
    return o.transpose(0, 2, 1, 3).reshape(b * sq, d)


def conformer_forward(params, x, x_mask, t_condition, c_condition, c_mask, n_heads):
    B, S, M = x.shape
    D = t_condition.shape[-1]
    S2 = c_condition.shape[1]
    P = params['postnet_t_in']['w'].shape[1]

    # --- input masking (matches the PyTorch forward) ---
    pm = x_mask[:, :, None]
    x = x * pm
    t_cond = t_condition * pm
    c_cond = c_condition * c_mask[:, :, None]

    # --- input projections ---
    t = linear(t_cond.reshape(B * S, D), params['t_in']['w'], params['t_in']['b']).reshape(B, S, D)
    c = linear(c_cond.reshape(B * S2, D), params['c_in']['w'], params['c_in']['b']).reshape(B, S2, D)

    # --- positional encoding (dropout = identity in eval) ---
    t = t + params['pe'][None, :S, :]

    # PyTorch float key_padding_mask is ADDED to the logits (F._canonical_mask
    # keeps float masks as-is); the model passes the 0/1 float x_mask.
    kp_bias = x_mask.astype(jnp.float32).reshape(B, 1, S)
    # CrossAttention calls MultiheadAttention without any mask in the reference.
    zero_bias = jnp.zeros((B, 1, S2), jnp.float32)

    out = t
    for lp in params['layers']:
        # ---- CrossAttention block:  out = LN(Wl(MHA(out, c, c)) + out) ----
        res = out.reshape(B * S, D)
        heads = cross_attention_heads(out, c, lp['cross_mha'], n_heads, zero_bias)
        # Fold MHA out-projection and the following Linear into one matmul:
        #   (h @ Wo + bo) @ Wl + bl == h @ (Wo @ Wl) + (bo @ Wl + bl)
        w_fused = lp['cross_mha']['wo'] @ lp['cross_lin']['w']
        b_fused = lp['cross_mha']['bo'] @ lp['cross_lin']['w'] + lp['cross_lin']['b']
        out = linear_res_layernorm(heads, res, w_fused, b_fused,
                                   lp['cross_norm']['g'], lp['cross_norm']['b']).reshape(B, S, D)

        # ---- ConformerLayer (post-norm): out = LN1(out + SelfAttn(out)) ----
        res = out.reshape(B * S, D)
        heads = self_attention_heads(out, lp['self_mha'], n_heads, kp_bias)
        out = linear_res_layernorm(heads, res, lp['self_mha']['wo'], lp['self_mha']['bo'],
                                   lp['norm1']['g'], lp['norm1']['b']).reshape(B, S, D)

        # ---- conv feed-forward: out = LN2(out + conv2(relu(conv1(out)))) ----
        k1 = lp['c1_dw_w'].shape[1]
        h = depthwise_pointwise_relu(out, lp['c1_dw_w'], lp['c1_dw_b'],
                                     lp['c1_pw']['w'], lp['c1_pw']['b'],
                                     ksize=k1, padding=(k1 - 1) // 2)       # (B, S, D)
        # conv2 = DepthwiseConv1d(kernel=1): its depthwise part is a per-channel
        # scale + shift, folded exactly into the pointwise matmul:
        scale2 = lp['c2_dw_w'][0, 0]                                        # (D,)
        w2 = scale2[:, None] * lp['c2_pw']['w']
        b2 = lp['c2_dw_b'].reshape(-1) @ lp['c2_pw']['w'] + lp['c2_pw']['b']
        out = linear_res_layernorm(h.reshape(B * S, D), out.reshape(B * S, D), w2, b2,
                                   lp['norm2']['g'], lp['norm2']['b']).reshape(B, S, D)

    out2d = layernorm(out.reshape(B * S, D),
                      params['final_norm']['g'], params['final_norm']['b'])

    # --- output MLP (Linear-ReLU-Linear-ReLU-Linear) ---
    h = linear(out2d, params['mlp0']['w'], params['mlp0']['b'], relu=True)
    h = linear(h, params['mlp1']['w'], params['mlp1']['b'], relu=True)
    out_intermediate = linear(h, params['mlp2']['w'], params['mlp2']['b']).reshape(B, S, M)

    # --- postnet: clamp + 1x1 Conv2d over [clamped_out ; x] + broadcast t_conv ---
    bt_total = params['postnet_t_in']['b'] + params['post_b']
    post = postnet_fused(out_intermediate, x, t,
                         params['postnet_t_in']['w'], bt_total,
                         params['post_w0'], params['post_w1'])              # (B, S, M, P)
    # TODO(synk): emit the NCHW (B, P, S, M) layout directly from the kernel to
    # drop this glue permute (the unet consumer is external / not translated).
    post = post.transpose(0, 3, 1, 2)

    # TODO(synk): self.unet(...) is not translated (external module, None by default).
    return out_intermediate, post


# ----------------------------------------------------------------------------
# Deterministic synthetic parameter construction
# ----------------------------------------------------------------------------

def make_positional_encoding(max_len, d_model):
    position = np.arange(max_len, dtype=np.float32)[:, None]
    div_term = np.exp(np.arange(0, d_model, 2, dtype=np.float32) * (-math.log(10000.0) / d_model))
    pe = np.zeros((max_len, d_model), dtype=np.float32)
    pe[:, 0::2] = np.sin(position * div_term)
    pe[:, 1::2] = np.cos(position * div_term)
    return jnp.asarray(pe)


def init_params(key, D, H, M, P, KS, L, mlp_hidden, max_len):
    keys = iter(jax.random.split(key, 16 * L + 16))
    nk = lambda: next(keys)

    def lin(din, dout, std=0.02):
        return {'w': std * jax.random.normal(nk(), (din, dout), dtype=jnp.float32),
                'b': jnp.zeros((dout,), jnp.float32)}

    def ln():
        return {'g': jnp.ones((D,), jnp.float32), 'b': jnp.zeros((D,), jnp.float32)}

    def mha_self():
        return {'wqkv': 0.02 * jax.random.normal(nk(), (D, 3 * D), dtype=jnp.float32),
                'bqkv': jnp.zeros((3 * D,), jnp.float32),
                'wo': 0.02 * jax.random.normal(nk(), (D, D), dtype=jnp.float32),
                'bo': jnp.zeros((D,), jnp.float32)}

    def mha_cross():
        return {'wq': 0.02 * jax.random.normal(nk(), (D, D), dtype=jnp.float32),
                'bq': jnp.zeros((D,), jnp.float32),
                'wkv': 0.02 * jax.random.normal(nk(), (D, 2 * D), dtype=jnp.float32),
                'bkv': jnp.zeros((2 * D,), jnp.float32),
                'wo': 0.02 * jax.random.normal(nk(), (D, D), dtype=jnp.float32),
                'bo': jnp.zeros((D,), jnp.float32)}

    layers = []
    for _ in range(L):
        layers.append({
            'cross_mha': mha_cross(),
            'cross_lin': lin(D, D),
            'cross_norm': ln(),
            'self_mha': mha_self(),
            'norm1': ln(),
            'norm2': ln(),
            'c1_dw_w': 0.1 * jax.random.normal(nk(), (1, KS, D), dtype=jnp.float32),
            'c1_dw_b': jnp.zeros((1, 1, D), jnp.float32),
            'c1_pw': lin(D, D),
            'c2_dw_w': 0.1 * jax.random.normal(nk(), (1, 1, D), dtype=jnp.float32),
            'c2_dw_b': jnp.zeros((1, 1, D), jnp.float32),
            'c2_pw': lin(D, D),
        })

    return {
        't_in': lin(D, D),
        'c_in': lin(D, D),
        'postnet_t_in': lin(D, P),
        'layers': layers,
        'final_norm': ln(),
        'mlp0': lin(D, mlp_hidden),
        'mlp1': lin(mlp_hidden, mlp_hidden),
        'mlp2': lin(mlp_hidden, M),
        'post_w0': 0.1 * jax.random.normal(nk(), (P,), dtype=jnp.float32),
        'post_w1': 0.1 * jax.random.normal(nk(), (P,), dtype=jnp.float32),
        'post_b': jnp.zeros((P,), jnp.float32),
        'pe': make_positional_encoding(max_len, D),
    }


# ----------------------------------------------------------------------------
# Main
# ----------------------------------------------------------------------------

if __name__ == "__main__":
    # Small shapes consistent with the module (scaled down from 512/80/8-layer):
    B, S, S2 = 2, 16, 8            # batch, mel/frame seq len, condition seq len
    D, H = 32, 4                   # filter_size, n_heads
    M = 8                          # in_channels (mel bins)
    P = 16                         # postnet_filter_size
    KS = 3                         # conv kernel size
    L = 2                          # n_layers
    MLP_H = 64                     # hidden width of the output MLP (512 in the full model)

    root = jax.random.PRNGKey(0)
    kx, kt, kc, kp = jax.random.split(root, 4)

    x = jax.random.normal(kx, (B, S, M), dtype=jnp.float32)
    t_condition = jax.random.normal(kt, (B, S, D), dtype=jnp.float32)
    c_condition = jax.random.normal(kc, (B, S2, D), dtype=jnp.float32)
    x_mask = jnp.ones((B, S), dtype=jnp.float32)
    c_mask = jnp.ones((B, S2), dtype=jnp.float32)

    params = init_params(kp, D, H, M, P, KS, L, MLP_H, max_len=S)

    forward = jax.jit(functools.partial(conformer_forward, n_heads=H))
    out_intermediate, postnet_out = forward(params, x, x_mask, t_condition, c_condition, c_mask)
    jax.block_until_ready((out_intermediate, postnet_out))

    assert out_intermediate.shape == (B, S, M)
    assert postnet_out.shape == (B, P, S, M)
    print("KERNEL_OK")
</pallas_src>

<mosaic_0001>
module attributes {stable_mosaic.version = 11 : i64} {
  func.func @_linear_kernel(%arg0: i32, %arg1: memref<32x32xf32, #tpu.memory_space<vmem>>, %arg2: memref<32x32xf32, #tpu.memory_space<vmem>>, %arg3: memref<1x32xf32, #tpu.memory_space<vmem>>, %arg4: memref<32x32xf32, #tpu.memory_space<vmem>>) attributes {dimension_semantics = [#tpu.dimension_semantics<parallel>], iteration_bounds = array<i64: 1>, scalar_prefetch = 0 : i64, scratch_operands = 0 : i64, tpu.core_type = #tpu.core_type<tc>, window_params = [{transform_indices = @transform_0, window_bounds = array<i64: 32, 32>}, {pipeline_mode = #tpu.pipeline_mode<synchronous>, transform_indices = @transform_1, window_bounds = array<i64: 32, 32>}, {pipeline_mode = #tpu.pipeline_mode<synchronous>, transform_indices = @transform_2, window_bounds = array<i64: 1, 32>}, {transform_indices = @transform_3, window_bounds = array<i64: 32, 32>}]} {
    %c0 = arith.constant 0 : index
    %c0_0 = arith.constant 0 : index
    %0 = vector.load %arg1[%c0, %c0_0] : memref<32x32xf32, #tpu.memory_space<vmem>>, vector<32x32xf32>
    %1 = arith.truncf %0 : vector<32x32xf32> to vector<32x32xbf16>
    %c0_1 = arith.constant 0 : index
    %c0_2 = arith.constant 0 : index
    %2 = vector.load %arg2[%c0_1, %c0_2] : memref<32x32xf32, #tpu.memory_space<vmem>>, vector<32x32xf32>
    %3 = arith.truncf %2 : vector<32x32xf32> to vector<32x32xbf16>
    %cst = arith.constant dense<0.000000e+00> : vector<32x32xf32>
    %4 = tpu.matmul %1, %3, %cst {dimension_numbers = #tpu.dot_dimension_numbers<[1], [0], [0], [1], [0, 0, 1, 1], [], []>} : vector<32x32xbf16>, vector<32x32xbf16>, vector<32x32xf32> -> vector<32x32xf32>
    %c0_3 = arith.constant 0 : index
    %c0_4 = arith.constant 0 : index
    %5 = vector.load %arg3[%c0_3, %c0_4] : memref<1x32xf32, #tpu.memory_space<vmem>>, vector<1x32xf32>
    %6 = vector.broadcast %5 : vector<1x32xf32> to vector<32x32xf32>
    %7 = arith.addf %4, %6 : vector<32x32xf32>
    %c0_5 = arith.constant 0 : index
    %c0_6 = arith.constant 0 : index
    %8 = vector.load %arg4[%c0_5, %c0_6] : memref<32x32xf32, #tpu.memory_space<vmem>>, vector<32x32xf32>
    tpu.vector_store %arg4[%c0_5, %c0_6], %7 {strides = array<i32>} : memref<32x32xf32, #tpu.memory_space<vmem>>, vector<32x32xf32>,
    return
  }
  func.func @transform_0(%arg0: i32) -> (i32, i32) {
    %c0_i32 = arith.constant 0 : i32
    %c0_i32_0 = arith.constant 0 : i32
    return %arg0, %c0_i32 : i32, i32
  }
  func.func @transform_1(%arg0: i32) -> (i32, i32) {
    %c0_i32 = arith.constant 0 : i32
    %c0_i32_0 = arith.constant 0 : i32
    %c0_i32_1 = arith.constant 0 : i32
    return %c0_i32, %c0_i32_0 : i32, i32
  }
  func.func @transform_2(%arg0: i32) -> (i32, i32) {
    %c0_i32 = arith.constant 0 : i32
    %c0_i32_0 = arith.constant 0 : i32
    %c0_i32_1 = arith.constant 0 : i32
    return %c0_i32, %c0_i32_0 : i32, i32
  }
  func.func @transform_3(%arg0: i32) -> (i32, i32) {
    %c0_i32 = arith.constant 0 : i32
    %c0_i32_0 = arith.constant 0 : i32
    return %arg0, %c0_i32 : i32, i32
  }
}

module attributes {stable_mosaic.version = 11 : i64} {
  func.func @_linear_kernel(%arg0: i32, %arg1: memref<16x32xf32, #tpu.memory_space<vmem>>, %arg2: memref<32x32xf32, #tpu.memory_space<vmem>>, %arg3: memref<1x32xf32, #tpu.memory_space<vmem>>, %arg4: memref<16x32xf32, #tpu.memory_space<vmem>>) attributes {dimension_semantics = [#tpu.dimension_semantics<parallel>], iteration_bounds = array<i64: 1>, scalar_prefetch = 0 : i64, scratch_operands = 0 : i64, tpu.core_type = #tpu.core_type<tc>, window_params = [{transform_indices = @transform_0, window_bounds = array<i64: 16, 32>}, {pipeline_mode = #tpu.pipeline_mode<synchronous>, transform_indices = @transform_1, window_bounds = array<i64: 32, 32>}, {pipeline_mode = #tpu.pipeline_mode<synchronous>, transform_indices = @transform_2, window_bounds = array<i64: 1, 32>}, {transform_indices = @transform_3, window_bounds = array<i64: 16, 32>}]} {
    %c0 = arith.constant 0 : index
    %c0_0 = arith.constant 0 : index
    %0 = vector.load %arg1[%c0, %c0_0] : memref<16x32xf32, #tpu.memory_space<vmem>>, vector<16x32xf32>
    %1 = arith.truncf %0 : vector<16x32xf32> to vector<16x32xbf16>
    %c0_1 = arith.constant 0 : index
    %c0_2 = arith.constant 0 : index
    %2 = vector.load %arg2[%c0_1, %c0_2] : memref<32x32xf32, #tpu.memory_space<vmem>>, vector<32x32xf32>
    %3 = arith.truncf %2 : vector<32x32xf32> to vector<32x32xbf16>
    %cst = arith.constant dense<0.000000e+00> : vector<16x32xf32>
    %4 = tpu.matmul %1, %3, %cst {dimension_numbers = #tpu.dot_dimension_numbers<[1], [0], [0], [1], [0, 0, 1, 1], [], []>} : vector<16x32xbf16>, vector<32x32xbf16>, vector<16x32xf32> -> vector<16x32xf32>
    %c0_3 = arith.constant 0 : index
    %c0_4 = arith.constant 0 : index
    %5 = vector.load %arg3[%c0_3, %c0_4] : memref<1x32xf32, #tpu.memory_space<vmem>>, vector<1x32xf32>
    %6 = vector.broadcast %5 : vector<1x32xf32> to vector<16x32xf32>
    %7 = arith.addf %4, %6 : vector<16x32xf32>
    %c0_5 = arith.constant 0 : index
    %c0_6 = arith.constant 0 : index
    %8 = vector.load %arg4[%c0_5, %c0_6] : memref<16x32xf32, #tpu.memory_space<vmem>>, vector<16x32xf32>
    tpu.vector_store %arg4[%c0_5, %c0_6], %7 {strides = array<i32>} : memref<16x32xf32, #tpu.memory_space<vmem>>, vector<16x32xf32>,
    return
  }
  func.func @transform_0(%arg0: i32) -> (i32, i32) {
    %c0_i32 = arith.constant 0 : i32
    %c0_i32_0 = arith.constant 0 : i32
    return %arg0, %c0_i32 : i32, i32
  }
  func.func @transform_1(%arg0: i32) -> (i32, i32) {
    %c0_i32 = arith.constant 0 : i32
    %c0_i32_0 = arith.constant 0 : i32
    %c0_i32_1 = arith.constant 0 : i32
    return %c0_i32, %c0_i32_0 : i32, i32
  }
  func.func @transform_2(%arg0: i32) -> (i32, i32) {
    %c0_i32 = arith.constant 0 : i32
    %c0_i32_0 = arith.constant 0 : i32
    %c0_i32_1 = arith.constant 0 : i32
    return %c0_i32, %c0_i32_0 : i32, i32
  }
  func.func @transform_3(%arg0: i32) -> (i32, i32) {
    %c0_i32 = arith.constant 0 : i32
    %c0_i32_0 = arith.constant 0 : i32
    return %arg0, %c0_i32 : i32, i32
  }
}

module attributes {stable_mosaic.version = 11 : i64} {
  func.func @_linear_kernel(%arg0: i32, %arg1: memref<16x32xf32, #tpu.memory_space<vmem>>, %arg2: memref<32x64xf32, #tpu.memory_space<vmem>>, %arg3: memref<1x64xf32, #tpu.memory_space<vmem>>, %arg4: memref<16x64xf32, #tpu.memory_space<vmem>>) attributes {dimension_semantics = [#tpu.dimension_semantics<parallel>], iteration_bounds = array<i64: 1>, scalar_prefetch = 0 : i64, scratch_operands = 0 : i64, tpu.core_type = #tpu.core_type<tc>, window_params = [{transform_indices = @transform_0, window_bounds = array<i64: 16, 32>}, {pipeline_mode = #tpu.pipeline_mode<synchronous>, transform_indices = @transform_1, window_bounds = array<i64: 32, 64>}, {pipeline_mode = #tpu.pipeline_mode<synchronous>, transform_indices = @transform_2, window_bounds = array<i64: 1, 64>}, {transform_indices = @transform_3, window_bounds = array<i64: 16, 64>}]} {
    %c0 = arith.constant 0 : index
    %c0_0 = arith.constant 0 : index
    %0 = vector.load %arg1[%c0, %c0_0] : memref<16x32xf32, #tpu.memory_space<vmem>>, vector<16x32xf32>
    %1 = arith.truncf %0 : vector<16x32xf32> to vector<16x32xbf16>
    %c0_1 = arith.constant 0 : index
    %c0_2 = arith.constant 0 : index
    %2 = vector.load %arg2[%c0_1, %c0_2] : memref<32x64xf32, #tpu.memory_space<vmem>>, vector<32x64xf32>
    %3 = arith.truncf %2 : vector<32x64xf32> to vector<32x64xbf16>
    %cst = arith.constant dense<0.000000e+00> : vector<16x64xf32>
    %4 = tpu.matmul %1, %3, %cst {dimension_numbers = #tpu.dot_dimension_numbers<[1], [0], [0], [1], [0, 0, 1, 1], [], []>} : vector<16x32xbf16>, vector<32x64xbf16>, vector<16x64xf32> -> vector<16x64xf32>
    %c0_3 = arith.constant 0 : index
    %c0_4 = arith.constant 0 : index
    %5 = vector.load %arg3[%c0_3, %c0_4] : memref<1x64xf32, #tpu.memory_space<vmem>>, vector<1x64xf32>
    %6 = vector.broadcast %5 : vector<1x64xf32> to vector<16x64xf32>
    %7 = arith.addf %4, %6 : vector<16x64xf32>
    %c0_5 = arith.constant 0 : index
    %c0_6 = arith.constant 0 : index
    %8 = vector.load %arg4[%c0_5, %c0_6] : memref<16x64xf32, #tpu.memory_space<vmem>>, vector<16x64xf32>
    tpu.vector_store %arg4[%c0_5, %c0_6], %7 {strides = array<i32>} : memref<16x64xf32, #tpu.memory_space<vmem>>, vector<16x64xf32>,
    return
  }
  func.func @transform_0(%arg0: i32) -> (i32, i32) {
    %c0_i32 = arith.constant 0 : i32
    %c0_i32_0 = arith.constant 0 : i32
    return %arg0, %c0_i32 : i32, i32
  }
  func.func @transform_1(%arg0: i32) -> (i32, i32) {
    %c0_i32 = arith.constant 0 : i32
    %c0_i32_0 = arith.constant 0 : i32
    %c0_i32_1 = arith.constant 0 : i32
    return %c0_i32, %c0_i32_0 : i32, i32
  }
  func.func @transform_2(%arg0: i32) -> (i32, i32) {
    %c0_i32 = arith.constant 0 : i32
    %c0_i32_0 = arith.constant 0 : i32
    %c0_i32_1 = arith.constant 0 : i32
    return %c0_i32, %c0_i32_0 : i32, i32
  }
  func.func @transform_3(%arg0: i32) -> (i32, i32) {
    %c0_i32 = arith.constant 0 : i32
    %c0_i32_0 = arith.constant 0 : i32
    return %arg0, %c0_i32 : i32, i32
  }
}

module attributes {stable_mosaic.version = 11 : i64} {
  func.func @_attn_kernel(%arg0: i32, %arg1: memref<1x4x16x8xf32, #tpu.memory_space<vmem>>, %arg2: memref<1x4x8x8xf32, #tpu.memory_space<vmem>>, %arg3: memref<1x4x8x8xf32, #tpu.memory_space<vmem>>, %arg4: memref<1x1x8xf32, #tpu.memory_space<vmem>>, %arg5: memref<1x4x16x8xf32, #tpu.memory_space<vmem>>) attributes {dimension_semantics = [#tpu.dimension_semantics<parallel>], iteration_bounds = array<i64: 2>, scalar_prefetch = 0 : i64, scratch_operands = 0 : i64, tpu.core_type = #tpu.core_type<tc>, window_params = [{transform_indices = @transform_0, window_bounds = array<i64: 1, 4, 16, 8>}, {transform_indices = @transform_1, window_bounds = array<i64: 1, 4, 8, 8>}, {transform_indices = @transform_2, window_bounds = array<i64: 1, 4, 8, 8>}, {transform_indices = @transform_3, window_bounds = array<i64: 1, 1, 8>}, {transform_indices = @transform_4, window_bounds = array<i64: 1, 4, 16, 8>}]} {
    %c0 = arith.constant 0 : index
    %c0_0 = arith.constant 0 : index
    %c0_1 = arith.constant 0 : index
    %c0_2 = arith.constant 0 : index
    %0 = vector.load %arg1[%c0, %c0_0, %c0_1, %c0_2] : memref<1x4x16x8xf32, #tpu.memory_space<vmem>>, vector<1x4x16x8xf32>
    %1 = vector.shape_cast %0 : vector<1x4x16x8xf32> to vector<4x16x8xf32>
    %2 = arith.truncf %1 : vector<4x16x8xf32> to vector<4x16x8xbf16>
    %c0_3 = arith.constant 0 : index
    %c0_4 = arith.constant 0 : index
    %c0_5 = arith.constant 0 : index
    %c0_6 = arith.constant 0 : index
    %3 = vector.load %arg2[%c0_3, %c0_4, %c0_5, %c0_6] : memref<1x4x8x8xf32, #tpu.memory_space<vmem>>, vector<1x4x8x8xf32>
    %4 = vector.shape_cast %3 : vector<1x4x8x8xf32> to vector<4x8x8xf32>
    %5 = arith.truncf %4 : vector<4x8x8xf32> to vector<4x8x8xbf16>
    %c0_7 = arith.constant 0 : index
    %c0_8 = arith.constant 0 : index
    %c0_9 = arith.constant 0 : index
    %c0_10 = arith.constant 0 : index
    %6 = vector.load %arg3[%c0_7, %c0_8, %c0_9, %c0_10] : memref<1x4x8x8xf32, #tpu.memory_space<vmem>>, vector<1x4x8x8xf32>
    %7 = vector.shape_cast %6 : vector<1x4x8x8xf32> to vector<4x8x8xf32>
    %8 = arith.truncf %7 : vector<4x8x8xf32> to vector<4x8x8xbf16>
    "tpu.trace_start"() <{level = 10 : i32, message = "hqd,hkd->hqk"}> : () -> ()
    %cst = arith.constant dense<0.000000e+00> : vector<4x16x8xf32>
    %9 = tpu.matmul %2, %5, %cst {dimension_numbers = #tpu.dot_dimension_numbers<[2], [2], [1], [1], [0, 0, 0, 1, 1, 1], [0], [0]>} : vector<4x16x8xbf16>, vector<4x8x8xbf16>, vector<4x16x8xf32> -> vector<4x16x8xf32>
    "tpu.trace_stop"() : () -> ()
    %cst_11 = arith.constant 0.353553385 : f32
    %10 = vector.broadcast %cst_11 : f32 to vector<4x16x8xf32>
    %11 = arith.mulf %9, %10 : vector<4x16x8xf32>
    %c0_12 = arith.constant 0 : index
    %c0_13 = arith.constant 0 : index
    %c0_14 = arith.constant 0 : index
    %12 = vector.load %arg4[%c0_12, %c0_13, %c0_14] : memref<1x1x8xf32, #tpu.memory_space<vmem>>, vector<1x1x8xf32>
    %13 = vector.shape_cast %12 : vector<1x1x8xf32> to vector<1x8xf32>
    %14 = vector.shape_cast %13 : vector<1x8xf32> to vector<1x1x8xf32>
    %15 = vector.broadcast %14 : vector<1x1x8xf32> to vector<4x16x8xf32>
    %16 = arith.addf %11, %15 : vector<4x16x8xf32>
    %cst_15 = arith.constant dense<0xFF800000> : vector<4x16xf32>
    %17 = vector.multi_reduction <maximumf>, %16, %cst_15 [2] : vector<4x16x8xf32> to vector<4x16xf32>
    %18 = vector.shape_cast %17 : vector<4x16xf32> to vector<4x16x1xf32>
    %19 = vector.broadcast %18 : vector<4x16x1xf32> to vector<4x16x8xf32>
    %20 = arith.subf %16, %19 : vector<4x16x8xf32>
    %21 = math.exp %20 : vector<4x16x8xf32>
    %cst_16 = arith.constant dense<0.000000e+00> : vector<4x16xf32>
    %22 = vector.multi_reduction <add>, %21, %cst_16 [2] : vector<4x16x8xf32> to vector<4x16xf32>
    %23 = vector.shape_cast %22 : vector<4x16xf32> to vector<4x16x1xf32>
    %24 = tpu.reciprocal %23 {approx = true} : vector<4x16x1xf32> -> vector<4x16x1xf32>
    %25 = vector.broadcast %24 : vector<4x16x1xf32> to vector<4x16x8xf32>
    %26 = arith.mulf %21, %25 : vector<4x16x8xf32>
    %27 = arith.truncf %26 : vector<4x16x8xf32> to vector<4x16x8xbf16>
    "tpu.trace_start"() <{level = 10 : i32, message = "hqk,hkd->hqd"}> : () -> ()
    %cst_17 = arith.constant dense<0.000000e+00> : vector<4x16x8xf32>
    %28 = tpu.matmul %27, %8, %cst_17 {dimension_numbers = #tpu.dot_dimension_numbers<[2], [1], [1], [2], [0, 0, 0, 1, 1, 2], [0], [0]>} : vector<4x16x8xbf16>, vector<4x8x8xbf16>, vector<4x16x8xf32> -> vector<4x16x8xf32>
    "tpu.trace_stop"() : () -> ()
    %c0_18 = arith.constant 0 : index
    %c0_19 = arith.constant 0 : index
    %c0_20 = arith.constant 0 : index
    %c0_21 = arith.constant 0 : index
    %29 = vector.load %arg5[%c0_18, %c0_19, %c0_20, %c0_21] : memref<1x4x16x8xf32, #tpu.memory_space<vmem>>, vector<1x4x16x8xf32>
    %30 = vector.shape_cast %29 : vector<1x4x16x8xf32> to vector<4x16x8xf32>
    %31 = vector.shape_cast %28 : vector<4x16x8xf32> to vector<1x4x16x8xf32>
    tpu.vector_store %arg5[%c0_18, %c0_19, %c0_20, %c0_21], %31 {strides = array<i32>} : memref<1x4x16x8xf32, #tpu.memory_space<vmem>>, vector<1x4x16x8xf32>,
    return
  }
  func.func @transform_0(%arg0: i32) -> (i32, i32, i32, i32) {
    %c0_i32 = arith.constant 0 : i32
    %c0_i32_0 = arith.constant 0 : i32
    %c0_i32_1 = arith.constant 0 : i32
    %c0_i32_2 = arith.constant 0 : i32
    return %arg0, %c0_i32, %c0_i32_0, %c0_i32_1 : i32, i32, i32, i32
  }
  func.func @transform_1(%arg0: i32) -> (i32, i32, i32, i32) {
    %c0_i32 = arith.constant 0 : i32
    %c0_i32_0 = arith.constant 0 : i32
    %c0_i32_1 = arith.constant 0 : i32
    %c0_i32_2 = arith.constant 0 : i32
    return %arg0, %c0_i32, %c0_i32_0, %c0_i32_1 : i32, i32, i32, i32
  }
  func.func @transform_2(%arg0: i32) -> (i32, i32, i32, i32) {
    %c0_i32 = arith.constant 0 : i32
    %c0_i32_0 = arith.constant 0 : i32
    %c0_i32_1 = arith.constant 0 : i32
    %c0_i32_2 = arith.constant 0 : i32
    return %arg0, %c0_i32, %c0_i32_0, %c0_i32_1 : i32, i32, i32, i32
  }
  func.func @transform_3(%arg0: i32) -> (i32, i32, i32) {
    %c0_i32 = arith.constant 0 : i32
    %c0_i32_0 = arith.constant 0 : i32
    %c0_i32_1 = arith.constant 0 : i32
    return %arg0, %c0_i32, %c0_i32_0 : i32, i32, i32
  }
  func.func @transform_4(%arg0: i32) -> (i32, i32, i32, i32) {
    %c0_i32 = arith.constant 0 : i32
    %c0_i32_0 = arith.constant 0 : i32
    %c0_i32_1 = arith.constant 0 : i32
    %c0_i32_2 = arith.constant 0 : i32
    return %arg0, %c0_i32, %c0_i32_0, %c0_i32_1 : i32, i32, i32, i32
  }
}

module attributes {stable_mosaic.version = 11 : i64} {
  func.func @_linear_kernel(%arg0: i32, %arg1: memref<32x32xf32, #tpu.memory_space<vmem>>, %arg2: memref<32x96xf32, #tpu.memory_space<vmem>>, %arg3: memref<1x96xf32, #tpu.memory_space<vmem>>, %arg4: memref<32x96xf32, #tpu.memory_space<vmem>>) attributes {dimension_semantics = [#tpu.dimension_semantics<parallel>], iteration_bounds = array<i64: 1>, scalar_prefetch = 0 : i64, scratch_operands = 0 : i64, tpu.core_type = #tpu.core_type<tc>, window_params = [{transform_indices = @transform_0, window_bounds = array<i64: 32, 32>}, {pipeline_mode = #tpu.pipeline_mode<synchronous>, transform_indices = @transform_1, window_bounds = array<i64: 32, 96>}, {pipeline_mode = #tpu.pipeline_mode<synchronous>, transform_indices = @transform_2, window_bounds = array<i64: 1, 96>}, {transform_indices = @transform_3, window_bounds = array<i64: 32, 96>}]} {
    %c0 = arith.constant 0 : index
    %c0_0 = arith.constant 0 : index
    %0 = vector.load %arg1[%c0, %c0_0] : memref<32x32xf32, #tpu.memory_space<vmem>>, vector<32x32xf32>
    %1 = arith.truncf %0 : vector<32x32xf32> to vector<32x32xbf16>
    %c0_1 = arith.constant 0 : index
    %c0_2 = arith.constant 0 : index
    %2 = vector.load %arg2[%c0_1, %c0_2] : memref<32x96xf32, #tpu.memory_space<vmem>>, vector<32x96xf32>
    %3 = arith.truncf %2 : vector<32x96xf32> to vector<32x96xbf16>
    %cst = arith.constant dense<0.000000e+00> : vector<32x96xf32>
    %4 = tpu.matmul %1, %3, %cst {dimension_numbers = #tpu.dot_dimension_numbers<[1], [0], [0], [1], [0, 0, 1, 1], [], []>} : vector<32x32xbf16>, vector<32x96xbf16>, vector<32x96xf32> -> vector<32x96xf32>
    %c0_3 = arith.constant 0 : index
    %c0_4 = arith.constant 0 : index
    %5 = vector.load %arg3[%c0_3, %c0_4] : memref<1x96xf32, #tpu.memory_space<vmem>>, vector<1x96xf32>
    %6 = vector.broadcast %5 : vector<1x96xf32> to vector<32x96xf32>
    %7 = arith.addf %4, %6 : vector<32x96xf32>
    %c0_5 = arith.constant 0 : index
    %c0_6 = arith.constant 0 : index
    %8 = vector.load %arg4[%c0_5, %c0_6] : memref<32x96xf32, #tpu.memory_space<vmem>>, vector<32x96xf32>
    tpu.vector_store %arg4[%c0_5, %c0_6], %7 {strides = array<i32>} : memref<32x96xf32, #tpu.memory_space<vmem>>, vector<32x96xf32>,
    return
  }
  func.func @transform_0(%arg0: i32) -> (i32, i32) {
    %c0_i32 = arith.constant 0 : i32
    %c0_i32_0 = arith.constant 0 : i32
    return %arg0, %c0_i32 : i32, i32
  }
  func.func @transform_1(%arg0: i32) -> (i32, i32) {
    %c0_i32 = arith.constant 0 : i32
    %c0_i32_0 = arith.constant 0 : i32
    %c0_i32_1 = arith.constant 0 : i32
    return %c0_i32, %c0_i32_0 : i32, i32
  }
  func.func @transform_2(%arg0: i32) -> (i32, i32) {
    %c0_i32 = arith.constant 0 : i32
    %c0_i32_0 = arith.constant 0 : i32
    %c0_i32_1 = arith.constant 0 : i32
    return %c0_i32, %c0_i32_0 : i32, i32
  }
  func.func @transform_3(%arg0: i32) -> (i32, i32) {
    %c0_i32 = arith.constant 0 : i32
    %c0_i32_0 = arith.constant 0 : i32
    return %arg0, %c0_i32 : i32, i32
  }
}

module attributes {stable_mosaic.version = 11 : i64} {
  func.func @_linear_res_ln_kernel(%arg0: i32, %arg1: memref<32x32xf32, #tpu.memory_space<vmem>>, %arg2: memref<32x32xf32, #tpu.memory_space<vmem>>, %arg3: memref<32x32xf32, #tpu.memory_space<vmem>>, %arg4: memref<1x32xf32, #tpu.memory_space<vmem>>, %arg5: memref<1x32xf32, #tpu.memory_space<vmem>>, %arg6: memref<1x32xf32, #tpu.memory_space<vmem>>, %arg7: memref<32x32xf32, #tpu.memory_space<vmem>>) attributes {dimension_semantics = [#tpu.dimension_semantics<parallel>], iteration_bounds = array<i64: 1>, scalar_prefetch = 0 : i64, scratch_operands = 0 : i64, tpu.core_type = #tpu.core_type<tc>, window_params = [{transform_indices = @transform_0, window_bounds = array<i64: 32, 32>}, {transform_indices = @transform_1, window_bounds = array<i64: 32, 32>}, {pipeline_mode = #tpu.pipeline_mode<synchronous>, transform_indices = @transform_2, window_bounds = array<i64: 32, 32>}, {pipeline_mode = #tpu.pipeline_mode<synchronous>, transform_indices = @transform_3, window_bounds = array<i64: 1, 32>}, {pipeline_mode = #tpu.pipeline_mode<synchronous>, transform_indices = @transform_4, window_bounds = array<i64: 1, 32>}, {pipeline_mode = #tpu.pipeline_mode<synchronous>, transform_indices = @transform_5, window_bounds = array<i64: 1, 32>}, {transform_indices = @transform_6, window_bounds = array<i64: 32, 32>}]} {
    %c0 = arith.constant 0 : index
    %c0_0 = arith.constant 0 : index
    %0 = vector.load %arg1[%c0, %c0_0] : memref<32x32xf32, #tpu.memory_space<vmem>>, vector<32x32xf32>
    %1 = arith.truncf %0 : vector<32x32xf32> to vector<32x32xbf16>
    %c0_1 = arith.constant 0 : index
    %c0_2 = arith.constant 0 : index
    %2 = vector.load %arg3[%c0_1, %c0_2] : memref<32x32xf32, #tpu.memory_space<vmem>>, vector<32x32xf32>
    %3 = arith.truncf %2 : vector<32x32xf32> to vector<32x32xbf16>
    %cst = arith.constant dense<0.000000e+00> : vector<32x32xf32>
    %4 = tpu.matmul %1, %3, %cst {dimension_numbers = #tpu.dot_dimension_numbers<[1], [0], [0], [1], [0, 0, 1, 1], [], []>} : vector<32x32xbf16>, vector<32x32xbf16>, vector<32x32xf32> -> vector<32x32xf32>
    %c0_3 = arith.constant 0 : index
    %c0_4 = arith.constant 0 : index
    %5 = vector.load %arg4[%c0_3, %c0_4] : memref<1x32xf32, #tpu.memory_space<vmem>>, vector<1x32xf32>
    %6 = vector.broadcast %5 : vector<1x32xf32> to vector<32x32xf32>
    %7 = arith.addf %4, %6 : vector<32x32xf32>
    %c0_5 = arith.constant 0 : index
    %c0_6 = arith.constant 0 : index
    %8 = vector.load %arg2[%c0_5, %c0_6] : memref<32x32xf32, #tpu.memory_space<vmem>>, vector<32x32xf32>
    %9 = arith.addf %7, %8 : vector<32x32xf32>
    %cst_7 = arith.constant dense<0.000000e+00> : vector<32xf32>
    %10 = vector.multi_reduction <add>, %9, %cst_7 [1] : vector<32x32xf32> to vector<32xf32>
    %11 = vector.shape_cast %10 : vector<32xf32> to vector<32x1xf32>
    %cst_8 = arith.constant 3.200000e+01 : f32
    %12 = vector.broadcast %cst_8 : f32 to vector<32x1xf32>
    %13 = arith.divf %11, %12 : vector<32x1xf32>
    %14 = vector.broadcast %13 : vector<32x1xf32> to vector<32x32xf32>
    %15 = arith.subf %9, %14 : vector<32x32xf32>
    %16 = arith.mulf %15, %15 : vector<32x32xf32>
    %cst_9 = arith.constant dense<0.000000e+00> : vector<32xf32>
    %17 = vector.multi_reduction <add>, %16, %cst_9 [1] : vector<32x32xf32> to vector<32xf32>
    %18 = vector.shape_cast %17 : vector<32xf32> to vector<32x1xf32>
    %cst_10 = arith.constant 3.200000e+01 : f32
    %19 = vector.broadcast %cst_10 : f32 to vector<32x1xf32>
    %20 = arith.divf %18, %19 : vector<32x1xf32>
    %cst_11 = arith.constant 9.99999974E-6 : f32
    %21 = vector.broadcast %cst_11 : f32 to vector<32x1xf32>
    %22 = arith.addf %20, %21 : vector<32x1xf32>
    %23 = math.rsqrt %22 : vector<32x1xf32>
    %24 = vector.broadcast %23 : vector<32x1xf32> to vector<32x32xf32>
    %25 = arith.mulf %15, %24 : vector<32x32xf32>
    %c0_12 = arith.constant 0 : index
    %c0_13 = arith.constant 0 : index
    %26 = vector.load %arg5[%c0_12, %c0_13] : memref<1x32xf32, #tpu.memory_space<vmem>>, vector<1x32xf32>
    %27 = vector.broadcast %26 : vector<1x32xf32> to vector<32x32xf32>
    %28 = arith.mulf %25, %27 : vector<32x32xf32>
    %c0_14 = arith.constant 0 : index
    %c0_15 = arith.constant 0 : index
    %29 = vector.load %arg6[%c0_14, %c0_15] : memref<1x32xf32, #tpu.memory_space<vmem>>, vector<1x32xf32>
    %30 = vector.broadcast %29 : vector<1x32xf32> to vector<32x32xf32>
    %31 = arith.addf %28, %30 : vector<32x32xf32>
    %c0_16 = arith.constant 0 : index
    %c0_17 = arith.constant 0 : index
    %32 = vector.load %arg7[%c0_16, %c0_17] : memref<32x32xf32, #tpu.memory_space<vmem>>, vector<32x32xf32>
    tpu.vector_store %arg7[%c0_16, %c0_17], %31 {strides = array<i32>} : memref<32x32xf32, #tpu.memory_space<vmem>>, vector<32x32xf32>,
    return
  }
  func.func @transform_0(%arg0: i32) -> (i32, i32) {
    %c0_i32 = arith.constant 0 : i32
    %c0_i32_0 = arith.constant 0 : i32
    return %arg0, %c0_i32 : i32, i32
  }
  func.func @transform_1(%arg0: i32) -> (i32, i32) {
    %c0_i32 = arith.constant 0 : i32
    %c0_i32_0 = arith.constant 0 : i32
    return %arg0, %c0_i32 : i32, i32
  }
  func.func @transform_2(%arg0: i32) -> (i32, i32) {
    %c0_i32 = arith.constant 0 : i32
    %c0_i32_0 = arith.constant 0 : i32
    %c0_i32_1 = arith.constant 0 : i32
    return %c0_i32, %c0_i32_0 : i32, i32
  }
  func.func @transform_3(%arg0: i32) -> (i32, i32) {
    %c0_i32 = arith.constant 0 : i32
    %c0_i32_0 = arith.constant 0 : i32
    %c0_i32_1 = arith.constant 0 : i32
    return %c0_i32, %c0_i32_0 : i32, i32
  }
  func.func @transform_4(%arg0: i32) -> (i32, i32) {
    %c0_i32 = arith.constant 0 : i32
    %c0_i32_0 = arith.constant 0 : i32
    %c0_i32_1 = arith.constant 0 : i32
    return %c0_i32, %c0_i32_0 : i32, i32
  }
  func.func @transform_5(%arg0: i32) -> (i32, i32) {
    %c0_i32 = arith.constant 0 : i32
    %c0_i32_0 = arith.constant 0 : i32
    %c0_i32_1 = arith.constant 0 : i32
    return %c0_i32, %c0_i32_0 : i32, i32
  }
  func.func @transform_6(%arg0: i32) -> (i32, i32) {
    %c0_i32 = arith.constant 0 : i32
    %c0_i32_0 = arith.constant 0 : i32
    return %arg0, %c0_i32 : i32, i32
  }
}

module attributes {stable_mosaic.version = 11 : i64} {
  func.func @_attn_kernel(%arg0: i32, %arg1: memref<1x4x16x8xf32, #tpu.memory_space<vmem>>, %arg2: memref<1x4x16x8xf32, #tpu.memory_space<vmem>>, %arg3: memref<1x4x16x8xf32, #tpu.memory_space<vmem>>, %arg4: memref<1x1x16xf32, #tpu.memory_space<vmem>>, %arg5: memref<1x4x16x8xf32, #tpu.memory_space<vmem>>) attributes {dimension_semantics = [#tpu.dimension_semantics<parallel>], iteration_bounds = array<i64: 2>, scalar_prefetch = 0 : i64, scratch_operands = 0 : i64, tpu.core_type = #tpu.core_type<tc>, window_params = [{transform_indices = @transform_0, window_bounds = array<i64: 1, 4, 16, 8>}, {transform_indices = @transform_1, window_bounds = array<i64: 1, 4, 16, 8>}, {transform_indices = @transform_2, window_bounds = array<i64: 1, 4, 16, 8>}, {transform_indices = @transform_3, window_bounds = array<i64: 1, 1, 16>}, {transform_indices = @transform_4, window_bounds = array<i64: 1, 4, 16, 8>}]} {
    %c0 = arith.constant 0 : index
    %c0_0 = arith.constant 0 : index
    %c0_1 = arith.constant 0 : index
    %c0_2 = arith.constant 0 : index
    %0 = vector.load %arg1[%c0, %c0_0, %c0_1, %c0_2] : memref<1x4x16x8xf32, #tpu.memory_space<vmem>>, vector<1x4x16x8xf32>
    %1 = vector.shape_cast %0 : vector<1x4x16x8xf32> to vector<4x16x8xf32>
    %2 = arith.truncf %1 : vector<4x16x8xf32> to vector<4x16x8xbf16>
    %c0_3 = arith.constant 0 : index
    %c0_4 = arith.constant 0 : index
    %c0_5 = arith.constant 0 : index
    %c0_6 = arith.constant 0 : index
    %3 = vector.load %arg2[%c0_3, %c0_4, %c0_5, %c0_6] : memref<1x4x16x8xf32, #tpu.memory_space<vmem>>, vector<1x4x16x8xf32>
    %4 = vector.shape_cast %3 : vector<1x4x16x8xf32> to vector<4x16x8xf32>
    %5 = arith.truncf %4 : vector<4x16x8xf32> to vector<4x16x8xbf16>
    %c0_7 = arith.constant 0 : index
    %c0_8 = arith.constant 0 : index
    %c0_9 = arith.constant 0 : index
    %c0_10 = arith.constant 0 : index
    %6 = vector.load %arg3[%c0_7, %c0_8, %c0_9, %c0_10] : memref<1x4x16x8xf32, #tpu.memory_space<vmem>>, vector<1x4x16x8xf32>
    %7 = vector.shape_cast %6 : vector<1x4x16x8xf32> to vector<4x16x8xf32>
    %8 = arith.truncf %7 : vector<4x16x8xf32> to vector<4x16x8xbf16>
    "tpu.trace_start"() <{level = 10 : i32, message = "hqd,hkd->hqk"}> : () -> ()
    %cst = arith.constant dense<0.000000e+00> : vector<4x16x16xf32>
    %9 = tpu.matmul %2, %5, %cst {dimension_numbers = #tpu.dot_dimension_numbers<[2], [2], [1], [1], [0, 0, 0, 1, 1, 1], [0], [0]>} : vector<4x16x8xbf16>, vector<4x16x8xbf16>, vector<4x16x16xf32> -> vector<4x16x16xf32>
    "tpu.trace_stop"() : () -> ()
    %cst_11 = arith.constant 0.353553385 : f32
    %10 = vector.broadcast %cst_11 : f32 to vector<4x16x16xf32>
    %11 = arith.mulf %9, %10 : vector<4x16x16xf32>
    %c0_12 = arith.constant 0 : index
    %c0_13 = arith.constant 0 : index
    %c0_14 = arith.constant 0 : index
    %12 = vector.load %arg4[%c0_12, %c0_13, %c0_14] : memref<1x1x16xf32, #tpu.memory_space<vmem>>, vector<1x1x16xf32>
    %13 = vector.shape_cast %12 : vector<1x1x16xf32> to vector<1x16xf32>
    %14 = vector.shape_cast %13 : vector<1x16xf32> to vector<1x1x16xf32>
    %15 = vector.broadcast %14 : vector<1x1x16xf32> to vector<4x16x16xf32>
    %16 = arith.addf %11, %15 : vector<4x16x16xf32>
    %cst_15 = arith.constant dense<0xFF800000> : vector<4x16xf32>
    %17 = vector.multi_reduction <maximumf>, %16, %cst_15 [2] : vector<4x16x16xf32> to vector<4x16xf32>
    %18 = vector.shape_cast %17 : vector<4x16xf32> to vector<4x16x1xf32>
    %19 = vector.broadcast %18 : vector<4x16x1xf32> to vector<4x16x16xf32>
    %20 = arith.subf %16, %19 : vector<4x16x16xf32>
    %21 = math.exp %20 : vector<4x16x16xf32>
    %cst_16 = arith.constant dense<0.000000e+00> : vector<4x16xf32>
    %22 = vector.multi_reduction <add>, %21, %cst_16 [2] : vector<4x16x16xf32> to vector<4x16xf32>
    %23 = vector.shape_cast %22 : vector<4x16xf32> to vector<4x16x1xf32>
    %24 = tpu.reciprocal %23 {approx = true} : vector<4x16x1xf32> -> vector<4x16x1xf32>
    %25 = vector.broadcast %24 : vector<4x16x1xf32> to vector<4x16x16xf32>
    %26 = arith.mulf %21, %25 : vector<4x16x16xf32>
    %27 = arith.truncf %26 : vector<4x16x16xf32> to vector<4x16x16xbf16>
    "tpu.trace_start"() <{level = 10 : i32, message = "hqk,hkd->hqd"}> : () -> ()
    %cst_17 = arith.constant dense<0.000000e+00> : vector<4x16x8xf32>
    %28 = tpu.matmul %27, %8, %cst_17 {dimension_numbers = #tpu.dot_dimension_numbers<[2], [1], [1], [2], [0, 0, 0, 1, 1, 2], [0], [0]>} : vector<4x16x16xbf16>, vector<4x16x8xbf16>, vector<4x16x8xf32> -> vector<4x16x8xf32>
    "tpu.trace_stop"() : () -> ()
    %c0_18 = arith.constant 0 : index
    %c0_19 = arith.constant 0 : index
    %c0_20 = arith.constant 0 : index
    %c0_21 = arith.constant 0 : index
    %29 = vector.load %arg5[%c0_18, %c0_19, %c0_20, %c0_21] : memref<1x4x16x8xf32, #tpu.memory_space<vmem>>, vector<1x4x16x8xf32>
    %30 = vector.shape_cast %29 : vector<1x4x16x8xf32> to vector<4x16x8xf32>
    %31 = vector.shape_cast %28 : vector<4x16x8xf32> to vector<1x4x16x8xf32>
    tpu.vector_store %arg5[%c0_18, %c0_19, %c0_20, %c0_21], %31 {strides = array<i32>} : memref<1x4x16x8xf32, #tpu.memory_space<vmem>>, vector<1x4x16x8xf32>,
    return
  }
  func.func @transform_0(%arg0: i32) -> (i32, i32, i32, i32) {
    %c0_i32 = arith.constant 0 : i32
    %c0_i32_0 = arith.constant 0 : i32
    %c0_i32_1 = arith.constant 0 : i32
    %c0_i32_2 = arith.constant 0 : i32
    return %arg0, %c0_i32, %c0_i32_0, %c0_i32_1 : i32, i32, i32, i32
  }
  func.func @transform_1(%arg0: i32) -> (i32, i32, i32, i32) {
    %c0_i32 = arith.constant 0 : i32
    %c0_i32_0 = arith.constant 0 : i32
    %c0_i32_1 = arith.constant 0 : i32
    %c0_i32_2 = arith.constant 0 : i32
    return %arg0, %c0_i32, %c0_i32_0, %c0_i32_1 : i32, i32, i32, i32
  }
  func.func @transform_2(%arg0: i32) -> (i32, i32, i32, i32) {
    %c0_i32 = arith.constant 0 : i32
    %c0_i32_0 = arith.constant 0 : i32
    %c0_i32_1 = arith.constant 0 : i32
    %c0_i32_2 = arith.constant 0 : i32
    return %arg0, %c0_i32, %c0_i32_0, %c0_i32_1 : i32, i32, i32, i32
  }
  func.func @transform_3(%arg0: i32) -> (i32, i32, i32) {
    %c0_i32 = arith.constant 0 : i32
    %c0_i32_0 = arith.constant 0 : i32
    %c0_i32_1 = arith.constant 0 : i32
    return %arg0, %c0_i32, %c0_i32_0 : i32, i32, i32
  }
  func.func @transform_4(%arg0: i32) -> (i32, i32, i32, i32) {
    %c0_i32 = arith.constant 0 : i32
    %c0_i32_0 = arith.constant 0 : i32
    %c0_i32_1 = arith.constant 0 : i32
    %c0_i32_2 = arith.constant 0 : i32
    return %arg0, %c0_i32, %c0_i32_0, %c0_i32_1 : i32, i32, i32, i32
  }
}

module attributes {stable_mosaic.version = 11 : i64} {
  func.func @_layernorm_kernel(%arg0: i32, %arg1: memref<32x32xf32, #tpu.memory_space<vmem>>, %arg2: memref<1x32xf32, #tpu.memory_space<vmem>>, %arg3: memref<1x32xf32, #tpu.memory_space<vmem>>, %arg4: memref<32x32xf32, #tpu.memory_space<vmem>>) attributes {dimension_semantics = [#tpu.dimension_semantics<parallel>], iteration_bounds = array<i64: 1>, scalar_prefetch = 0 : i64, scratch_operands = 0 : i64, tpu.core_type = #tpu.core_type<tc>, window_params = [{transform_indices = @transform_0, window_bounds = array<i64: 32, 32>}, {pipeline_mode = #tpu.pipeline_mode<synchronous>, transform_indices = @transform_1, window_bounds = array<i64: 1, 32>}, {pipeline_mode = #tpu.pipeline_mode<synchronous>, transform_indices = @transform_2, window_bounds = array<i64: 1, 32>}, {transform_indices = @transform_3, window_bounds = array<i64: 32, 32>}]} {
    %c0 = arith.constant 0 : index
    %c0_0 = arith.constant 0 : index
    %0 = vector.load %arg1[%c0, %c0_0] : memref<32x32xf32, #tpu.memory_space<vmem>>, vector<32x32xf32>
    %cst = arith.constant dense<0.000000e+00> : vector<32xf32>
    %1 = vector.multi_reduction <add>, %0, %cst [1] : vector<32x32xf32> to vector<32xf32>
    %2 = vector.shape_cast %1 : vector<32xf32> to vector<32x1xf32>
    %cst_1 = arith.constant 3.200000e+01 : f32
    %3 = vector.broadcast %cst_1 : f32 to vector<32x1xf32>
    %4 = arith.divf %2, %3 : vector<32x1xf32>
    %5 = vector.broadcast %4 : vector<32x1xf32> to vector<32x32xf32>
    %6 = arith.subf %0, %5 : vector<32x32xf32>
    %7 = arith.mulf %6, %6 : vector<32x32xf32>
    %cst_2 = arith.constant dense<0.000000e+00> : vector<32xf32>
    %8 = vector.multi_reduction <add>, %7, %cst_2 [1] : vector<32x32xf32> to vector<32xf32>
    %9 = vector.shape_cast %8 : vector<32xf32> to vector<32x1xf32>
    %cst_3 = arith.constant 3.200000e+01 : f32
    %10 = vector.broadcast %cst_3 : f32 to vector<32x1xf32>
    %11 = arith.divf %9, %10 : vector<32x1xf32>
    %cst_4 = arith.constant 9.99999974E-6 : f32
    %12 = vector.broadcast %cst_4 : f32 to vector<32x1xf32>
    %13 = arith.addf %11, %12 : vector<32x1xf32>
    %14 = math.rsqrt %13 : vector<32x1xf32>
    %15 = vector.broadcast %14 : vector<32x1xf32> to vector<32x32xf32>
    %16 = arith.mulf %6, %15 : vector<32x32xf32>
    %c0_5 = arith.constant 0 : index
    %c0_6 = arith.constant 0 : index
    %17 = vector.load %arg2[%c0_5, %c0_6] : memref<1x32xf32, #tpu.memory_space<vmem>>, vector<1x32xf32>
    %18 = vector.broadcast %17 : vector<1x32xf32> to vector<32x32xf32>
    %19 = arith.mulf %16, %18 : vector<32x32xf32>
    %c0_7 = arith.constant 0 : index
    %c0_8 = arith.constant 0 : index
    %20 = vector.load %arg3[%c0_7, %c0_8] : memref<1x32xf32, #tpu.memory_space<vmem>>, vector<1x32xf32>
    %21 = vector.broadcast %20 : vector<1x32xf32> to vector<32x32xf32>
    %22 = arith.addf %19, %21 : vector<32x32xf32>
    %c0_9 = arith.constant 0 : index
    %c0_10 = arith.constant 0 : index
    %23 = vector.load %arg4[%c0_9, %c0_10] : memref<32x32xf32, #tpu.memory_space<vmem>>, vector<32x32xf32>
    tpu.vector_store %arg4[%c0_9, %c0_10], %22 {strides = array<i32>} : memref<32x32xf32, #tpu.memory_space<vmem>>, vector<32x32xf32>,
    return
  }
  func.func @transform_0(%arg0: i32) -> (i32, i32) {
    %c0_i32 = arith.constant 0 : i32
    %c0_i32_0 = arith.constant 0 : i32
    return %arg0, %c0_i32 : i32, i32
  }
  func.func @transform_1(%arg0: i32) -> (i32, i32) {
    %c0_i32 = arith.constant 0 : i32
    %c0_i32_0 = arith.constant 0 : i32
    %c0_i32_1 = arith.constant 0 : i32
    return %c0_i32, %c0_i32_0 : i32, i32
  }
  func.func @transform_2(%arg0: i32) -> (i32, i32) {
    %c0_i32 = arith.constant 0 : i32
    %c0_i32_0 = arith.constant 0 : i32
    %c0_i32_1 = arith.constant 0 : i32
    return %c0_i32, %c0_i32_0 : i32, i32
  }
  func.func @transform_3(%arg0: i32) -> (i32, i32) {
    %c0_i32 = arith.constant 0 : i32
    %c0_i32_0 = arith.constant 0 : i32
    return %arg0, %c0_i32 : i32, i32
  }
}

module attributes {stable_mosaic.version = 11 : i64} {
  func.func @_linear_kernel(%arg0: i32, %arg1: memref<32x32xf32, #tpu.memory_space<vmem>>, %arg2: memref<32x64xf32, #tpu.memory_space<vmem>>, %arg3: memref<1x64xf32, #tpu.memory_space<vmem>>, %arg4: memref<32x64xf32, #tpu.memory_space<vmem>>) attributes {dimension_semantics = [#tpu.dimension_semantics<parallel>], iteration_bounds = array<i64: 1>, scalar_prefetch = 0 : i64, scratch_operands = 0 : i64, tpu.core_type = #tpu.core_type<tc>, window_params = [{transform_indices = @transform_0, window_bounds = array<i64: 32, 32>}, {pipeline_mode = #tpu.pipeline_mode<synchronous>, transform_indices = @transform_1, window_bounds = array<i64: 32, 64>}, {pipeline_mode = #tpu.pipeline_mode<synchronous>, transform_indices = @transform_2, window_bounds = array<i64: 1, 64>}, {transform_indices = @transform_3, window_bounds = array<i64: 32, 64>}]} {
    %c0 = arith.constant 0 : index
    %c0_0 = arith.constant 0 : index
    %0 = vector.load %arg1[%c0, %c0_0] : memref<32x32xf32, #tpu.memory_space<vmem>>, vector<32x32xf32>
    %1 = arith.truncf %0 : vector<32x32xf32> to vector<32x32xbf16>
    %c0_1 = arith.constant 0 : index
    %c0_2 = arith.constant 0 : index
    %2 = vector.load %arg2[%c0_1, %c0_2] : memref<32x64xf32, #tpu.memory_space<vmem>>, vector<32x64xf32>
    %3 = arith.truncf %2 : vector<32x64xf32> to vector<32x64xbf16>
    %cst = arith.constant dense<0.000000e+00> : vector<32x64xf32>
    %4 = tpu.matmul %1, %3, %cst {dimension_numbers = #tpu.dot_dimension_numbers<[1], [0], [0], [1], [0, 0, 1, 1], [], []>} : vector<32x32xbf16>, vector<32x64xbf16>, vector<32x64xf32> -> vector<32x64xf32>
    %c0_3 = arith.constant 0 : index
    %c0_4 = arith.constant 0 : index
    %5 = vector.load %arg3[%c0_3, %c0_4] : memref<1x64xf32, #tpu.memory_space<vmem>>, vector<1x64xf32>
    %6 = vector.broadcast %5 : vector<1x64xf32> to vector<32x64xf32>
    %7 = arith.addf %4, %6 : vector<32x64xf32>
    %cst_5 = arith.constant 0.000000e+00 : f32
    %8 = vector.broadcast %cst_5 : f32 to vector<32x64xf32>
    %9 = arith.maximumf %7, %8 : vector<32x64xf32>
    %c0_6 = arith.constant 0 : index
    %c0_7 = arith.constant 0 : index
    %10 = vector.load %arg4[%c0_6, %c0_7] : memref<32x64xf32, #tpu.memory_space<vmem>>, vector<32x64xf32>
    tpu.vector_store %arg4[%c0_6, %c0_7], %9 {strides = array<i32>} : memref<32x64xf32, #tpu.memory_space<vmem>>, vector<32x64xf32>,
    return
  }
  func.func @transform_0(%arg0: i32) -> (i32, i32) {
    %c0_i32 = arith.constant 0 : i32
    %c0_i32_0 = arith.constant 0 : i32
    return %arg0, %c0_i32 : i32, i32
  }
  func.func @transform_1(%arg0: i32) -> (i32, i32) {
    %c0_i32 = arith.constant 0 : i32
    %c0_i32_0 = arith.constant 0 : i32
    %c0_i32_1 = arith.constant 0 : i32
    return %c0_i32, %c0_i32_0 : i32, i32
  }
  func.func @transform_2(%arg0: i32) -> (i32, i32) {
    %c0_i32 = arith.constant 0 : i32
    %c0_i32_0 = arith.constant 0 : i32
    %c0_i32_1 = arith.constant 0 : i32
    return %c0_i32, %c0_i32_0 : i32, i32
  }
  func.func @transform_3(%arg0: i32) -> (i32, i32) {
    %c0_i32 = arith.constant 0 : i32
    %c0_i32_0 = arith.constant 0 : i32
    return %arg0, %c0_i32 : i32, i32
  }
}

module attributes {stable_mosaic.version = 11 : i64} {
  func.func @_dwconv_pw_relu_kernel(%arg0: i32, %arg1: memref<1x18x32xf32, #tpu.memory_space<vmem>>, %arg2: memref<1x3x32xf32, #tpu.memory_space<vmem>>, %arg3: memref<1x1x32xf32, #tpu.memory_space<vmem>>, %arg4: memref<32x32xf32, #tpu.memory_space<vmem>>, %arg5: memref<1x32xf32, #tpu.memory_space<vmem>>, %arg6: memref<1x16x32xf32, #tpu.memory_space<vmem>>) attributes {dimension_semantics = [#tpu.dimension_semantics<parallel>], iteration_bounds = array<i64: 2>, scalar_prefetch = 0 : i64, scratch_operands = 0 : i64, tpu.core_type = #tpu.core_type<tc>, window_params = [{transform_indices = @transform_0, window_bounds = array<i64: 1, 18, 32>}, {pipeline_mode = #tpu.pipeline_mode<synchronous>, transform_indices = @transform_1, window_bounds = array<i64: 1, 3, 32>}, {pipeline_mode = #tpu.pipeline_mode<synchronous>, transform_indices = @transform_2, window_bounds = array<i64: 1, 1, 32>}, {pipeline_mode = #tpu.pipeline_mode<synchronous>, transform_indices = @transform_3, window_bounds = array<i64: 32, 32>}, {pipeline_mode = #tpu.pipeline_mode<synchronous>, transform_indices = @transform_4, window_bounds = array<i64: 1, 32>}, {transform_indices = @transform_5, window_bounds = array<i64: 1, 16, 32>}]} {
    %c0 = arith.constant 0 : index
    %c0_0 = arith.constant 0 : index
    %c0_1 = arith.constant 0 : index
    %0 = vector.load %arg1[%c0, %c0_0, %c0_1] : memref<1x18x32xf32, #tpu.memory_space<vmem>>, vector<1x18x32xf32>
    %1 = vector.shape_cast %0 : vector<1x18x32xf32> to vector<18x32xf32>
    %c0_2 = arith.constant 0 : index
    %c0_3 = arith.constant 0 : index
    %c0_4 = arith.constant 0 : index
    %2 = vector.load %arg2[%c0_2, %c0_3, %c0_4] : memref<1x3x32xf32, #tpu.memory_space<vmem>>, vector<1x3x32xf32>
    %3 = vector.shape_cast %2 : vector<1x3x32xf32> to vector<3x32xf32>
    %4 = vector.extract_strided_slice %1 {offsets = [0, 0], sizes = [16, 32], strides = [1, 1]} : vector<18x32xf32> to vector<16x32xf32>
    %5 = vector.extract_strided_slice %3 {offsets = [0, 0], sizes = [1, 32], strides = [1, 1]} : vector<3x32xf32> to vector<1x32xf32>
    %6 = vector.broadcast %5 : vector<1x32xf32> to vector<16x32xf32>
    %7 = arith.mulf %4, %6 : vector<16x32xf32>
    %8 = vector.extract_strided_slice %1 {offsets = [1, 0], sizes = [16, 32], strides = [1, 1]} : vector<18x32xf32> to vector<16x32xf32>
    %9 = vector.extract_strided_slice %3 {offsets = [1, 0], sizes = [1, 32], strides = [1, 1]} : vector<3x32xf32> to vector<1x32xf32>
    %10 = vector.broadcast %9 : vector<1x32xf32> to vector<16x32xf32>
    %11 = arith.mulf %8, %10 : vector<16x32xf32>
    %12 = arith.addf %7, %11 : vector<16x32xf32>
    %13 = vector.extract_strided_slice %1 {offsets = [2, 0], sizes = [16, 32], strides = [1, 1]} : vector<18x32xf32> to vector<16x32xf32>
    %14 = vector.extract_strided_slice %3 {offsets = [2, 0], sizes = [1, 32], strides = [1, 1]} : vector<3x32xf32> to vector<1x32xf32>
    %15 = vector.broadcast %14 : vector<1x32xf32> to vector<16x32xf32>
    %16 = arith.mulf %13, %15 : vector<16x32xf32>
    %17 = arith.addf %12, %16 : vector<16x32xf32>
    %c0_5 = arith.constant 0 : index
    %c0_6 = arith.constant 0 : index
    %c0_7 = arith.constant 0 : index
    %18 = vector.load %arg3[%c0_5, %c0_6, %c0_7] : memref<1x1x32xf32, #tpu.memory_space<vmem>>, vector<1x1x32xf32>
    %19 = vector.shape_cast %18 : vector<1x1x32xf32> to vector<1x32xf32>
    %20 = vector.broadcast %19 : vector<1x32xf32> to vector<16x32xf32>
    %21 = arith.addf %17, %20 : vector<16x32xf32>
    %22 = arith.truncf %21 : vector<16x32xf32> to vector<16x32xbf16>
    %c0_8 = arith.constant 0 : index
    %c0_9 = arith.constant 0 : index
    %23 = vector.load %arg4[%c0_8, %c0_9] : memref<32x32xf32, #tpu.memory_space<vmem>>, vector<32x32xf32>
    %24 = arith.truncf %23 : vector<32x32xf32> to vector<32x32xbf16>
    %cst = arith.constant dense<0.000000e+00> : vector<16x32xf32>
    %25 = tpu.matmul %22, %24, %cst {dimension_numbers = #tpu.dot_dimension_numbers<[1], [0], [0], [1], [0, 0, 1, 1], [], []>} : vector<16x32xbf16>, vector<32x32xbf16>, vector<16x32xf32> -> vector<16x32xf32>
    %c0_10 = arith.constant 0 : index
    %c0_11 = arith.constant 0 : index
    %26 = vector.load %arg5[%c0_10, %c0_11] : memref<1x32xf32, #tpu.memory_space<vmem>>, vector<1x32xf32>
    %27 = vector.broadcast %26 : vector<1x32xf32> to vector<16x32xf32>
    %28 = arith.addf %25, %27 : vector<16x32xf32>
    %cst_12 = arith.constant 0.000000e+00 : f32
    %29 = vector.broadcast %cst_12 : f32 to vector<16x32xf32>
    %30 = arith.maximumf %28, %29 : vector<16x32xf32>
    %c0_13 = arith.constant 0 : index
    %c0_14 = arith.constant 0 : index
    %c0_15 = arith.constant 0 : index
    %31 = vector.load %arg6[%c0_13, %c0_14, %c0_15] : memref<1x16x32xf32, #tpu.memory_space<vmem>>, vector<1x16x32xf32>
    %32 = vector.shape_cast %31 : vector<1x16x32xf32> to vector<16x32xf32>
    %33 = vector.shape_cast %30 : vector<16x32xf32> to vector<1x16x32xf32>
    tpu.vector_store %arg6[%c0_13, %c0_14, %c0_15], %33 {strides = array<i32>} : memref<1x16x32xf32, #tpu.memory_space<vmem>>, vector<1x16x32xf32>,
    return
  }
  func.func @transform_0(%arg0: i32) -> (i32, i32, i32) {
    %c0_i32 = arith.constant 0 : i32
    %c0_i32_0 = arith.constant 0 : i32
    %c0_i32_1 = arith.constant 0 : i32
    return %arg0, %c0_i32, %c0_i32_0 : i32, i32, i32
  }
  func.func @transform_1(%arg0: i32) -> (i32, i32, i32) {
    %c0_i32 = arith.constant 0 : i32
    %c0_i32_0 = arith.constant 0 : i32
    %c0_i32_1 = arith.constant 0 : i32
    %c0_i32_2 = arith.constant 0 : i32
    return %c0_i32, %c0_i32_0, %c0_i32_1 : i32, i32, i32
  }
  func.func @transform_2(%arg0: i32) -> (i32, i32, i32) {
    %c0_i32 = arith.constant 0 : i32
    %c0_i32_0 = arith.constant 0 : i32
    %c0_i32_1 = arith.constant 0 : i32
    %c0_i32_2 = arith.constant 0 : i32
    return %c0_i32, %c0_i32_0, %c0_i32_1 : i32, i32, i32
  }
  func.func @transform_3(%arg0: i32) -> (i32, i32) {
    %c0_i32 = arith.constant 0 : i32
    %c0_i32_0 = arith.constant 0 : i32
    %c0_i32_1 = arith.constant 0 : i32
    return %c0_i32, %c0_i32_0 : i32, i32
  }
  func.func @transform_4(%arg0: i32) -> (i32, i32) {
    %c0_i32 = arith.constant 0 : i32
    %c0_i32_0 = arith.constant 0 : i32
    %c0_i32_1 = arith.constant 0 : i32
    return %c0_i32, %c0_i32_0 : i32, i32
  }
  func.func @transform_5(%arg0: i32) -> (i32, i32, i32) {
    %c0_i32 = arith.constant 0 : i32
    %c0_i32_0 = arith.constant 0 : i32
    %c0_i32_1 = arith.constant 0 : i32
    return %arg0, %c0_i32, %c0_i32_0 : i32, i32, i32
  }
}

module attributes {stable_mosaic.version = 11 : i64} {
  func.func @_linear_kernel(%arg0: i32, %arg1: memref<32x64xf32, #tpu.memory_space<vmem>>, %arg2: memref<64x64xf32, #tpu.memory_space<vmem>>, %arg3: memref<1x64xf32, #tpu.memory_space<vmem>>, %arg4: memref<32x64xf32, #tpu.memory_space<vmem>>) attributes {dimension_semantics = [#tpu.dimension_semantics<parallel>], iteration_bounds = array<i64: 1>, scalar_prefetch = 0 : i64, scratch_operands = 0 : i64, tpu.core_type = #tpu.core_type<tc>, window_params = [{transform_indices = @transform_0, window_bounds = array<i64: 32, 64>}, {pipeline_mode = #tpu.pipeline_mode<synchronous>, transform_indices = @transform_1, window_bounds = array<i64: 64, 64>}, {pipeline_mode = #tpu.pipeline_mode<synchronous>, transform_indices = @transform_2, window_bounds = array<i64: 1, 64>}, {transform_indices = @transform_3, window_bounds = array<i64: 32, 64>}]} {
    %c0 = arith.constant 0 : index
    %c0_0 = arith.constant 0 : index
    %0 = vector.load %arg1[%c0, %c0_0] : memref<32x64xf32, #tpu.memory_space<vmem>>, vector<32x64xf32>
    %1 = arith.truncf %0 : vector<32x64xf32> to vector<32x64xbf16>
    %c0_1 = arith.constant 0 : index
    %c0_2 = arith.constant 0 : index
    %2 = vector.load %arg2[%c0_1, %c0_2] : memref<64x64xf32, #tpu.memory_space<vmem>>, vector<64x64xf32>
    %3 = arith.truncf %2 : vector<64x64xf32> to vector<64x64xbf16>
    %cst = arith.constant dense<0.000000e+00> : vector<32x64xf32>
    %4 = tpu.matmul %1, %3, %cst {dimension_numbers = #tpu.dot_dimension_numbers<[1], [0], [0], [1], [0, 0, 1, 1], [], []>} : vector<32x64xbf16>, vector<64x64xbf16>, vector<32x64xf32> -> vector<32x64xf32>
    %c0_3 = arith.constant 0 : index
    %c0_4 = arith.constant 0 : index
    %5 = vector.load %arg3[%c0_3, %c0_4] : memref<1x64xf32, #tpu.memory_space<vmem>>, vector<1x64xf32>
    %6 = vector.broadcast %5 : vector<1x64xf32> to vector<32x64xf32>
    %7 = arith.addf %4, %6 : vector<32x64xf32>
    %cst_5 = arith.constant 0.000000e+00 : f32
    %8 = vector.broadcast %cst_5 : f32 to vector<32x64xf32>
    %9 = arith.maximumf %7, %8 : vector<32x64xf32>
    %c0_6 = arith.constant 0 : index
    %c0_7 = arith.constant 0 : index
    %10 = vector.load %arg4[%c0_6, %c0_7] : memref<32x64xf32, #tpu.memory_space<vmem>>, vector<32x64xf32>
    tpu.vector_store %arg4[%c0_6, %c0_7], %9 {strides = array<i32>} : memref<32x64xf32, #tpu.memory_space<vmem>>, vector<32x64xf32>,
    return
  }
  func.func @transform_0(%arg0: i32) -> (i32, i32) {
    %c0_i32 = arith.constant 0 : i32
    %c0_i32_0 = arith.constant 0 : i32
    return %arg0, %c0_i32 : i32, i32
  }
  func.func @transform_1(%arg0: i32) -> (i32, i32) {
    %c0_i32 = arith.constant 0 : i32
    %c0_i32_0 = arith.constant 0 : i32
    %c0_i32_1 = arith.constant 0 : i32
    return %c0_i32, %c0_i32_0 : i32, i32
  }
  func.func @transform_2(%arg0: i32) -> (i32, i32) {
    %c0_i32 = arith.constant 0 : i32
    %c0_i32_0 = arith.constant 0 : i32
    %c0_i32_1 = arith.constant 0 : i32
    return %c0_i32, %c0_i32_0 : i32, i32
  }
  func.func @transform_3(%arg0: i32) -> (i32, i32) {
    %c0_i32 = arith.constant 0 : i32
    %c0_i32_0 = arith.constant 0 : i32
    return %arg0, %c0_i32 : i32, i32
  }
}

module attributes {stable_mosaic.version = 11 : i64} {
  func.func @_linear_kernel(%arg0: i32, %arg1: memref<32x64xf32, #tpu.memory_space<vmem>>, %arg2: memref<64x8xf32, #tpu.memory_space<vmem>>, %arg3: memref<1x8xf32, #tpu.memory_space<vmem>>, %arg4: memref<32x8xf32, #tpu.memory_space<vmem>>) attributes {dimension_semantics = [#tpu.dimension_semantics<parallel>], iteration_bounds = array<i64: 1>, scalar_prefetch = 0 : i64, scratch_operands = 0 : i64, tpu.core_type = #tpu.core_type<tc>, window_params = [{transform_indices = @transform_0, window_bounds = array<i64: 32, 64>}, {pipeline_mode = #tpu.pipeline_mode<synchronous>, transform_indices = @transform_1, window_bounds = array<i64: 64, 8>}, {pipeline_mode = #tpu.pipeline_mode<synchronous>, transform_indices = @transform_2, window_bounds = array<i64: 1, 8>}, {transform_indices = @transform_3, window_bounds = array<i64: 32, 8>}]} {
    %c0 = arith.constant 0 : index
    %c0_0 = arith.constant 0 : index
    %0 = vector.load %arg1[%c0, %c0_0] : memref<32x64xf32, #tpu.memory_space<vmem>>, vector<32x64xf32>
    %1 = arith.truncf %0 : vector<32x64xf32> to vector<32x64xbf16>
    %c0_1 = arith.constant 0 : index
    %c0_2 = arith.constant 0 : index
    %2 = vector.load %arg2[%c0_1, %c0_2] : memref<64x8xf32, #tpu.memory_space<vmem>>, vector<64x8xf32>
    %3 = arith.truncf %2 : vector<64x8xf32> to vector<64x8xbf16>
    %cst = arith.constant dense<0.000000e+00> : vector<32x8xf32>
    %4 = tpu.matmul %1, %3, %cst {dimension_numbers = #tpu.dot_dimension_numbers<[1], [0], [0], [1], [0, 0, 1, 1], [], []>} : vector<32x64xbf16>, vector<64x8xbf16>, vector<32x8xf32> -> vector<32x8xf32>
    %c0_3 = arith.constant 0 : index
    %c0_4 = arith.constant 0 : index
    %5 = vector.load %arg3[%c0_3, %c0_4] : memref<1x8xf32, #tpu.memory_space<vmem>>, vector<1x8xf32>
    %6 = vector.broadcast %5 : vector<1x8xf32> to vector<32x8xf32>
    %7 = arith.addf %4, %6 : vector<32x8xf32>
    %c0_5 = arith.constant 0 : index
    %c0_6 = arith.constant 0 : index
    %8 = vector.load %arg4[%c0_5, %c0_6] : memref<32x8xf32, #tpu.memory_space<vmem>>, vector<32x8xf32>
    tpu.vector_store %arg4[%c0_5, %c0_6], %7 {strides = array<i32>} : memref<32x8xf32, #tpu.memory_space<vmem>>, vector<32x8xf32>,
    return
  }
  func.func @transform_0(%arg0: i32) -> (i32, i32) {
    %c0_i32 = arith.constant 0 : i32
    %c0_i32_0 = arith.constant 0 : i32
    return %arg0, %c0_i32 : i32, i32
  }
  func.func @transform_1(%arg0: i32) -> (i32, i32) {
    %c0_i32 = arith.constant 0 : i32
    %c0_i32_0 = arith.constant 0 : i32
    %c0_i32_1 = arith.constant 0 : i32
    return %c0_i32, %c0_i32_0 : i32, i32
  }
  func.func @transform_2(%arg0: i32) -> (i32, i32) {
    %c0_i32 = arith.constant 0 : i32
    %c0_i32_0 = arith.constant 0 : i32
    %c0_i32_1 = arith.constant 0 : i32
    return %c0_i32, %c0_i32_0 : i32, i32
  }
  func.func @transform_3(%arg0: i32) -> (i32, i32) {
    %c0_i32 = arith.constant 0 : i32
    %c0_i32_0 = arith.constant 0 : i32
    return %arg0, %c0_i32 : i32, i32
  }
}

module attributes {stable_mosaic.version = 11 : i64} {
  func.func @_postnet_kernel(%arg0: i32, %arg1: memref<1x16x8x1xf32, #tpu.memory_space<vmem>>, %arg2: memref<1x16x8x1xf32, #tpu.memory_space<vmem>>, %arg3: memref<1x16x32xf32, #tpu.memory_space<vmem>>, %arg4: memref<32x16xf32, #tpu.memory_space<vmem>>, %arg5: memref<1x1x16xf32, #tpu.memory_space<vmem>>, %arg6: memref<1x1x16xf32, #tpu.memory_space<vmem>>, %arg7: memref<1x1x16xf32, #tpu.memory_space<vmem>>, %arg8: memref<1x16x8x16xf32, #tpu.memory_space<vmem>>) attributes {dimension_semantics = [#tpu.dimension_semantics<parallel>], iteration_bounds = array<i64: 2>, scalar_prefetch = 0 : i64, scratch_operands = 0 : i64, tpu.core_type = #tpu.core_type<tc>, window_params = [{transform_indices = @transform_0, window_bounds = array<i64: 1, 16, 8, 1>}, {transform_indices = @transform_1, window_bounds = array<i64: 1, 16, 8, 1>}, {transform_indices = @transform_2, window_bounds = array<i64: 1, 16, 32>}, {pipeline_mode = #tpu.pipeline_mode<synchronous>, transform_indices = @transform_3, window_bounds = array<i64: 32, 16>}, {pipeline_mode = #tpu.pipeline_mode<synchronous>, transform_indices = @transform_4, window_bounds = array<i64: 1, 1, 16>}, {pipeline_mode = #tpu.pipeline_mode<synchronous>, transform_indices = @transform_5, window_bounds = array<i64: 1, 1, 16>}, {pipeline_mode = #tpu.pipeline_mode<synchronous>, transform_indices = @transform_6, window_bounds = array<i64: 1, 1, 16>}, {transform_indices = @transform_7, window_bounds = array<i64: 1, 16, 8, 16>}]} {
    %c0 = arith.constant 0 : index
    %c0_0 = arith.constant 0 : index
    %c0_1 = arith.constant 0 : index
    %c0_2 = arith.constant 0 : index
    %0 = vector.load %arg1[%c0, %c0_0, %c0_1, %c0_2] : memref<1x16x8x1xf32, #tpu.memory_space<vmem>>, vector<1x16x8x1xf32>
    %1 = vector.shape_cast %0 : vector<1x16x8x1xf32> to vector<16x8x1xf32>
    %cst = arith.constant -5.000000e+00 : f32
    %cst_3 = arith.constant 5.000000e+00 : f32
    %2 = vector.broadcast %cst : f32 to vector<16x8x1xf32>
    %3 = arith.maximumf %2, %1 : vector<16x8x1xf32>
    %4 = vector.broadcast %cst_3 : f32 to vector<16x8x1xf32>
    %5 = arith.minimumf %4, %3 : vector<16x8x1xf32>
    %c0_4 = arith.constant 0 : index
    %c0_5 = arith.constant 0 : index
    %c0_6 = arith.constant 0 : index
    %c0_7 = arith.constant 0 : index
    %6 = vector.load %arg2[%c0_4, %c0_5, %c0_6, %c0_7] : memref<1x16x8x1xf32, #tpu.memory_space<vmem>>, vector<1x16x8x1xf32>
    %7 = vector.shape_cast %6 : vector<1x16x8x1xf32> to vector<16x8x1xf32>
    %c0_8 = arith.constant 0 : index
    %c0_9 = arith.constant 0 : index
    %c0_10 = arith.constant 0 : index
    %8 = vector.load %arg3[%c0_8, %c0_9, %c0_10] : memref<1x16x32xf32, #tpu.memory_space<vmem>>, vector<1x16x32xf32>
    %9 = vector.shape_cast %8 : vector<1x16x32xf32> to vector<16x32xf32>
    %10 = arith.truncf %9 : vector<16x32xf32> to vector<16x32xbf16>
    %c0_11 = arith.constant 0 : index
    %c0_12 = arith.constant 0 : index
    %11 = vector.load %arg4[%c0_11, %c0_12] : memref<32x16xf32, #tpu.memory_space<vmem>>, vector<32x16xf32>
    %12 = arith.truncf %11 : vector<32x16xf32> to vector<32x16xbf16>
    %cst_13 = arith.constant dense<0.000000e+00> : vector<16x16xf32>
    %13 = tpu.matmul %10, %12, %cst_13 {dimension_numbers = #tpu.dot_dimension_numbers<[1], [0], [0], [1], [0, 0, 1, 1], [], []>} : vector<16x32xbf16>, vector<32x16xbf16>, vector<16x16xf32> -> vector<16x16xf32>
    %c0_14 = arith.constant 0 : index
    %c0_15 = arith.constant 0 : index
    %c0_16 = arith.constant 0 : index
    %14 = vector.load %arg5[%c0_14, %c0_15, %c0_16] : memref<1x1x16xf32, #tpu.memory_space<vmem>>, vector<1x1x16xf32>
    %15 = vector.shape_cast %14 : vector<1x1x16xf32> to vector<1x16xf32>
    %16 = vector.broadcast %15 : vector<1x16xf32> to vector<16x16xf32>
    %17 = arith.addf %13, %16 : vector<16x16xf32>
    %c0_17 = arith.constant 0 : index
    %c0_18 = arith.constant 0 : index
    %c0_19 = arith.constant 0 : index
    %18 = vector.load %arg6[%c0_17, %c0_18, %c0_19] : memref<1x1x16xf32, #tpu.memory_space<vmem>>, vector<1x1x16xf32>
    %19 = vector.shape_cast %18 : vector<1x1x16xf32> to vector<1x16xf32>
    %20 = vector.shape_cast %19 : vector<1x16xf32> to vector<1x1x16xf32>
    %21 = vector.broadcast %5 : vector<16x8x1xf32> to vector<16x8x16xf32>
    %22 = vector.broadcast %20 : vector<1x1x16xf32> to vector<16x8x16xf32>
    %23 = arith.mulf %21, %22 : vector<16x8x16xf32>
    %c0_20 = arith.constant 0 : index
    %c0_21 = arith.constant 0 : index
    %c0_22 = arith.constant 0 : index
    %24 = vector.load %arg7[%c0_20, %c0_21, %c0_22] : memref<1x1x16xf32, #tpu.memory_space<vmem>>, vector<1x1x16xf32>
    %25 = vector.shape_cast %24 : vector<1x1x16xf32> to vector<1x16xf32>
    %26 = vector.shape_cast %25 : vector<1x16xf32> to vector<1x1x16xf32>
    %27 = vector.broadcast %7 : vector<16x8x1xf32> to vector<16x8x16xf32>
    %28 = vector.broadcast %26 : vector<1x1x16xf32> to vector<16x8x16xf32>
    %29 = arith.mulf %27, %28 : vector<16x8x16xf32>
    %30 = arith.addf %23, %29 : vector<16x8x16xf32>
    %31 = vector.shape_cast %17 : vector<16x16xf32> to vector<16x1x16xf32>
    %32 = vector.broadcast %31 : vector<16x1x16xf32> to vector<16x8x16xf32>
    %33 = arith.addf %30, %32 : vector<16x8x16xf32>
    %c0_23 = arith.constant 0 : index
    %c0_24 = arith.constant 0 : index
    %c0_25 = arith.constant 0 : index
    %c0_26 = arith.constant 0 : index
    %34 = vector.load %arg8[%c0_23, %c0_24, %c0_25, %c0_26] : memref<1x16x8x16xf32, #tpu.memory_space<vmem>>, vector<1x16x8x16xf32>
    %35 = vector.shape_cast %34 : vector<1x16x8x16xf32> to vector<16x8x16xf32>
    %36 = vector.shape_cast %33 : vector<16x8x16xf32> to vector<1x16x8x16xf32>
    tpu.vector_store %arg8[%c0_23, %c0_24, %c0_25, %c0_26], %36 {strides = array<i32>} : memref<1x16x8x16xf32, #tpu.memory_space<vmem>>, vector<1x16x8x16xf32>,
    return
  }
  func.func @transform_0(%arg0: i32) -> (i32, i32, i32, i32) {
    %c0_i32 = arith.constant 0 : i32
    %c0_i32_0 = arith.constant 0 : i32
    %c0_i32_1 = arith.constant 0 : i32
    %c0_i32_2 = arith.constant 0 : i32
    return %arg0, %c0_i32, %c0_i32_0, %c0_i32_1 : i32, i32, i32, i32
  }
  func.func @transform_1(%arg0: i32) -> (i32, i32, i32, i32) {
    %c0_i32 = arith.constant 0 : i32
    %c0_i32_0 = arith.constant 0 : i32
    %c0_i32_1 = arith.constant 0 : i32
    %c0_i32_2 = arith.constant 0 : i32
    return %arg0, %c0_i32, %c0_i32_0, %c0_i32_1 : i32, i32, i32, i32
  }
  func.func @transform_2(%arg0: i32) -> (i32, i32, i32) {
    %c0_i32 = arith.constant 0 : i32
    %c0_i32_0 = arith.constant 0 : i32
    %c0_i32_1 = arith.constant 0 : i32
    return %arg0, %c0_i32, %c0_i32_0 : i32, i32, i32
  }
  func.func @transform_3(%arg0: i32) -> (i32, i32) {
    %c0_i32 = arith.constant 0 : i32
    %c0_i32_0 = arith.constant 0 : i32
    %c0_i32_1 = arith.constant 0 : i32
    return %c0_i32, %c0_i32_0 : i32, i32
  }
  func.func @transform_4(%arg0: i32) -> (i32, i32, i32) {
    %c0_i32 = arith.constant 0 : i32
    %c0_i32_0 = arith.constant 0 : i32
    %c0_i32_1 = arith.constant 0 : i32
    %c0_i32_2 = arith.constant 0 : i32
    return %c0_i32, %c0_i32_0, %c0_i32_1 : i32, i32, i32
  }
  func.func @transform_5(%arg0: i32) -> (i32, i32, i32) {
    %c0_i32 = arith.constant 0 : i32
    %c0_i32_0 = arith.constant 0 : i32
    %c0_i32_1 = arith.constant 0 : i32
    %c0_i32_2 = arith.constant 0 : i32
    return %c0_i32, %c0_i32_0, %c0_i32_1 : i32, i32, i32
  }
  func.func @transform_6(%arg0: i32) -> (i32, i32, i32) {
    %c0_i32 = arith.constant 0 : i32
    %c0_i32_0 = arith.constant 0 : i32
    %c0_i32_1 = arith.constant 0 : i32
    %c0_i32_2 = arith.constant 0 : i32
    return %c0_i32, %c0_i32_0, %c0_i32_1 : i32, i32, i32
  }
  func.func @transform_7(%arg0: i32) -> (i32, i32, i32, i32) {
    %c0_i32 = arith.constant 0 : i32
    %c0_i32_0 = arith.constant 0 : i32
    %c0_i32_1 = arith.constant 0 : i32
    %c0_i32_2 = arith.constant 0 : i32
    return %arg0, %c0_i32, %c0_i32_0, %c0_i32_1 : i32, i32, i32, i32
  }
}

</mosaic_0001>

<llo_original>
// kernel: conformer_forward.26
$region0: #{conformer_forward.26}
  #allocation0 [shape = 'u32[]', space=smem, size = 0x4, offset = 0x4, fixed_abs, tag = 'smem constant byte address 0x4 - core index']
  #allocation1 [shape = 'u32[144,128]{1,0:T(1,128)}', space=vmem, size = 0x12000, scoped, tag = 'internal scratch']
  %s0 = inlined_call_operand.vmem [shape: f32[16,32], index: 0, kind: input, shape index: {}]
  %s1 = inlined_call_operand.vmem [shape: f32[32,32], index: 1, kind: input, shape index: {}]
  %s2 = inlined_call_operand.vmem [shape: f32[1,32], index: 2, kind: input, shape index: {}]
  %s3 = inlined_call_operand.vmem [shape: f32[16,32], index: 3, kind: output, shape index: {}]
  %s4 = sld [smem:[#allocation0]]
  $region22: #{conformer_forward.26} parent=0
    _
  %s6 = ssub.s32 1, %s4
  %s7 = scalar_select 0, %s6, %s4
  // Predicated region
  $region2: #{conformer_forward.26} parent=0 // pred_check
    _
  $region3: #{conformer_forward.26} parent=0 // pred_check_branch
    %9 = sbr.rel (0) target = $region5
  $region4: #{conformer_forward.26} parent=0 // pred_region
    _
  $region5: #{conformer_forward.26} parent=0 // pred_fallthru
    _
  // Predicated region
  $region6: #{conformer_forward.26} parent=0 // pred_check
    _
  $region7: #{conformer_forward.26} parent=0 // pred_check_branch
    %11 = sbr.rel (0) target = $region9
  $region8: #{conformer_forward.26} parent=0 // pred_region
    _
  $region9: #{conformer_forward.26} parent=0 // pred_fallthru
    _
  // Predicated region
  $region10: #{conformer_forward.26} parent=0 // pred_check
    _
  $region11: #{conformer_forward.26} parent=0 // pred_check_branch
    %13 = sbr.rel (0) target = $region13
  $region12: #{conformer_forward.26} parent=0 // pred_region
    _
  $region13: #{conformer_forward.26} parent=0 // pred_fallthru
    _
  %v15 = vld [vmem:[%s0] sm:$0xff]
  %v16 = vld [vmem:[%s0 + $0x8] sm:$0xff]
  %v17 = vpack.c.bf16 %v16, %v15
  %v18 = vld [vmem:[%s1] sm:$0xff]
  %v19 = vld [vmem:[%s1 + $0x8] sm:$0xff]
  %v20 = vld [vmem:[%s1 + $0x10] sm:$0xff]
  %v21 = vld [vmem:[%s1 + $0x18] sm:$0xff]
  %v22 = vpack.c.bf16 %v19, %v18
  %v23 = vpack.c.bf16 %v21, %v20
  %v24 = vld [vmem:[%s2] sm:$0x1]
  %v26 = vlaneseq
  %v27 = vshrl.u32 %v26, 7
  %v28 = vsub.s32 0, %v27
  %v29 = vrot.slane %v24, %v28
  %vm31 = vcmask 261120
  %v33 = vsel %vm31, %v17, 0
  %35 = vmatprep.subr.bf16.mxu0 0
  %36 = vmatpush1.bf16.msra.mxu0 %v22
  %37 = vmatprep.subr.bf16.mxu0 0
  %38 = vmatpush1.bf16.msra.mxu0 %v23
  %39 = vmatprep.subr.bf16.mxu0 0
  %40 = vmatpush1.bf16.msra.mxu0 0
  %41 = vmatprep.subr.bf16.mxu0 0
  %42 = vmatpush1.bf16.msra.mxu0 0
  %43 = vmatprep.subr.bf16.mxu0 0
  %44 = vmatpush1.bf16.msra.mxu0 0
  %45 = vmatprep.subr.bf16.mxu0 0
  %46 = vmatpush1.bf16.msra.mxu0 0
  %47 = vmatprep.subr.bf16.mxu0 0
  %48 = vmatpush1.bf16.msra.mxu0 0
  %49 = vmatprep.subr.bf16.mxu0 0
  %50 = vmatpush1.bf16.msra.mxu0 0
  %51 = vmatprep.subr.bf16.mxu0 0
  %52 = vmatpush1.bf16.msra.mxu0 0
  %53 = vmatprep.subr.bf16.mxu0 0
  %54 = vmatpush1.bf16.msra.mxu0 0
  %55 = vmatprep.subr.bf16.mxu0 0
  %56 = vmatpush1.bf16.msra.mxu0 0
  %57 = vmatprep.subr.bf16.mxu0 0
  %58 = vmatpush1.bf16.msra.mxu0 0
  %59 = vmatprep.subr.bf16.mxu0 0
  %60 = vmatpush1.bf16.msra.mxu0 0
  %61 = vmatprep.subr.bf16.mxu0 0
  %62 = vmatpush1.bf16.msra.mxu0 0
  %63 = vmatprep.subr.bf16.mxu0 0
  %64 = vmatpush1.bf16.msra.mxu0 0
  %65 = vmatprep.subr.bf16.mxu0 0
  %66 = vmatpush1.bf16.msra.mxu0 0
  %67 = vmatprep.mubr.bf16.mxu0 0
  %68 = vmatmul.mubr.bf16.gmra.mrb[0].mxu0 %v33
  %v69 = vpop.f32.mrb[0].mxu0
  %v70 = vadd.f32 %v29, %v69
  %v71 = vpop.f32.mrb[0].mxu0
  %v72 = vpop.f32.mrb[0].mxu0
  %v73 = vadd.f32 %v29, %v72
  %v74 = vpop.f32.mrb[0].mxu0
  %75 = vdwg.mxu0
  %76 = vst.msk [vmem:[%s3] sm:$0xff] %vm31, %v70
  %77 = vst.msk [vmem:[%s3 + $0x8] sm:$0xff] %vm31, %v73
  // Predicated region
  $region14: #{conformer_forward.26} parent=0 // pred_check
    _
  $region15: #{conformer_forward.26} parent=0 // pred_check_branch
    %79 = sbr.rel (0) target = $region17
  $region16: #{conformer_forward.26} parent=0 // pred_region
    _
  $region17: #{conformer_forward.26} parent=0 // pred_fallthru
    _
  // Predicated region
  $region18: #{conformer_forward.26} parent=0 // pred_check
    _
  $region19: #{conformer_forward.26} parent=0 // pred_check_branch
    %81 = sbr.rel (0) target = $region21
  $region20: #{conformer_forward.26} parent=0 // pred_region
    _
  $region21: #{conformer_forward.26} parent=0 // pred_fallthru
    _

// kernel: conformer_forward.25
$region0: #{conformer_forward.25}
  #allocation0 [shape = 'u32[]', space=smem, size = 0x4, offset = 0x4, fixed_abs, tag = 'smem constant byte address 0x4 - core index']
  #allocation1 [shape = 'u32[144,128]{1,0:T(1,128)}', space=vmem, size = 0x12000, scoped, tag = 'internal scratch']
  %s0 = inlined_call_operand.vmem [shape: f32[32,32], index: 0, kind: input, shape index: {}]
  %s1 = inlined_call_operand.vmem [shape: f32[32,32], index: 1, kind: input, shape index: {}]
  %s2 = inlined_call_operand.vmem [shape: f32[1,32], index: 2, kind: input, shape index: {}]
  %s3 = inlined_call_operand.vmem [shape: f32[32,32], index: 3, kind: output, shape index: {}]
  %s4 = sld [smem:[#allocation0]]
  $region22: #{conformer_forward.25} parent=0
    _
  %s6 = ssub.s32 1, %s4
  %s7 = scalar_select 0, %s6, %s4
  // Predicated region
  $region2: #{conformer_forward.25} parent=0 // pred_check
    _
  $region3: #{conformer_forward.25} parent=0 // pred_check_branch
    %9 = sbr.rel (0) target = $region5
  $region4: #{conformer_forward.25} parent=0 // pred_region
    _
  $region5: #{conformer_forward.25} parent=0 // pred_fallthru
    _
  // Predicated region
  $region6: #{conformer_forward.25} parent=0 // pred_check
    _
  $region7: #{conformer_forward.25} parent=0 // pred_check_branch
    %11 = sbr.rel (0) target = $region9
  $region8: #{conformer_forward.25} parent=0 // pred_region
    _
  $region9: #{conformer_forward.25} parent=0 // pred_fallthru
    _
  // Predicated region
  $region10: #{conformer_forward.25} parent=0 // pred_check
    _
  $region11: #{conformer_forward.25} parent=0 // pred_check_branch
    %13 = sbr.rel (0) target = $region13
  $region12: #{conformer_forward.25} parent=0 // pred_region
    _
  $region13: #{conformer_forward.25} parent=0 // pred_fallthru
    _
  %v15 = vld [vmem:[%s0] sm:$0xff]
  %v16 = vld [vmem:[%s0 + $0x8] sm:$0xff]
  %v17 = vld [vmem:[%s0 + $0x10] sm:$0xff]
  %v18 = vld [vmem:[%s0 + $0x18] sm:$0xff]
  %v19 = vpack.c.bf16 %v16, %v15
  %v20 = vpack.c.bf16 %v18, %v17
  %v21 = vld [vmem:[%s1] sm:$0xff]
  %v22 = vld [vmem:[%s1 + $0x8] sm:$0xff]
  %v23 = vld [vmem:[%s1 + $0x10] sm:$0xff]
  %v24 = vld [vmem:[%s1 + $0x18] sm:$0xff]
  %v25 = vpack.c.bf16 %v22, %v21
  %v26 = vpack.c.bf16 %v24, %v23
  %v27 = vld [vmem:[%s2] sm:$0x1]
  %v29 = vlaneseq
  %v30 = vshrl.u32 %v29, 7
  %v31 = vsub.s32 0, %v30
  %v32 = vrot.slane %v27, %v31
  %vm34 = vcmask 261120
  %v36 = vsel %vm34, %v19, 0
  %v39 = vsel %vm34, %v20, 0
  %41 = vmatprep.subr.bf16.mxu0 0
  %42 = vmatpush1.bf16.msra.mxu0 %v25
  %43 = vmatprep.subr.bf16.mxu0 0
  %44 = vmatpush1.bf16.msra.mxu0 %v26
  %45 = vmatprep.subr.bf16.mxu0 0
  %46 = vmatpush1.bf16.msra.mxu0 0
  %47 = vmatprep.subr.bf16.mxu0 0
  %48 = vmatpush1.bf16.msra.mxu0 0
  %49 = vmatprep.subr.bf16.mxu0 0
  %50 = vmatpush1.bf16.msra.mxu0 0
  %51 = vmatprep.subr.bf16.mxu0 0
  %52 = vmatpush1.bf16.msra.mxu0 0
  %53 = vmatprep.subr.bf16.mxu0 0
  %54 = vmatpush1.bf16.msra.mxu0 0
  %55 = vmatprep.subr.bf16.mxu0 0
  %56 = vmatpush1.bf16.msra.mxu0 0
  %57 = vmatprep.subr.bf16.mxu0 0
  %58 = vmatpush1.bf16.msra.mxu0 0
  %59 = vmatprep.subr.bf16.mxu0 0
  %60 = vmatpush1.bf16.msra.mxu0 0
  %61 = vmatprep.subr.bf16.mxu0 0
  %62 = vmatpush1.bf16.msra.mxu0 0
  %63 = vmatprep.subr.bf16.mxu0 0
  %64 = vmatpush1.bf16.msra.mxu0 0
  %65 = vmatprep.subr.bf16.mxu0 0
  %66 = vmatpush1.bf16.msra.mxu0 0
  %67 = vmatprep.subr.bf16.mxu0 0
  %68 = vmatpush1.bf16.msra.mxu0 0
  %69 = vmatprep.subr.bf16.mxu0 0
  %70 = vmatpush1.bf16.msra.mxu0 0
  %71 = vmatprep.subr.bf16.mxu0 0
  %72 = vmatpush1.bf16.msra.mxu0 0
  %73 = vmatprep.mubr.bf16.mxu0 0
  %74 = vmatmul.mubr.bf16.gmra.mrb[0].mxu0 %v36
  %v75 = vpop.f32.mrb[0].mxu0
  %v76 = vadd.f32 %v32, %v75
  %v77 = vpop.f32.mrb[0].mxu0
  %v78 = vpop.f32.mrb[0].mxu0
  %v79 = vadd.f32 %v32, %v78
  %v80 = vpop.f32.mrb[0].mxu0
  %81 = vmatprep.mubr.bf16.mxu0 0
  %82 = vmatmul.mubr.bf16.gmra.mrb[0].mxu0 %v39
  %v83 = vpop.f32.mrb[0].mxu0
  %v84 = vadd.f32 %v32, %v83
  %v85 = vpop.f32.mrb[0].mxu0
  %v86 = vpop.f32.mrb[0].mxu0
  %v87 = vadd.f32 %v32, %v86
  %v88 = vpop.f32.mrb[0].mxu0
  %89 = vdwg.mxu0
  %90 = vst.msk [vmem:[%s3] sm:$0xff] %vm34, %v76
  %91 = vst.msk [vmem:[%s3 + $0x8] sm:$0xff] %vm34, %v79
  %92 = vst.msk [vmem:[%s3 + $0x10] sm:$0xff] %vm34, %v84
  %93 = vst.msk [vmem:[%s3 + $0x18] sm:$0xff] %vm34, %v87
  // Predicated region
  $region14: #{conformer_forward.25} parent=0 // pred_check
    _
  $region15: #{conformer_forward.25} parent=0 // pred_check_branch
    %95 = sbr.rel (0) target = $region17
  $region16: #{conformer_forward.25} parent=0 // pred_region
    _
  $region17: #{conformer_forward.25} parent=0 // pred_fallthru
    _
  // Predicated region
  $region18: #{conformer_forward.25} parent=0 // pred_check
    _
  $region19: #{conformer_forward.25} parent=0 // pred_check_branch
    %97 = sbr.rel (0) target = $region21
  $region20: #{conformer_forward.25} parent=0 // pred_region
    _
  $region21: #{conformer_forward.25} parent=0 // pred_fallthru
    _

// kernel: conformer_forward.28
$region0: #{conformer_forward.28}
  #allocation0 [shape = 'u32[]', space=smem, size = 0x4, offset = 0x4, fixed_abs, tag = 'smem constant byte address 0x4 - core index']
  #allocation1 [shape = 'u32[144,128]{1,0:T(1,128)}', space=vmem, size = 0x12000, scoped, tag = 'internal scratch']
  %s0 = inlined_call_operand.vmem [shape: f32[16,32], index: 0, kind: input, shape index: {}]
  %s1 = inlined_call_operand.vmem [shape: f32[32,64], index: 1, kind: input, shape index: {}]
  %s2 = inlined_call_operand.vmem [shape: f32[1,64], index: 2, kind: input, shape index: {}]
  %s3 = inlined_call_operand.vmem [shape: f32[16,64], index: 3, kind: output, shape index: {}]
  %s4 = sld [smem:[#allocation0]]
  $region22: #{conformer_forward.28} parent=0
    _
  %s6 = ssub.s32 1, %s4
  %s7 = scalar_select 0, %s6, %s4
  // Predicated region
  $region2: #{conformer_forward.28} parent=0 // pred_check
    _
  $region3: #{conformer_forward.28} parent=0 // pred_check_branch
    %9 = sbr.rel (0) target = $region5
  $region4: #{conformer_forward.28} parent=0 // pred_region
    _
  $region5: #{conformer_forward.28} parent=0 // pred_fallthru
    _
  // Predicated region
  $region6: #{conformer_forward.28} parent=0 // pred_check
    _
  $region7: #{conformer_forward.28} parent=0 // pred_check_branch
    %11 = sbr.rel (0) target = $region9
  $region8: #{conformer_forward.28} parent=0 // pred_region
    _
  $region9: #{conformer_forward.28} parent=0 // pred_fallthru
    _
  // Predicated region
  $region10: #{conformer_forward.28} parent=0 // pred_check
    _
  $region11: #{conformer_forward.28} parent=0 // pred_check_branch
    %13 = sbr.rel (0) target = $region13
  $region12: #{conformer_forward.28} parent=0 // pred_region
    _
  $region13: #{conformer_forward.28} parent=0 // pred_fallthru
    _
  %v15 = vld [vmem:[%s0] sm:$0xff]
  %v16 = vld [vmem:[%s0 + $0x8] sm:$0xff]
  %v17 = vpack.c.bf16 %v16, %v15
  %v18 = vld [vmem:[%s1] sm:$0xff]
  %v19 = vld [vmem:[%s1 + $0x8] sm:$0xff]
  %v20 = vld [vmem:[%s1 + $0x10] sm:$0xff]
  %v21 = vld [vmem:[%s1 + $0x18] sm:$0xff]
  %v22 = vpack.c.bf16 %v19, %v18
  %v23 = vpack.c.bf16 %v21, %v20
  %v24 = vld [vmem:[%s2] sm:$0x1]
  %v26 = vlaneseq
  %v27 = vshrl.u32 %v26, 7
  %v28 = vsub.s32 0, %v27
  %v29 = vrot.slane %v24, %v28
  %vm31 = vcmask 261120
  %v33 = vsel %vm31, %v17, 0
  %35 = vmatprep.subr.bf16.mxu0 0
  %36 = vmatpush1.bf16.msra.mxu0 %v22
  %37 = vmatprep.subr.bf16.mxu0 0
  %38 = vmatpush1.bf16.msra.mxu0 %v23
  %39 = vmatprep.subr.bf16.mxu0 0
  %40 = vmatpush1.bf16.msra.mxu0 0
  %41 = vmatprep.subr.bf16.mxu0 0
  %42 = vmatpush1.bf16.msra.mxu0 0
  %43 = vmatprep.subr.bf16.mxu0 0
  %44 = vmatpush1.bf16.msra.mxu0 0
  %45 = vmatprep.subr.bf16.mxu0 0
  %46 = vmatpush1.bf16.msra.mxu0 0
  %47 = vmatprep.subr.bf16.mxu0 0
  %48 = vmatpush1.bf16.msra.mxu0 0
  %49 = vmatprep.subr.bf16.mxu0 0
  %50 = vmatpush1.bf16.msra.mxu0 0
  %51 = vmatprep.subr.bf16.mxu0 0
  %52 = vmatpush1.bf16.msra.mxu0 0
  %53 = vmatprep.subr.bf16.mxu0 0
  %54 = vmatpush1.bf16.msra.mxu0 0
  %55 = vmatprep.subr.bf16.mxu0 0
  %56 = vmatpush1.bf16.msra.mxu0 0
  %57 = vmatprep.subr.bf16.mxu0 0
  %58 = vmatpush1.bf16.msra.mxu0 0
  %59 = vmatprep.subr.bf16.mxu0 0
  %60 = vmatpush1.bf16.msra.mxu0 0
  %61 = vmatprep.subr.bf16.mxu0 0
  %62 = vmatpush1.bf16.msra.mxu0 0
  %63 = vmatprep.subr.bf16.mxu0 0
  %64 = vmatpush1.bf16.msra.mxu0 0
  %65 = vmatprep.subr.bf16.mxu0 0
  %66 = vmatpush1.bf16.msra.mxu0 0
  %67 = vmatprep.mubr.bf16.mxu0 0
  %68 = vmatmul.mubr.bf16.gmra.mrb[0].mxu0 %v33
  %v69 = vpop.f32.mrb[0].mxu0
  %v70 = vadd.f32 %v29, %v69
  %v71 = vpop.f32.mrb[0].mxu0
  %v72 = vpop.f32.mrb[0].mxu0
  %v73 = vadd.f32 %v29, %v72
  %v74 = vpop.f32.mrb[0].mxu0
  %75 = vdwg.mxu0
  %vm76 = vcmask 523264
  %77 = vst.msk [vmem:[%s3] sm:$0xff] %vm76, %v70
  %78 = vst.msk [vmem:[%s3 + $0x8] sm:$0xff] %vm76, %v73
  // Predicated region
  $region14: #{conformer_forward.28} parent=0 // pred_check
    _
  $region15: #{conformer_forward.28} parent=0 // pred_check_branch
    %80 = sbr.rel (0) target = $region17
  $region16: #{conformer_forward.28} parent=0 // pred_region
    _
  $region17: #{conformer_forward.28} parent=0 // pred_fallthru
    _
  // Predicated region
  $region18: #{conformer_forward.28} parent=0 // pred_check
    _
  $region19: #{conformer_forward.28} parent=0 // pred_check_branch
    %82 = sbr.rel (0) target = $region21
  $region20: #{conformer_forward.28} parent=0 // pred_region
    _
  $region21: #{conformer_forward.28} parent=0 // pred_fallthru
    _

// kernel: conformer_forward.29
$region0: #{conformer_forward.29}
  #allocation0 [shape = 'u32[]', space=smem, size = 0x4, offset = 0x4, fixed_abs, tag = 'smem constant byte address 0x4 - core index']
  #allocation1 [shape = 'u32[144,128]{1,0:T(1,128)}', space=vmem, size = 0x12000, scoped, tag = 'internal scratch']
  %s0 = inlined_call_operand.vmem [shape: f32[2,4,16,8], index: 0, kind: input, shape index: {}]
  %s1 = inlined_call_operand.vmem [shape: f32[2,4,8,8], index: 1, kind: input, shape index: {}]
  %s2 = inlined_call_operand.vmem [shape: f32[2,4,8,8], index: 2, kind: input, shape index: {}]
  %s3 = inlined_call_operand.vmem [shape: f32[2,1,8], index: 3, kind: input, shape index: {}]
  %s4 = inlined_call_operand.vmem [shape: f32[2,4,16,8], index: 4, kind: output, shape index: {}]
  %s5 = sld [smem:[#allocation0]]
  $region49: #{conformer_forward.29} parent=0
    _
  %s7 = ssub.s32 1, %s5
  %s8 = scalar_select 0, %s7, %s5
  loop: start=0, step=1, limit=4
  $region2: #{conformer_forward.29} parent=0 // loop_pre_header
    _
  $region3: #{conformer_forward.29} parent=0 // loop_header
    %s10 = sphi 0, %s14
    %p11 = scmp.ge.s32.totalorder %s10, 4
    %s20 = sphi 0, %s22
    %s23 = sphi 0, %s20
    %s24 = sphi 0, %s23
    %s40 = sphi 0, %s24
    %s46 = sphi 0, %s48
    %s49 = sphi 0, %s46
    %s50 = sphi 0, %s49
    %s66 = sphi 0, %s50
    %s72 = sphi 0, %s74
    %s75 = sphi 0, %s72
    %s76 = sphi 0, %s75
    %s92 = sphi 0, %s76
    %s98 = sphi 0, %s100
    %s101 = sphi 0, %s98
    %s102 = sphi 0, %s101
    %s118 = sphi 0, %s102
    %s124 = sphi 0, %s126
    %s127 = sphi 0, %s124
    %s128 = sphi 0, %s127
    %s144 = sphi 0, %s128
  $region4: #{conformer_forward.29} parent=0 // loop_header_branch
    %13 = sbr.rel (%p11) target = $region8
  $region5: #{conformer_forward.29} parent=0 // loop_body
    %s15 = ssub.s32 %s10, 1
    %s16 = ssub.s32 %s10, 2
    %s17 = sadd.s32 %s10, 1
    %s18 = ssub.s32 %s10, %s17
    %p19 = scmp.eq.s32.totalorder %s18, 0
    %s21 = sadd.s32 %s20, 1
    %s22 = scalar_select %p19, %s20, %s21
    %p25 = pneg %p19
    %p26 = scmp.eq.s32.totalorder %s10, 1
    %p27 = por %p25, %p26
    %p28 = scmp.ne.s32.totalorder %s20, %s23
    %p29 = scmp.eq.s32.totalorder %s10, 0
    %p30 = por %p28, %p29
    %p31 = scmp.ne.s32.totalorder %s20, %s23
    %p32 = scmp.eq.s32.totalorder %s15, 1
    %p33 = por %p31, %p32
    %p34 = scmp.ne.s32.totalorder %s23, %s24
    %p35 = scmp.eq.s32.totalorder %s15, 0
    %p36 = por %p34, %p35
    %p37 = scmp.ne.s32.totalorder %s23, %s24
    %p38 = scmp.eq.s32.totalorder %s16, 1
    %p39 = por %p37, %p38
    %p41 = scmp.ne.s32.totalorder %s24, %s40
    %p42 = scmp.eq.s32.totalorder %s16, 0
    %p43 = por %p41, %p42
    %s44 = ssub.s32 %s10, %s17
    %p45 = scmp.eq.s32.totalorder %s44, 0
    %s47 = sadd.s32 %s46, 1
    %s48 = scalar_select %p45, %s46, %s47
    %p51 = pneg %p45
    %p52 = scmp.eq.s32.totalorder %s10, 1
    %p53 = por %p51, %p52
    %p54 = scmp.ne.s32.totalorder %s46, %s49
    %p55 = scmp.eq.s32.totalorder %s10, 0
    %p56 = por %p54, %p55
    %p57 = scmp.ne.s32.totalorder %s46, %s49
    %p58 = scmp.eq.s32.totalorder %s15, 1
    %p59 = por %p57, %p58
    %p60 = scmp.ne.s32.totalorder %s49, %s50
    %p61 = scmp.eq.s32.totalorder %s15, 0
    %p62 = por %p60, %p61
    %p63 = scmp.ne.s32.totalorder %s49, %s50
    %p64 = scmp.eq.s32.totalorder %s16, 1
    %p65 = por %p63, %p64
    %p67 = scmp.ne.s32.totalorder %s50, %s66
    %p68 = scmp.eq.s32.totalorder %s16, 0
    %p69 = por %p67, %p68
    %s70 = ssub.s32 %s10, %s17
    %p71 = scmp.eq.s32.totalorder %s70, 0
    %s73 = sadd.s32 %s72, 1
    %s74 = scalar_select %p71, %s72, %s73
    %p77 = pneg %p71
    %p78 = scmp.eq.s32.totalorder %s10, 1
    %p79 = por %p77, %p78
    %p80 = scmp.ne.s32.totalorder %s72, %s75
    %p81 = scmp.eq.s32.totalorder %s10, 0
    %p82 = por %p80, %p81
    %p83 = scmp.ne.s32.totalorder %s72, %s75
    %p84 = scmp.eq.s32.totalorder %s15, 1
    %p85 = por %p83, %p84
    %p86 = scmp.ne.s32.totalorder %s75, %s76
    %p87 = scmp.eq.s32.totalorder %s15, 0
    %p88 = por %p86, %p87
    %p89 = scmp.ne.s32.totalorder %s75, %s76
    %p90 = scmp.eq.s32.totalorder %s16, 1
    %p91 = por %p89, %p90
    %p93 = scmp.ne.s32.totalorder %s76, %s92
    %p94 = scmp.eq.s32.totalorder %s16, 0
    %p95 = por %p93, %p94
    %s96 = ssub.s32 %s10, %s17
    %p97 = scmp.eq.s32.totalorder %s96, 0
    %s99 = sadd.s32 %s98, 1
    %s100 = scalar_select %p97, %s98, %s99
    %p103 = pneg %p97
    %p104 = scmp.eq.s32.totalorder %s10, 1
    %p105 = por %p103, %p104
    %p106 = scmp.ne.s32.totalorder %s98, %s101
    %p107 = scmp.eq.s32.totalorder %s10, 0
    %p108 = por %p106, %p107
    %p109 = scmp.ne.s32.totalorder %s98, %s101
    %p110 = scmp.eq.s32.totalorder %s15, 1
    %p111 = por %p109, %p110
    %p112 = scmp.ne.s32.totalorder %s101, %s102
    %p113 = scmp.eq.s32.totalorder %s15, 0
    %p114 = por %p112, %p113
    %p115 = scmp.ne.s32.totalorder %s101, %s102
    %p116 = scmp.eq.s32.totalorder %s16, 1
    %p117 = por %p115, %p116
    %p119 = scmp.ne.s32.totalorder %s102, %s118
    %p120 = scmp.eq.s32.totalorder %s16, 0
    %p121 = por %p119, %p120
    %s122 = ssub.s32 %s10, %s17
    %p123 = scmp.eq.s32.totalorder %s122, 0
    %s125 = sadd.s32 %s124, 1
    %s126 = scalar_select %p123, %s124, %s125
    %p129 = pneg %p123
    %p130 = scmp.eq.s32.totalorder %s10, 1
    %p131 = por %p129, %p130
    %p132 = scmp.ne.s32.totalorder %s124, %s127
    %p133 = scmp.eq.s32.totalorder %s10, 0
    %p134 = por %p132, %p133
    %p135 = scmp.ne.s32.totalorder %s124, %s127
    %p136 = scmp.eq.s32.totalorder %s15, 1
    %p137 = por %p135, %p136
    %p138 = scmp.ne.s32.totalorder %s127, %s128
    %p139 = scmp.eq.s32.totalorder %s15, 0
    %p140 = por %p138, %p139
    %p141 = scmp.ne.s32.totalorder %s127, %s128
    %p142 = scmp.eq.s32.totalorder %s16, 1
    %p143 = por %p141, %p142
    %p145 = scmp.ne.s32.totalorder %s128, %s144
    %p146 = scmp.eq.s32.totalorder %s16, 0
    %p147 = por %p145, %p146
    %p148 = scmp.le.s32.totalorder 1, %s10
    %p149 = scmp.lt.s32.totalorder %s10, 3
    %p150 = pnand %p148, %p149
    %p151 = pneg %p150
    // Predicated region
    $region9: #{conformer_forward.29} parent=5 // pred_check
      _
    $region10: #{conformer_forward.29} parent=5 // pred_check_branch
      %153 = sbr.rel (%p150) target = $region12
    $region11: #{conformer_forward.29} parent=5 // pred_region
      %s154 = ssub.s32 %s10, 1
    $region12: #{conformer_forward.29} parent=5 // pred_fallthru
      _
    %p155 = scmp.lt.s32.totalorder %s10, 2
    // Predicated region
    $region13: #{conformer_forward.29} parent=5 // pred_check
      %p156 = pneg %p155
    $region14: #{conformer_forward.29} parent=5 // pred_check_branch
      %158 = sbr.rel (%p156) target = $region16
    $region15: #{conformer_forward.29} parent=5 // pred_region
      // Predicated region
      $region17: #{conformer_forward.29} parent=15 // pred_check
        %p159 = pneg %p30
      $region18: #{conformer_forward.29} parent=15 // pred_check_branch
        %161 = sbr.rel (%p159) target = $region20
      $region19: #{conformer_forward.29} parent=15 // pred_region
        %p162 = scmp.lt.s32.totalorder %s10, 1
        %s163 = scalar_select %p162, %s10, 1
        %s164 = smul.addr %s163, 8
        %s165 = smul.addr %s164, 8
        %s166 = scalar_lea.vmem %s0, %s165
      $region20: #{conformer_forward.29} parent=15 // pred_fallthru
        _
      // Predicated region
      $region21: #{conformer_forward.29} parent=15 // pred_check
        %p167 = pneg %p56
      $region22: #{conformer_forward.29} parent=15 // pred_check_branch
        %169 = sbr.rel (%p167) target = $region24
      $region23: #{conformer_forward.29} parent=15 // pred_region
        %p170 = scmp.lt.s32.totalorder %s10, 1
        %s171 = scalar_select %p170, %s10, 1
        %s172 = smul.addr %s171, 4
        %s173 = smul.addr %s172, 8
        %s174 = scalar_lea.vmem %s1, %s173
      $region24: #{conformer_forward.29} parent=15 // pred_fallthru
        _
      // Predicated region
      $region25: #{conformer_forward.29} parent=15 // pred_check
        %p175 = pneg %p82
      $region26: #{conformer_forward.29} parent=15 // pred_check_branch
        %177 = sbr.rel (%p175) target = $region28
      $region27: #{conformer_forward.29} parent=15 // pred_region
        %p178 = scmp.lt.s32.totalorder %s10, 1
        %s179 = scalar_select %p178, %s10, 1
        %s180 = smul.addr %s179, 4
        %s181 = smul.addr %s180, 8
        %s182 = scalar_lea.vmem %s2, %s181
      $region28: #{conformer_forward.29} parent=15 // pred_fallthru
        _
      // Predicated region
      $region29: #{conformer_forward.29} parent=15 // pred_check
        %p183 = pneg %p108
      $region30: #{conformer_forward.29} parent=15 // pred_check_branch
        %185 = sbr.rel (%p183) target = $region32
      $region31: #{conformer_forward.29} parent=15 // pred_region
        %p186 = scmp.lt.s32.totalorder %s10, 1
        %s187 = scalar_select %p186, %s10, 1
        %s188 = scalar_lea.vmem %s3, %s187
      $region32: #{conformer_forward.29} parent=15 // pred_fallthru
        _
    $region16: #{conformer_forward.29} parent=5 // pred_fallthru
      _
    %p189 = scmp.le.s32.totalorder 1, %s10
    %p190 = scmp.lt.s32.totalorder %s10, 3
    %p191 = pnand %p189, %p190
    %p192 = pneg %p191
    // Predicated region
    $region33: #{conformer_forward.29} parent=5 // pred_check
      _
    $region34: #{conformer_forward.29} parent=5 // pred_check_branch
      %194 = sbr.rel (%p191) target = $region36
    $region35: #{conformer_forward.29} parent=5 // pred_region
      %s195 = ssub.s32 %s10, 1
      %p196 = scmp.lt.s32.totalorder %s15, 1
      %s197 = scalar_select %p196, %s15, 1
      %s198 = smul.addr %s197, 8
      %s199 = smul.addr %s198, 8
      %s200 = scalar_lea.vmem %s0, %s199
      %p201 = pneg %p36
      %p202 = pneg %p33
      %p203 = scmp.lt.s32.totalorder %s15, 1
      %s204 = scalar_select %p203, %s15, 1
      %s205 = smul.addr %s204, 4
      %s206 = smul.addr %s205, 8
      %s207 = scalar_lea.vmem %s1, %s206
      %p208 = pneg %p62
      %p209 = pneg %p59
      %p210 = scmp.lt.s32.totalorder %s15, 1
      %s211 = scalar_select %p210, %s15, 1
      %s212 = smul.addr %s211, 4
      %s213 = smul.addr %s212, 8
      %s214 = scalar_lea.vmem %s2, %s213
      %p215 = pneg %p88
      %p216 = pneg %p85
      %p217 = scmp.lt.s32.totalorder %s15, 1
      %s218 = scalar_select %p217, %s15, 1
      %s219 = scalar_lea.vmem %s3, %s218
      %p220 = pneg %p114
      %p221 = pneg %p111
      %p222 = pneg %p140
      %p223 = pneg %p137
      %p224 = scmp.lt.s32.totalorder %s15, 1
      %s225 = scalar_select %p224, %s15, 1
      %s226 = smul.addr %s225, 8
      %s227 = smul.addr %s226, 8
      %s228 = scalar_lea.vmem %s4, %s227
      %p229 = scmp.lt.s32.totalorder %s15, 1
      %s230 = scalar_select %p229, %s15, 1
      %s231 = smul.addr %s230, 8
      %s232 = smul.addr %s231, 8
      %s233 = scalar_lea.vmem %s0, %s232
      %p234 = scmp.lt.s32.totalorder %s15, 1
      %s235 = scalar_select %p234, %s15, 1
      %s236 = smul.addr %s235, 4
      %s237 = smul.addr %s236, 8
      %s238 = scalar_lea.vmem %s1, %s237
      %p239 = scmp.lt.s32.totalorder %s15, 1
      %s240 = scalar_select %p239, %s15, 1
      %s241 = smul.addr %s240, 4
      %s242 = smul.addr %s241, 8
      %s243 = scalar_lea.vmem %s2, %s242
      %p244 = scmp.lt.s32.totalorder %s15, 1
      %s245 = scalar_select %p244, %s15, 1
      %s246 = scalar_lea.vmem %s3, %s245
      %p247 = scmp.lt.s32.totalorder %s15, 1
      %s248 = scalar_select %p247, %s15, 1
      %s249 = smul.addr %s248, 8
      %s250 = smul.addr %s249, 8
      %s251 = scalar_lea.vmem %s4, %s250
      %v253 = vld [vmem:[%s233] sm:$0xff]
      %v254 = vld [vmem:[%s233 + $0x8] sm:$0xff]
      %v255 = vld [vmem:[%s233 + $0x10] sm:$0xff]
      %v256 = vld [vmem:[%s233 + $0x18] sm:$0xff]
      %v257 = vld [vmem:[%s233 + $0x20] sm:$0xff]
      %v258 = vld [vmem:[%s233 + $0x28] sm:$0xff]
      %v259 = vld [vmem:[%s233 + $0x30] sm:$0xff]
      %v260 = vld [vmem:[%s233 + $0x38] sm:$0xff]
      %v261 = vpack.c.bf16 %v254, %v253
      %v262 = vpack.c.bf16 %v256, %v255
      %v263 = vpack.c.bf16 %v258, %v257
      %v264 = vpack.c.bf16 %v260, %v259
      %v265 = vld [vmem:[%s238] sm:$0xff]
      %v266 = vld [vmem:[%s238 + $0x8] sm:$0xff]
      %v267 = vld [vmem:[%s238 + $0x10] sm:$0xff]
      %v268 = vld [vmem:[%s238 + $0x18] sm:$0xff]
      %v269 = vpack.c.bf16 %v265, %v265
      %v270 = vpack.c.bf16 %v266, %v266
      %v271 = vpack.c.bf16 %v267, %v267
      %v272 = vpack.c.bf16 %v268, %v268
      %v273 = vld [vmem:[%s243] sm:$0xff]
      %v274 = vld [vmem:[%s243 + $0x8] sm:$0xff]
      %v275 = vld [vmem:[%s243 + $0x10] sm:$0xff]
      %v276 = vld [vmem:[%s243 + $0x18] sm:$0xff]
      %v277 = vpack.c.bf16 %v273, %v273
      %v278 = vpack.c.bf16 %v274, %v274
      %v279 = vpack.c.bf16 %v275, %v275
      %v280 = vpack.c.bf16 %v276, %v276
      %vm281 = vcmask 64512
      %v283 = vsel %vm281, %v261, 0
      %v286 = vsel %vm281, %v269, 0
      %288 = vmatprep.subr.bf16.mxu0 0
      %289 = vmatpush1.bf16.xpose.msra.mxu0 %v286
      %290 = vmatprep.subr.bf16.mxu0 0
      %291 = vmatpush1.bf16.xpose.msra.mxu0 0
      %292 = vmatprep.subr.bf16.mxu0 0
      %293 = vmatpush1.bf16.xpose.msra.mxu0 0
      %294 = vmatprep.subr.bf16.mxu0 0
      %295 = vmatpush1.bf16.xpose.msra.mxu0 0
      %296 = vmatprep.subr.bf16.mxu0 0
      %297 = vmatpush1.bf16.xpose.msra.mxu0 0
      %298 = vmatprep.subr.bf16.mxu0 0
      %299 = vmatpush1.bf16.xpose.msra.mxu0 0
      %300 = vmatprep.subr.bf16.mxu0 0
      %301 = vmatpush1.bf16.xpose.msra.mxu0 0
      %302 = vmatprep.subr.bf16.mxu0 0
      %303 = vmatpush1.bf16.xpose.msra.mxu0 0
      %304 = vmatprep.subr.bf16.mxu0 0
      %305 = vmatpush1.bf16.xpose.msra.mxu0 0
      %306 = vmatprep.subr.bf16.mxu0 0
      %307 = vmatpush1.bf16.xpose.msra.mxu0 0
      %308 = vmatprep.subr.bf16.mxu0 0
      %309 = vmatpush1.bf16.xpose.msra.mxu0 0
      %310 = vmatprep.subr.bf16.mxu0 0
      %311 = vmatpush1.bf16.xpose.msra.mxu0 0
      %312 = vmatprep.subr.bf16.mxu0 0
      %313 = vmatpush1.bf16.xpose.msra.mxu0 0
      %314 = vmatprep.subr.bf16.mxu0 0
      %315 = vmatpush1.bf16.xpose.msra.mxu0 0
      %316 = vmatprep.subr.bf16.mxu0 0
      %317 = vmatpush1.bf16.xpose.msra.mxu0 0
      %318 = vmatprep.subr.bf16.mxu0 0
      %319 = vmatpush1.bf16.xpose.msra.mxu0 0
      %320 = vmatprep.mubr.bf16.mxu0 0
      %321 = vmatmul.mubr.bf16.gmra.mrb[0].mxu0 %v283
      %v322 = vpop.f32.mrb[0].mxu0
      %v323 = vadd.f32 0.0, %v322
      %v324 = vpop.f32.mrb[0].mxu0
      %v325 = vpop.f32.mrb[0].mxu0
      %v326 = vadd.f32 0.0, %v325
      %v327 = vpop.f32.mrb[0].mxu0
      %328 = vdwg.mxu0
      %v330 = vsel %vm281, %v262, 0
      %v333 = vsel %vm281, %v270, 0
      %335 = vmatprep.subr.bf16.mxu0 0
      %336 = vmatpush1.bf16.xpose.msra.mxu0 %v333
      %337 = vmatprep.subr.bf16.mxu0 0
      %338 = vmatpush1.bf16.xpose.msra.mxu0 0
      %339 = vmatprep.subr.bf16.mxu0 0
      %340 = vmatpush1.bf16.xpose.msra.mxu0 0
      %341 = vmatprep.subr.bf16.mxu0 0
      %342 = vmatpush1.bf16.xpose.msra.mxu0 0
      %343 = vmatprep.subr.bf16.mxu0 0
      %344 = vmatpush1.bf16.xpose.msra.mxu0 0
      %345 = vmatprep.subr.bf16.mxu0 0
      %346 = vmatpush1.bf16.xpose.msra.mxu0 0
      %347 = vmatprep.subr.bf16.mxu0 0
      %348 = vmatpush1.bf16.xpose.msra.mxu0 0
      %349 = vmatprep.subr.bf16.mxu0 0
      %350 = vmatpush1.bf16.xpose.msra.mxu0 0
      %351 = vmatprep.subr.bf16.mxu0 0
      %352 = vmatpush1.bf16.xpose.msra.mxu0 0
      %353 = vmatprep.subr.bf16.mxu0 0
      %354 = vmatpush1.bf16.xpose.msra.mxu0 0
      %355 = vmatprep.subr.bf16.mxu0 0
      %356 = vmatpush1.bf16.xpose.msra.mxu0 0
      %357 = vmatprep.subr.bf16.mxu0 0
      %358 = vmatpush1.bf16.xpose.msra.mxu0 0
      %359 = vmatprep.subr.bf16.mxu0 0
      %360 = vmatpush1.bf16.xpose.msra.mxu0 0
      %361 = vmatprep.subr.bf16.mxu0 0
      %362 = vmatpush1.bf16.xpose.msra.mxu0 0
      %363 = vmatprep.subr.bf16.mxu0 0
      %364 = vmatpush1.bf16.xpose.msra.mxu0 0
      %365 = vmatprep.subr.bf16.mxu0 0
      %366 = vmatpush1.bf16.xpose.msra.mxu0 0
      %367 = vmatprep.mubr.bf16.mxu0 0
      %368 = vmatmul.mubr.bf16.gmra.mrb[0].mxu0 %v330
      %v369 = vpop.f32.mrb[0].mxu0
      %v370 = vadd.f32 0.0, %v369
      %v371 = vpop.f32.mrb[0].mxu0
      %v372 = vpop.f32.mrb[0].mxu0
      %v373 = vadd.f32 0.0, %v372
      %v374 = vpop.f32.mrb[0].mxu0
      %375 = vdwg.mxu0
      %v377 = vsel %vm281, %v263, 0
      %v380 = vsel %vm281, %v271, 0
      %382 = vmatprep.subr.bf16.mxu0 0
      %383 = vmatpush1.bf16.xpose.msra.mxu0 %v380
      %384 = vmatprep.subr.bf16.mxu0 0
      %385 = vmatpush1.bf16.xpose.msra.mxu0 0
      %386 = vmatprep.subr.bf16.mxu0 0
      %387 = vmatpush1.bf16.xpose.msra.mxu0 0
      %388 = vmatprep.subr.bf16.mxu0 0
      %389 = vmatpush1.bf16.xpose.msra.mxu0 0
      %390 = vmatprep.subr.bf16.mxu0 0
      %391 = vmatpush1.bf16.xpose.msra.mxu0 0
      %392 = vmatprep.subr.bf16.mxu0 0
      %393 = vmatpush1.bf16.xpose.msra.mxu0 0
      %394 = vmatprep.subr.bf16.mxu0 0
      %395 = vmatpush1.bf16.xpose.msra.mxu0 0
      %396 = vmatprep.subr.bf16.mxu0 0
      %397 = vmatpush1.bf16.xpose.msra.mxu0 0
      %398 = vmatprep.subr.bf16.mxu0 0
      %399 = vmatpush1.bf16.xpose.msra.mxu0 0
      %400 = vmatprep.subr.bf16.mxu0 0
      %401 = vmatpush1.bf16.xpose.msra.mxu0 0
      %402 = vmatprep.subr.bf16.mxu0 0
      %403 = vmatpush1.bf16.xpose.msra.mxu0 0
      %404 = vmatprep.subr.bf16.mxu0 0
      %405 = vmatpush1.bf16.xpose.msra.mxu0 0
      %406 = vmatprep.subr.bf16.mxu0 0
      %407 = vmatpush1.bf16.xpose.msra.mxu0 0
      %408 = vmatprep.subr.bf16.mxu0 0
      %409 = vmatpush1.bf16.xpose.msra.mxu0 0
      %410 = vmatprep.subr.bf16.mxu0 0
      %411 = vmatpush1.bf16.xpose.msra.mxu0 0
      %412 = vmatprep.subr.bf16.mxu0 0
      %413 = vmatpush1.bf16.xpose.msra.mxu0 0
      %414 = vmatprep.mubr.bf16.mxu0 0
      %415 = vmatmul.mubr.bf16.gmra.mrb[0].mxu0 %v377
      %v416 = vpop.f32.mrb[0].mxu0
      %v417 = vadd.f32 0.0, %v416
      %v418 = vpop.f32.mrb[0].mxu0
      %v419 = vpop.f32.mrb[0].mxu0
      %v420 = vadd.f32 0.0, %v419
      %v421 = vpop.f32.mrb[0].mxu0
      %422 = vdwg.mxu0
      %v424 = vsel %vm281, %v264, 0
      %v427 = vsel %vm281, %v272, 0
      %429 = vmatprep.subr.bf16.mxu0 0
      %430 = vmatpush1.bf16.xpose.msra.mxu0 %v427
      %431 = vmatprep.subr.bf16.mxu0 0
      %432 = vmatpush1.bf16.xpose.msra.mxu0 0
      %433 = vmatprep.subr.bf16.mxu0 0
      %434 = vmatpush1.bf16.xpose.msra.mxu0 0
      %435 = vmatprep.subr.bf16.mxu0 0
      %436 = vmatpush1.bf16.xpose.msra.mxu0 0
      %437 = vmatprep.subr.bf16.mxu0 0
      %438 = vmatpush1.bf16.xpose.msra.mxu0 0
      %439 = vmatprep.subr.bf16.mxu0 0
      %440 = vmatpush1.bf16.xpose.msra.mxu0 0
      %441 = vmatprep.subr.bf16.mxu0 0
      %442 = vmatpush1.bf16.xpose.msra.mxu0 0
      %443 = vmatprep.subr.bf16.mxu0 0
      %444 = vmatpush1.bf16.xpose.msra.mxu0 0
      %445 = vmatprep.subr.bf16.mxu0 0
      %446 = vmatpush1.bf16.xpose.msra.mxu0 0
      %447 = vmatprep.subr.bf16.mxu0 0
      %448 = vmatpush1.bf16.xpose.msra.mxu0 0
      %449 = vmatprep.subr.bf16.mxu0 0
      %450 = vmatpush1.bf16.xpose.msra.mxu0 0
      %451 = vmatprep.subr.bf16.mxu0 0
      %452 = vmatpush1.bf16.xpose.msra.mxu0 0
      %453 = vmatprep.subr.bf16.mxu0 0
      %454 = vmatpush1.bf16.xpose.msra.mxu0 0
      %455 = vmatprep.subr.bf16.mxu0 0
      %456 = vmatpush1.bf16.xpose.msra.mxu0 0
      %457 = vmatprep.subr.bf16.mxu0 0
      %458 = vmatpush1.bf16.xpose.msra.mxu0 0
      %459 = vmatprep.subr.bf16.mxu0 0
      %460 = vmatpush1.bf16.xpose.msra.mxu0 0
      %461 = vmatprep.mubr.bf16.mxu0 0
      %462 = vmatmul.mubr.bf16.gmra.mrb[0].mxu0 %v424
      %v463 = vpop.f32.mrb[0].mxu0
      %v464 = vadd.f32 0.0, %v463
      %v465 = vpop.f32.mrb[0].mxu0
      %v466 = vpop.f32.mrb[0].mxu0
      %v467 = vadd.f32 0.0, %v466
      %v468 = vpop.f32.mrb[0].mxu0
      %469 = vdwg.mxu0
      %v470 = vmul.f32 %v323, 0.35355338
      %v471 = vmul.f32 %v326, 0.35355338
      %v472 = vmul.f32 %v370, 0.35355338
      %v473 = vmul.f32 %v373, 0.35355338
      %v474 = vmul.f32 %v417, 0.35355338
      %v475 = vmul.f32 %v420, 0.35355338
      %v476 = vmul.f32 %v464, 0.35355338
      %v477 = vmul.f32 %v467, 0.35355338
      %v478 = vld [vmem:[%s246] sm:$0x1]
      %v480 = vlaneseq
      %v481 = vshrl.u32 %v480, 7
      %v482 = vsub.s32 0, %v481
      %v483 = vrot.slane %v478, %v482
      %v485 = vadd.f32 %v470, %v483
      %v486 = vadd.f32 %v471, %v483
      %v487 = vadd.f32 %v472, %v483
      %v488 = vadd.f32 %v473, %v483
      %v489 = vadd.f32 %v474, %v483
      %v490 = vadd.f32 %v475, %v483
      %v491 = vadd.f32 %v476, %v483
      %v492 = vadd.f32 %v477, %v483
      %v493 = vsel %vm281, %v485, -inf
      %494 = vmax.xlane.f32.xlu0 %v493
      %v495 = vpop.xlane.xlu0 %494
      %v496 = vsel %vm281, %v486, -inf
      %497 = vmax.xlane.f32.xlu0 %v496
      %v498 = vpop.xlane.xlu0 %497
      %v499 = vsel %vm281, %v487, -inf
      %500 = vmax.xlane.f32.xlu0 %v499
      %v501 = vpop.xlane.xlu0 %500
      %v502 = vsel %vm281, %v488, -inf
      %503 = vmax.xlane.f32.xlu0 %v502
      %v504 = vpop.xlane.xlu0 %503
      %v505 = vsel %vm281, %v489, -inf
      %506 = vmax.xlane.f32.xlu0 %v505
      %v507 = vpop.xlane.xlu0 %506
      %v508 = vsel %vm281, %v490, -inf
      %509 = vmax.xlane.f32.xlu0 %v508
      %v510 = vpop.xlane.xlu0 %509
      %v511 = vsel %vm281, %v491, -inf
      %512 = vmax.xlane.f32.xlu0 %v511
      %v513 = vpop.xlane.xlu0 %512
      %v514 = vsel %vm281, %v492, -inf
      %515 = vmax.xlane.f32.xlu0 %v514
      %v516 = vpop.xlane.xlu0 %515
      %v517 = vsub.f32 %v485, %v495
      %v518 = vsub.f32 %v486, %v498
      %v519 = vsub.f32 %v487, %v501
      %v520 = vsub.f32 %v488, %v504
      %v521 = vsub.f32 %v489, %v507
      %v522 = vsub.f32 %v490, %v510
      %v523 = vsub.f32 %v491, %v513
      %v524 = vsub.f32 %v492, %v516
      %v525 = vmul.f32 %v517, 1.442695
      %v526 = vpow.pop %v525
      %v527 = vmul.f32 %v518, 1.442695
      %v528 = vpow.pop %v527
      %v529 = vmul.f32 %v519, 1.442695
      %v530 = vpow.pop %v529
      %v531 = vmul.f32 %v520, 1.442695
      %v532 = vpow.pop %v531
      %v533 = vmul.f32 %v521, 1.442695
      %v534 = vpow.pop %v533
      %v535 = vmul.f32 %v522, 1.442695
      %v536 = vpow.pop %v535
      %v537 = vmul.f32 %v523, 1.442695
      %v538 = vpow.pop %v537
      %v539 = vmul.f32 %v524, 1.442695
      %v540 = vpow.pop %v539
      %v541 = vsel %vm281, %v526, 0.0
      %542 = vadd.xlane.f32.xlu0 %v541
      %v543 = vpop.xlane.xlu0 %542
      %v544 = vsel %vm281, %v528, 0.0
      %545 = vadd.xlane.f32.xlu0 %v544
      %v546 = vpop.xlane.xlu0 %545
      %v547 = vsel %vm281, %v530, 0.0
      %548 = vadd.xlane.f32.xlu0 %v547
      %v549 = vpop.xlane.xlu0 %548
      %v550 = vsel %vm281, %v532, 0.0
      %551 = vadd.xlane.f32.xlu0 %v550
      %v552 = vpop.xlane.xlu0 %551
      %v553 = vsel %vm281, %v534, 0.0
      %554 = vadd.xlane.f32.xlu0 %v553
      %v555 = vpop.xlane.xlu0 %554
      %v556 = vsel %vm281, %v536, 0.0
      %557 = vadd.xlane.f32.xlu0 %v556
      %v558 = vpop.xlane.xlu0 %557
      %v559 = vsel %vm281, %v538, 0.0
      %560 = vadd.xlane.f32.xlu0 %v559
      %v561 = vpop.xlane.xlu0 %560
      %v562 = vsel %vm281, %v540, 0.0
      %563 = vadd.xlane.f32.xlu0 %v562
      %v564 = vpop.xlane.xlu0 %563
      %v565 = vrcp.pop %v543
      %v566 = vrcp.pop %v546
      %v567 = vrcp.pop %v549
      %v568 = vrcp.pop %v552
      %v569 = vrcp.pop %v555
      %v570 = vrcp.pop %v558
      %v571 = vrcp.pop %v561
      %v572 = vrcp.pop %v564
      %v573 = vmul.f32 %v526, %v565
      %v574 = vmul.f32 %v528, %v566
      %v575 = vmul.f32 %v530, %v567
      %v576 = vmul.f32 %v532, %v568
      %v577 = vmul.f32 %v534, %v569
      %v578 = vmul.f32 %v536, %v570
      %v579 = vmul.f32 %v538, %v571
      %v580 = vmul.f32 %v540, %v572
      %v581 = vpack.c.bf16 %v574, %v573
      %v582 = vpack.c.bf16 %v576, %v575
      %v583 = vpack.c.bf16 %v578, %v577
      %v584 = vpack.c.bf16 %v580, %v579
      %v586 = vsel %vm281, %v581, 0
      %vm588 = vcmask 1043456
      %v590 = vsel %vm588, %v277, 0
      %592 = vmatprep.subr.bf16.mxu0 0
      %593 = vmatpush1.bf16.msra.mxu0 %v590
      %594 = vmatprep.subr.bf16.mxu0 0
      %595 = vmatpush1.bf16.msra.mxu0 0
      %596 = vmatprep.subr.bf16.mxu0 0
      %597 = vmatpush1.bf16.msra.mxu0 0
      %598 = vmatprep.subr.bf16.mxu0 0
      %599 = vmatpush1.bf16.msra.mxu0 0
      %600 = vmatprep.subr.bf16.mxu0 0
      %601 = vmatpush1.bf16.msra.mxu0 0
      %602 = vmatprep.subr.bf16.mxu0 0
      %603 = vmatpush1.bf16.msra.mxu0 0
      %604 = vmatprep.subr.bf16.mxu0 0
      %605 = vmatpush1.bf16.msra.mxu0 0
      %606 = vmatprep.subr.bf16.mxu0 0
      %607 = vmatpush1.bf16.msra.mxu0 0
      %608 = vmatprep.subr.bf16.mxu0 0
      %609 = vmatpush1.bf16.msra.mxu0 0
      %610 = vmatprep.subr.bf16.mxu0 0
      %611 = vmatpush1.bf16.msra.mxu0 0
      %612 = vmatprep.subr.bf16.mxu0 0
      %613 = vmatpush1.bf16.msra.mxu0 0
      %614 = vmatprep.subr.bf16.mxu0 0
      %615 = vmatpush1.bf16.msra.mxu0 0
      %616 = vmatprep.subr.bf16.mxu0 0
      %617 = vmatpush1.bf16.msra.mxu0 0
      %618 = vmatprep.subr.bf16.mxu0 0
      %619 = vmatpush1.bf16.msra.mxu0 0
      %620 = vmatprep.subr.bf16.mxu0 0
      %621 = vmatpush1.bf16.msra.mxu0 0
      %622 = vmatprep.subr.bf16.mxu0 0
      %623 = vmatpush1.bf16.msra.mxu0 0
      %624 = vmatprep.mubr.bf16.mxu0 0
      %625 = vmatmul.mubr.bf16.gmra.mrb[0].mxu0 %v586
      %v626 = vpop.f32.mrb[0].mxu0
      %v627 = vadd.f32 0.0, %v626
      %v628 = vpop.f32.mrb[0].mxu0
      %v629 = vpop.f32.mrb[0].mxu0
      %v630 = vadd.f32 0.0, %v629
      %v631 = vpop.f32.mrb[0].mxu0
      %632 = vdwg.mxu0
      %v634 = vsel %vm281, %v582, 0
      %v637 = vsel %vm588, %v278, 0
      %639 = vmatprep.subr.bf16.mxu0 0
      %640 = vmatpush1.bf16.msra.mxu0 %v637
      %641 = vmatprep.subr.bf16.mxu0 0
      %642 = vmatpush1.bf16.msra.mxu0 0
      %643 = vmatprep.subr.bf16.mxu0 0
      %644 = vmatpush1.bf16.msra.mxu0 0
      %645 = vmatprep.subr.bf16.mxu0 0
      %646 = vmatpush1.bf16.msra.mxu0 0
      %647 = vmatprep.subr.bf16.mxu0 0
      %648 = vmatpush1.bf16.msra.mxu0 0
      %649 = vmatprep.subr.bf16.mxu0 0
      %650 = vmatpush1.bf16.msra.mxu0 0
      %651 = vmatprep.subr.bf16.mxu0 0
      %652 = vmatpush1.bf16.msra.mxu0 0
      %653 = vmatprep.subr.bf16.mxu0 0
      %654 = vmatpush1.bf16.msra.mxu0 0
      %655 = vmatprep.subr.bf16.mxu0 0
      %656 = vmatpush1.bf16.msra.mxu0 0
      %657 = vmatprep.subr.bf16.mxu0 0
      %658 = vmatpush1.bf16.msra.mxu0 0
      %659 = vmatprep.subr.bf16.mxu0 0
      %660 = vmatpush1.bf16.msra.mxu0 0
      %661 = vmatprep.subr.bf16.mxu0 0
      %662 = vmatpush1.bf16.msra.mxu0 0
      %663 = vmatprep.subr.bf16.mxu0 0
      %664 = vmatpush1.bf16.msra.mxu0 0
      %665 = vmatprep.subr.bf16.mxu0 0
      %666 = vmatpush1.bf16.msra.mxu0 0
      %667 = vmatprep.subr.bf16.mxu0 0
      %668 = vmatpush1.bf16.msra.mxu0 0
      %669 = vmatprep.subr.bf16.mxu0 0
      %670 = vmatpush1.bf16.msra.mxu0 0
      %671 = vmatprep.mubr.bf16.mxu0 0
      %672 = vmatmul.mubr.bf16.gmra.mrb[0].mxu0 %v634
      %v673 = vpop.f32.mrb[0].mxu0
      %v674 = vadd.f32 0.0, %v673
      %v675 = vpop.f32.mrb[0].mxu0
      %v676 = vpop.f32.mrb[0].mxu0
      %v677 = vadd.f32 0.0, %v676
      %v678 = vpop.f32.mrb[0].mxu0
      %679 = vdwg.mxu0
      %v681 = vsel %vm281, %v583, 0
      %v684 = vsel %vm588, %v279, 0
      %686 = vmatprep.subr.bf16.mxu0 0
      %687 = vmatpush1.bf16.msra.mxu0 %v684
      %688 = vmatprep.subr.bf16.mxu0 0
      %689 = vmatpush1.bf16.msra.mxu0 0
      %690 = vmatprep.subr.bf16.mxu0 0
      %691 = vmatpush1.bf16.msra.mxu0 0
      %692 = vmatprep.subr.bf16.mxu0 0
      %693 = vmatpush1.bf16.msra.mxu0 0
      %694 = vmatprep.subr.bf16.mxu0 0
      %695 = vmatpush1.bf16.msra.mxu0 0
      %696 = vmatprep.subr.bf16.mxu0 0
      %697 = vmatpush1.bf16.msra.mxu0 0
      %698 = vmatprep.subr.bf16.mxu0 0
      %699 = vmatpush1.bf16.msra.mxu0 0
      %700 = vmatprep.subr.bf16.mxu0 0
      %701 = vmatpush1.bf16.msra.mxu0 0
      %702 = vmatprep.subr.bf16.mxu0 0
      %703 = vmatpush1.bf16.msra.mxu0 0
      %704 = vmatprep.subr.bf16.mxu0 0
      %705 = vmatpush1.bf16.msra.mxu0 0
      %706 = vmatprep.subr.bf16.mxu0 0
      %707 = vmatpush1.bf16.msra.mxu0 0
      %708 = vmatprep.subr.bf16.mxu0 0
      %709 = vmatpush1.bf16.msra.mxu0 0
      %710 = vmatprep.subr.bf16.mxu0 0
      %711 = vmatpush1.bf16.msra.mxu0 0
      %712 = vmatprep.subr.bf16.mxu0 0
      %713 = vmatpush1.bf16.msra.mxu0 0
      %714 = vmatprep.subr.bf16.mxu0 0
      %715 = vmatpush1.bf16.msra.mxu0 0
      %716 = vmatprep.subr.bf16.mxu0 0
      %717 = vmatpush1.bf16.msra.mxu0 0
      %718 = vmatprep.mubr.bf16.mxu0 0
      %719 = vmatmul.mubr.bf16.gmra.mrb[0].mxu0 %v681
      %v720 = vpop.f32.mrb[0].mxu0
      %v721 = vadd.f32 0.0, %v720
      %v722 = vpop.f32.mrb[0].mxu0
      %v723 = vpop.f32.mrb[0].mxu0
      %v724 = vadd.f32 0.0, %v723
      %v725 = vpop.f32.mrb[0].mxu0
      %726 = vdwg.mxu0
      %v728 = vsel %vm281, %v584, 0
      %v731 = vsel %vm588, %v280, 0
      %733 = vmatprep.subr.bf16.mxu0 0
      %734 = vmatpush1.bf16.msra.mxu0 %v731
      %735 = vmatprep.subr.bf16.mxu0 0
      %736 = vmatpush1.bf16.msra.mxu0 0
      %737 = vmatprep.subr.bf16.mxu0 0
      %738 = vmatpush1.bf16.msra.mxu0 0
      %739 = vmatprep.subr.bf16.mxu0 0
      %740 = vmatpush1.bf16.msra.mxu0 0
      %741 = vmatprep.subr.bf16.mxu0 0
      %742 = vmatpush1.bf16.msra.mxu0 0
      %743 = vmatprep.subr.bf16.mxu0 0
      %744 = vmatpush1.bf16.msra.mxu0 0
      %745 = vmatprep.subr.bf16.mxu0 0
      %746 = vmatpush1.bf16.msra.mxu0 0
      %747 = vmatprep.subr.bf16.mxu0 0
      %748 = vmatpush1.bf16.msra.mxu0 0
      %749 = vmatprep.subr.bf16.mxu0 0
      %750 = vmatpush1.bf16.msra.mxu0 0
      %751 = vmatprep.subr.bf16.mxu0 0
      %752 = vmatpush1.bf16.msra.mxu0 0
      %753 = vmatprep.subr.bf16.mxu0 0
      %754 = vmatpush1.bf16.msra.mxu0 0
      %755 = vmatprep.subr.bf16.mxu0 0
      %756 = vmatpush1.bf16.msra.mxu0 0
      %757 = vmatprep.subr.bf16.mxu0 0
      %758 = vmatpush1.bf16.msra.mxu0 0
      %759 = vmatprep.subr.bf16.mxu0 0
      %760 = vmatpush1.bf16.msra.mxu0 0
      %761 = vmatprep.subr.bf16.mxu0 0
      %762 = vmatpush1.bf16.msra.mxu0 0
      %763 = vmatprep.subr.bf16.mxu0 0
      %764 = vmatpush1.bf16.msra.mxu0 0
      %765 = vmatprep.mubr.bf16.mxu0 0
      %766 = vmatmul.mubr.bf16.gmra.mrb[0].mxu0 %v728
      %v767 = vpop.f32.mrb[0].mxu0
      %v768 = vadd.f32 0.0, %v767
      %v769 = vpop.f32.mrb[0].mxu0
      %v770 = vpop.f32.mrb[0].mxu0
      %v771 = vadd.f32 0.0, %v770
      %v772 = vpop.f32.mrb[0].mxu0
      %773 = vdwg.mxu0
      %774 = vst.msk [vmem:[%s251] sm:$0xff] %vm281, %v627
      %775 = vst.msk [vmem:[%s251 + $0x8] sm:$0xff] %vm281, %v630
      %776 = vst.msk [vmem:[%s251 + $0x10] sm:$0xff] %vm281, %v674
      %777 = vst.msk [vmem:[%s251 + $0x18] sm:$0xff] %vm281, %v677
      %778 = vst.msk [vmem:[%s251 + $0x20] sm:$0xff] %vm281, %v721
      %779 = vst.msk [vmem:[%s251 + $0x28] sm:$0xff] %vm281, %v724
      %780 = vst.msk [vmem:[%s251 + $0x30] sm:$0xff] %vm281, %v768
      %781 = vst.msk [vmem:[%s251 + $0x38] sm:$0xff] %vm281, %v771
      %p782 = scmp.lt.s32.totalorder %s15, 1
      %s783 = scalar_select %p782, %s15, 1
      %s784 = smul.addr %s783, 8
      %s785 = smul.addr %s784, 8
      %s786 = scalar_lea.vmem %s4, %s785
      // Predicated region
      $region37: #{conformer_forward.29} parent=35 // pred_check
        %p787 = pneg %p137
      $region38: #{conformer_forward.29} parent=35 // pred_check_branch
        %789 = sbr.rel (%p787) target = $region40
      $region39: #{conformer_forward.29} parent=35 // pred_region
        _
      $region40: #{conformer_forward.29} parent=35 // pred_fallthru
        _
    $region36: #{conformer_forward.29} parent=5 // pred_fallthru
      _
    %p790 = scmp.le.s32.totalorder 2, %s10
    // Predicated region
    $region41: #{conformer_forward.29} parent=5 // pred_check
      %p791 = pneg %p790
    $region42: #{conformer_forward.29} parent=5 // pred_check_branch
      %793 = sbr.rel (%p791) target = $region44
    $region43: #{conformer_forward.29} parent=5 // pred_region
      %s794 = ssub.s32 %s10, 2
      // Predicated region
      $region45: #{conformer_forward.29} parent=43 // pred_check
        %p795 = pneg %p143
      $region46: #{conformer_forward.29} parent=43 // pred_check_branch
        %797 = sbr.rel (%p795) target = $region48
      $region47: #{conformer_forward.29} parent=43 // pred_region
        %p798 = scmp.lt.s32.totalorder %s16, 1
        %s799 = scalar_select %p798, %s16, 1
        %s800 = smul.addr %s799, 8
        %s801 = smul.addr %s800, 8
        %s802 = scalar_lea.vmem %s4, %s801
      $region48: #{conformer_forward.29} parent=43 // pred_fallthru
        _
    $region44: #{conformer_forward.29} parent=5 // pred_fallthru
      _
  $region6: #{conformer_forward.29} parent=0 // loop_footer
    %s14 = sadd.s32 1, %s10
  $region7: #{conformer_forward.29} parent=0 // loop_footer_branch
    %9 = sbr.rel target = $region3
  $region8: #{conformer_forward.29} parent=0 // loop_exit
    _

// kernel: conformer_forward.31
$region0: #{conformer_forward.31}
  #allocation0 [shape = 'u32[]', space=smem, size = 0x4, offset = 0x4, fixed_abs, tag = 'smem constant byte address 0x4 - core index']
  #allocation1 [shape = 'u32[144,128]{1,0:T(1,128)}', space=vmem, size = 0x12000, scoped, tag = 'internal scratch']
  %s0 = inlined_call_operand.vmem [shape: f32[32,32], index: 0, kind: input, shape index: {}]
  %s1 = inlined_call_operand.vmem [shape: f32[32,96], index: 1, kind: input, shape index: {}]
  %s2 = inlined_call_operand.vmem [shape: f32[1,96], index: 2, kind: input, shape index: {}]
  %s3 = inlined_call_operand.vmem [shape: f32[32,96], index: 3, kind: output, shape index: {}]
  %s4 = sld [smem:[#allocation0]]
  $region22: #{conformer_forward.31} parent=0
    _
  %s6 = ssub.s32 1, %s4
  %s7 = scalar_select 0, %s6, %s4
  // Predicated region
  $region2: #{conformer_forward.31} parent=0 // pred_check
    _
  $region3: #{conformer_forward.31} parent=0 // pred_check_branch
    %9 = sbr.rel (0) target = $region5
  $region4: #{conformer_forward.31} parent=0 // pred_region
    _
  $region5: #{conformer_forward.31} parent=0 // pred_fallthru
    _
  // Predicated region
  $region6: #{conformer_forward.31} parent=0 // pred_check
    _
  $region7: #{conformer_forward.31} parent=0 // pred_check_branch
    %11 = sbr.rel (0) target = $region9
  $region8: #{conformer_forward.31} parent=0 // pred_region
    _
  $region9: #{conformer_forward.31} parent=0 // pred_fallthru
    _
  // Predicated region
  $region10: #{conformer_forward.31} parent=0 // pred_check
    _
  $region11: #{conformer_forward.31} parent=0 // pred_check_branch
    %13 = sbr.rel (0) target = $region13
  $region12: #{conformer_forward.31} parent=0 // pred_region
    _
  $region13: #{conformer_forward.31} parent=0 // pred_fallthru
    _
  %v15 = vld [vmem:[%s0] sm:$0xff]
  %v16 = vld [vmem:[%s0 + $0x8] sm:$0xff]
  %v17 = vld [vmem:[%s0 + $0x10] sm:$0xff]
  %v18 = vld [vmem:[%s0 + $0x18] sm:$0xff]
  %v19 = vpack.c.bf16 %v16, %v15
  %v20 = vpack.c.bf16 %v18, %v17
  %v21 = vld [vmem:[%s1] sm:$0xff]
  %v22 = vld [vmem:[%s1 + $0x8] sm:$0xff]
  %v23 = vld [vmem:[%s1 + $0x10] sm:$0xff]
  %v24 = vld [vmem:[%s1 + $0x18] sm:$0xff]
  %v25 = vpack.c.bf16 %v22, %v21
  %v26 = vpack.c.bf16 %v24, %v23
  %v27 = vld [vmem:[%s2] sm:$0x1]
  %v29 = vlaneseq
  %v30 = vshrl.u32 %v29, 7
  %v31 = vsub.s32 0, %v30
  %v32 = vrot.slane %v27, %v31
  %vm34 = vcmask 261120
  %v36 = vsel %vm34, %v19, 0
  %v39 = vsel %vm34, %v20, 0
  %41 = vmatprep.subr.bf16.mxu0 0
  %42 = vmatpush1.bf16.msra.mxu0 %v25
  %43 = vmatprep.subr.bf16.mxu0 0
  %44 = vmatpush1.bf16.msra.mxu0 %v26
  %45 = vmatprep.subr.bf16.mxu0 0
  %46 = vmatpush1.bf16.msra.mxu0 0
  %47 = vmatprep.subr.bf16.mxu0 0
  %48 = vmatpush1.bf16.msra.mxu0 0
  %49 = vmatprep.subr.bf16.mxu0 0
  %50 = vmatpush1.bf16.msra.mxu0 0
  %51 = vmatprep.subr.bf16.mxu0 0
  %52 = vmatpush1.bf16.msra.mxu0 0
  %53 = vmatprep.subr.bf16.mxu0 0
  %54 = vmatpush1.bf16.msra.mxu0 0
  %55 = vmatprep.subr.bf16.mxu0 0
  %56 = vmatpush1.bf16.msra.mxu0 0
  %57 = vmatprep.subr.bf16.mxu0 0
  %58 = vmatpush1.bf16.msra.mxu0 0
  %59 = vmatprep.subr.bf16.mxu0 0
  %60 = vmatpush1.bf16.msra.mxu0 0
  %61 = vmatprep.subr.bf16.mxu0 0
  %62 = vmatpush1.bf16.msra.mxu0 0
  %63 = vmatprep.subr.bf16.mxu0 0
  %64 = vmatpush1.bf16.msra.mxu0 0
  %65 = vmatprep.subr.bf16.mxu0 0
  %66 = vmatpush1.bf16.msra.mxu0 0
  %67 = vmatprep.subr.bf16.mxu0 0
  %68 = vmatpush1.bf16.msra.mxu0 0
  %69 = vmatprep.subr.bf16.mxu0 0
  %70 = vmatpush1.bf16.msra.mxu0 0
  %71 = vmatprep.subr.bf16.mxu0 0
  %72 = vmatpush1.bf16.msra.mxu0 0
  %73 = vmatprep.mubr.bf16.mxu0 0
  %74 = vmatmul.mubr.bf16.gmra.mrb[0].mxu0 %v36
  %v75 = vpop.f32.mrb[0].mxu0
  %v76 = vadd.f32 %v32, %v75
  %v77 = vpop.f32.mrb[0].mxu0
  %v78 = vpop.f32.mrb[0].mxu0
  %v79 = vadd.f32 %v32, %v78
  %v80 = vpop.f32.mrb[0].mxu0
  %81 = vmatprep.mubr.bf16.mxu0 0
  %82 = vmatmul.mubr.bf16.gmra.mrb[0].mxu0 %v39
  %v83 = vpop.f32.mrb[0].mxu0
  %v84 = vadd.f32 %v32, %v83
  %v85 = vpop.f32.mrb[0].mxu0
  %v86 = vpop.f32.mrb[0].mxu0
  %v87 = vadd.f32 %v32, %v86
  %v88 = vpop.f32.mrb[0].mxu0
  %89 = vdwg.mxu0
  %vm90 = vcmask 785408
  %91 = vst.msk [vmem:[%s3] sm:$0xff] %vm90, %v76
  %92 = vst.msk [vmem:[%s3 + $0x8] sm:$0xff] %vm90, %v79
  %93 = vst.msk [vmem:[%s3 + $0x10] sm:$0xff] %vm90, %v84
  %94 = vst.msk [vmem:[%s3 + $0x18] sm:$0xff] %vm90, %v87
  // Predicated region
  $region14: #{conformer_forward.31} parent=0 // pred_check
    _
  $region15: #{conformer_forward.31} parent=0 // pred_check_branch
    %96 = sbr.rel (0) target = $region17
  $region16: #{conformer_forward.31} parent=0 // pred_region
    _
  $region17: #{conformer_forward.31} parent=0 // pred_fallthru
    _
  // Predicated region
  $region18: #{conformer_forward.31} parent=0 // pred_check
    _
  $region19: #{conformer_forward.31} parent=0 // pred_check_branch
    %98 = sbr.rel (0) target = $region21
  $region20: #{conformer_forward.31} parent=0 // pred_region
    _
  $region21: #{conformer_forward.31} parent=0 // pred_fallthru
    _

// kernel: conformer_forward.30
$region0: #{conformer_forward.30}
  #allocation0 [shape = 'u32[]', space=smem, size = 0x4, offset = 0x4, fixed_abs, tag = 'smem constant byte address 0x4 - core index']
  #allocation1 [shape = 'u32[144,128]{1,0:T(1,128)}', space=vmem, size = 0x12000, scoped, tag = 'internal scratch']
  %s0 = inlined_call_operand.vmem [shape: f32[32,32], index: 0, kind: input, shape index: {}]
  %s1 = inlined_call_operand.vmem [shape: f32[32,32], index: 1, kind: input, shape index: {}]
  %s2 = inlined_call_operand.vmem [shape: f32[32,32], index: 2, kind: input, shape index: {}]
  %s3 = inlined_call_operand.vmem [shape: f32[1,32], index: 3, kind: input, shape index: {}]
  %s4 = inlined_call_operand.vmem [shape: f32[1,32], index: 4, kind: input, shape index: {}]
  %s5 = inlined_call_operand.vmem [shape: f32[1,32], index: 5, kind: input, shape index: {}]
  %s6 = inlined_call_operand.vmem [shape: f32[32,32], index: 6, kind: output, shape index: {}]
  %s7 = sld [smem:[#allocation0]]
  $region34: #{conformer_forward.30} parent=0
    _
  %s9 = ssub.s32 1, %s7
  %s10 = scalar_select 0, %s9, %s7
  // Predicated region
  $region2: #{conformer_forward.30} parent=0 // pred_check
    _
  $region3: #{conformer_forward.30} parent=0 // pred_check_branch
    %12 = sbr.rel (0) target = $region5
  $region4: #{conformer_forward.30} parent=0 // pred_region
    _
  $region5: #{conformer_forward.30} parent=0 // pred_fallthru
    _
  // Predicated region
  $region6: #{conformer_forward.30} parent=0 // pred_check
    _
  $region7: #{conformer_forward.30} parent=0 // pred_check_branch
    %14 = sbr.rel (0) target = $region9
  $region8: #{conformer_forward.30} parent=0 // pred_region
    _
  $region9: #{conformer_forward.30} parent=0 // pred_fallthru
    _
  // Predicated region
  $region10: #{conformer_forward.30} parent=0 // pred_check
    _
  $region11: #{conformer_forward.30} parent=0 // pred_check_branch
    %16 = sbr.rel (0) target = $region13
  $region12: #{conformer_forward.30} parent=0 // pred_region
    _
  $region13: #{conformer_forward.30} parent=0 // pred_fallthru
    _
  // Predicated region
  $region14: #{conformer_forward.30} parent=0 // pred_check
    _
  $region15: #{conformer_forward.30} parent=0 // pred_check_branch
    %18 = sbr.rel (0) target = $region17
  $region16: #{conformer_forward.30} parent=0 // pred_region
    _
  $region17: #{conformer_forward.30} parent=0 // pred_fallthru
    _
  // Predicated region
  $region18: #{conformer_forward.30} parent=0 // pred_check
    _
  $region19: #{conformer_forward.30} parent=0 // pred_check_branch
    %20 = sbr.rel (0) target = $region21
  $region20: #{conformer_forward.30} parent=0 // pred_region
    _
  $region21: #{conformer_forward.30} parent=0 // pred_fallthru
    _
  // Predicated region
  $region22: #{conformer_forward.30} parent=0 // pred_check
    _
  $region23: #{conformer_forward.30} parent=0 // pred_check_branch
    %22 = sbr.rel (0) target = $region25
  $region24: #{conformer_forward.30} parent=0 // pred_region
    _
  $region25: #{conformer_forward.30} parent=0 // pred_fallthru
    _
  %v24 = vld [vmem:[%s0] sm:$0xff]
  %v25 = vld [vmem:[%s0 + $0x8] sm:$0xff]
  %v26 = vld [vmem:[%s0 + $0x10] sm:$0xff]
  %v27 = vld [vmem:[%s0 + $0x18] sm:$0xff]
  %v28 = vpack.c.bf16 %v25, %v24
  %v29 = vpack.c.bf16 %v27, %v26
  %v30 = vld [vmem:[%s2] sm:$0xff]
  %v31 = vld [vmem:[%s2 + $0x8] sm:$0xff]
  %v32 = vld [vmem:[%s2 + $0x10] sm:$0xff]
  %v33 = vld [vmem:[%s2 + $0x18] sm:$0xff]
  %v34 = vpack.c.bf16 %v31, %v30
  %v35 = vpack.c.bf16 %v33, %v32
  %v36 = vld [vmem:[%s3] sm:$0x1]
  %v38 = vlaneseq
  %v39 = vshrl.u32 %v38, 7
  %v40 = vsub.s32 0, %v39
  %v41 = vrot.slane %v36, %v40
  %vm43 = vcmask 261120
  %v45 = vsel %vm43, %v28, 0
  %v48 = vsel %vm43, %v29, 0
  %50 = vmatprep.subr.bf16.mxu0 0
  %51 = vmatpush1.bf16.msra.mxu0 %v34
  %52 = vmatprep.subr.bf16.mxu0 0
  %53 = vmatpush1.bf16.msra.mxu0 %v35
  %54 = vmatprep.subr.bf16.mxu0 0
  %55 = vmatpush1.bf16.msra.mxu0 0
  %56 = vmatprep.subr.bf16.mxu0 0
  %57 = vmatpush1.bf16.msra.mxu0 0
  %58 = vmatprep.subr.bf16.mxu0 0
  %59 = vmatpush1.bf16.msra.mxu0 0
  %60 = vmatprep.subr.bf16.mxu0 0
  %61 = vmatpush1.bf16.msra.mxu0 0
  %62 = vmatprep.subr.bf16.mxu0 0
  %63 = vmatpush1.bf16.msra.mxu0 0
  %64 = vmatprep.subr.bf16.mxu0 0
  %65 = vmatpush1.bf16.msra.mxu0 0
  %66 = vmatprep.subr.bf16.mxu0 0
  %67 = vmatpush1.bf16.msra.mxu0 0
  %68 = vmatprep.subr.bf16.mxu0 0
  %69 = vmatpush1.bf16.msra.mxu0 0
  %70 = vmatprep.subr.bf16.mxu0 0
  %71 = vmatpush1.bf16.msra.mxu0 0
  %72 = vmatprep.subr.bf16.mxu0 0
  %73 = vmatpush1.bf16.msra.mxu0 0
  %74 = vmatprep.subr.bf16.mxu0 0
  %75 = vmatpush1.bf16.msra.mxu0 0
  %76 = vmatprep.subr.bf16.mxu0 0
  %77 = vmatpush1.bf16.msra.mxu0 0
  %78 = vmatprep.subr.bf16.mxu0 0
  %79 = vmatpush1.bf16.msra.mxu0 0
  %80 = vmatprep.subr.bf16.mxu0 0
  %81 = vmatpush1.bf16.msra.mxu0 0
  %82 = vmatprep.mubr.bf16.mxu0 0
  %83 = vmatmul.mubr.bf16.gmra.mrb[0].mxu0 %v45
  %v84 = vpop.f32.mrb[0].mxu0
  %v85 = vadd.f32 %v41, %v84
  %v86 = vpop.f32.mrb[0].mxu0
  %v87 = vpop.f32.mrb[0].mxu0
  %v88 = vadd.f32 %v41, %v87
  %v89 = vpop.f32.mrb[0].mxu0
  %90 = vmatprep.mubr.bf16.mxu0 0
  %91 = vmatmul.mubr.bf16.gmra.mrb[0].mxu0 %v48
  %v92 = vpop.f32.mrb[0].mxu0
  %v93 = vadd.f32 %v41, %v92
  %v94 = vpop.f32.mrb[0].mxu0
  %v95 = vpop.f32.mrb[0].mxu0
  %v96 = vadd.f32 %v41, %v95
  %v97 = vpop.f32.mrb[0].mxu0
  %98 = vdwg.mxu0
  %v99 = vld [vmem:[%s1] sm:$0xff]
  %v100 = vld [vmem:[%s1 + $0x8] sm:$0xff]
  %v101 = vld [vmem:[%s1 + $0x10] sm:$0xff]
  %v102 = vld [vmem:[%s1 + $0x18] sm:$0xff]
  %v103 = vadd.f32 %v85, %v99
  %v104 = vadd.f32 %v88, %v100
  %v105 = vadd.f32 %v93, %v101
  %v106 = vadd.f32 %v96, %v102
  %v107 = vsel %vm43, %v103, 0.0
  %108 = vadd.xlane.f32.xlu0 %v107
  %v109 = vpop.xlane.xlu0 %108
  %v110 = vsel %vm43, %v104, 0.0
  %111 = vadd.xlane.f32.xlu0 %v110
  %v112 = vpop.xlane.xlu0 %111
  %v113 = vsel %vm43, %v105, 0.0
  %114 = vadd.xlane.f32.xlu0 %v113
  %v115 = vpop.xlane.xlu0 %114
  %v116 = vsel %vm43, %v106, 0.0
  %117 = vadd.xlane.f32.xlu0 %v116
  %v118 = vpop.xlane.xlu0 %117
  %v119 = vrcp.pop 32.0
  %v120 = vmul.f32 %v109, %v119
  %v121 = vmul.f32 %v112, %v119
  %v122 = vmul.f32 %v115, %v119
  %v123 = vmul.f32 %v118, %v119
  %v124 = vsub.f32 %v103, %v120
  %v125 = vsub.f32 %v104, %v121
  %v126 = vsub.f32 %v105, %v122
  %v127 = vsub.f32 %v106, %v123
  %v128 = vmul.f32 %v124, %v124
  %v129 = vmul.f32 %v125, %v125
  %v130 = vmul.f32 %v126, %v126
  %v131 = vmul.f32 %v127, %v127
  %v132 = vsel %vm43, %v128, 0.0
  %133 = vadd.xlane.f32.xlu0 %v132
  %v134 = vpop.xlane.xlu0 %133
  %v135 = vsel %vm43, %v129, 0.0
  %136 = vadd.xlane.f32.xlu0 %v135
  %v137 = vpop.xlane.xlu0 %136
  %v138 = vsel %vm43, %v130, 0.0
  %139 = vadd.xlane.f32.xlu0 %v138
  %v140 = vpop.xlane.xlu0 %139
  %v141 = vsel %vm43, %v131, 0.0
  %142 = vadd.xlane.f32.xlu0 %v141
  %v143 = vpop.xlane.xlu0 %142
  %v144 = vmul.f32 %v134, %v119
  %v145 = vmul.f32 %v137, %v119
  %v146 = vmul.f32 %v140, %v119
  %v147 = vmul.f32 %v143, %v119
  %v148 = vadd.f32 %v144, 1e-05
  %v149 = vadd.f32 %v145, 1e-05
  %v150 = vadd.f32 %v146, 1e-05
  %v151 = vadd.f32 %v147, 1e-05
  %v152 = vrsqrt.pop %v148
  %v153 = vrsqrt.pop %v149
  %v154 = vrsqrt.pop %v150
  %v155 = vrsqrt.pop %v151
  %v156 = vmul.f32 %v124, %v152
  %v157 = vmul.f32 %v125, %v153
  %v158 = vmul.f32 %v126, %v154
  %v159 = vmul.f32 %v127, %v155
  %v160 = vld [vmem:[%s4] sm:$0x1]
  %v162 = vlaneseq
  %v163 = vshrl.u32 %v162, 7
  %v164 = vsub.s32 0, %v163
  %v165 = vrot.slane %v160, %v164
  %v167 = vmul.f32 %v156, %v165
  %v168 = vmul.f32 %v157, %v165
  %v169 = vmul.f32 %v158, %v165
  %v170 = vmul.f32 %v159, %v165
  %v171 = vld [vmem:[%s5] sm:$0x1]
  %v173 = vlaneseq
  %v174 = vshrl.u32 %v173, 7
  %v175 = vsub.s32 0, %v174
  %v176 = vrot.slane %v171, %v175
  %v178 = vadd.f32 %v167, %v176
  %v179 = vadd.f32 %v168, %v176
  %v180 = vadd.f32 %v169, %v176
  %v181 = vadd.f32 %v170, %v176
  %182 = vst.msk [vmem:[%s6] sm:$0xff] %vm43, %v178
  %183 = vst.msk [vmem:[%s6 + $0x8] sm:$0xff] %vm43, %v179
  %184 = vst.msk [vmem:[%s6 + $0x10] sm:$0xff] %vm43, %v180
  %185 = vst.msk [vmem:[%s6 + $0x18] sm:$0xff] %vm43, %v181
  // Predicated region
  $region26: #{conformer_forward.30} parent=0 // pred_check
    _
  $region27: #{conformer_forward.30} parent=0 // pred_check_branch
    %187 = sbr.rel (0) target = $region29
  $region28: #{conformer_forward.30} parent=0 // pred_region
    _
  $region29: #{conformer_forward.30} parent=0 // pred_fallthru
    _
  // Predicated region
  $region30: #{conformer_forward.30} parent=0 // pred_check
    _
  $region31: #{conformer_forward.30} parent=0 // pred_check_branch
    %189 = sbr.rel (0) target = $region33
  $region32: #{conformer_forward.30} parent=0 // pred_region
    _
  $region33: #{conformer_forward.30} parent=0 // pred_fallthru
    _

// kernel: conformer_forward.45
$region0: #{conformer_forward.45}
  #allocation0 [shape = 'u32[]', space=smem, size = 0x4, offset = 0x4, fixed_abs, tag = 'smem constant byte address 0x4 - core index']
  #allocation1 [shape = 'u32[144,128]{1,0:T(1,128)}', space=vmem, size = 0x12000, scoped, tag = 'internal scratch']
  %s0 = inlined_call_operand.vmem [shape: f32[32,32], index: 0, kind: input, shape index: {}]
  %s1 = inlined_call_operand.vmem [shape: f32[1,32], index: 1, kind: input, shape index: {}]
  %s2 = inlined_call_operand.vmem [shape: f32[1,32], index: 2, kind: input, shape index: {}]
  %s3 = inlined_call_operand.vmem [shape: f32[32,32], index: 3, kind: output, shape index: {}]
  %s4 = sld [smem:[#allocation0]]
  $region22: #{conformer_forward.45} parent=0
    _
  %s6 = ssub.s32 1, %s4
  %s7 = scalar_select 0, %s6, %s4
  // Predicated region
  $region2: #{conformer_forward.45} parent=0 // pred_check
    _
  $region3: #{conformer_forward.45} parent=0 // pred_check_branch
    %9 = sbr.rel (0) target = $region5
  $region4: #{conformer_forward.45} parent=0 // pred_region
    _
  $region5: #{conformer_forward.45} parent=0 // pred_fallthru
    _
  // Predicated region
  $region6: #{conformer_forward.45} parent=0 // pred_check
    _
  $region7: #{conformer_forward.45} parent=0 // pred_check_branch
    %11 = sbr.rel (0) target = $region9
  $region8: #{conformer_forward.45} parent=0 // pred_region
    _
  $region9: #{conformer_forward.45} parent=0 // pred_fallthru
    _
  // Predicated region
  $region10: #{conformer_forward.45} parent=0 // pred_check
    _
  $region11: #{conformer_forward.45} parent=0 // pred_check_branch
    %13 = sbr.rel (0) target = $region13
  $region12: #{conformer_forward.45} parent=0 // pred_region
    _
  $region13: #{conformer_forward.45} parent=0 // pred_fallthru
    _
  %v14 = vld [vmem:[%s0] sm:$0xff]
  %v15 = vld [vmem:[%s0 + $0x8] sm:$0xff]
  %v16 = vld [vmem:[%s0 + $0x10] sm:$0xff]
  %v17 = vld [vmem:[%s0 + $0x18] sm:$0xff]
  %vm18 = vcmask 261120
  %v19 = vsel %vm18, %v14, 0.0
  %20 = vadd.xlane.f32.xlu0 %v19
  %v21 = vpop.xlane.xlu0 %20
  %v22 = vsel %vm18, %v15, 0.0
  %23 = vadd.xlane.f32.xlu0 %v22
  %v24 = vpop.xlane.xlu0 %23
  %v25 = vsel %vm18, %v16, 0.0
  %26 = vadd.xlane.f32.xlu0 %v25
  %v27 = vpop.xlane.xlu0 %26
  %v28 = vsel %vm18, %v17, 0.0
  %29 = vadd.xlane.f32.xlu0 %v28
  %v30 = vpop.xlane.xlu0 %29
  %v31 = vrcp.pop 32.0
  %v32 = vmul.f32 %v21, %v31
  %v33 = vmul.f32 %v24, %v31
  %v34 = vmul.f32 %v27, %v31
  %v35 = vmul.f32 %v30, %v31
  %v36 = vsub.f32 %v14, %v32
  %v37 = vsub.f32 %v15, %v33
  %v38 = vsub.f32 %v16, %v34
  %v39 = vsub.f32 %v17, %v35
  %v40 = vmul.f32 %v36, %v36
  %v41 = vmul.f32 %v37, %v37
  %v42 = vmul.f32 %v38, %v38
  %v43 = vmul.f32 %v39, %v39
  %v44 = vsel %vm18, %v40, 0.0
  %45 = vadd.xlane.f32.xlu0 %v44
  %v46 = vpop.xlane.xlu0 %45
  %v47 = vsel %vm18, %v41, 0.0
  %48 = vadd.xlane.f32.xlu0 %v47
  %v49 = vpop.xlane.xlu0 %48
  %v50 = vsel %vm18, %v42, 0.0
  %51 = vadd.xlane.f32.xlu0 %v50
  %v52 = vpop.xlane.xlu0 %51
  %v53 = vsel %vm18, %v43, 0.0
  %54 = vadd.xlane.f32.xlu0 %v53
  %v55 = vpop.xlane.xlu0 %54
  %v56 = vmul.f32 %v46, %v31
  %v57 = vmul.f32 %v49, %v31
  %v58 = vmul.f32 %v52, %v31
  %v59 = vmul.f32 %v55, %v31
  %v60 = vadd.f32 %v56, 1e-05
  %v61 = vadd.f32 %v57, 1e-05
  %v62 = vadd.f32 %v58, 1e-05
  %v63 = vadd.f32 %v59, 1e-05
  %v64 = vrsqrt.pop %v60
  %v65 = vrsqrt.pop %v61
  %v66 = vrsqrt.pop %v62
  %v67 = vrsqrt.pop %v63
  %v68 = vmul.f32 %v36, %v64
  %v69 = vmul.f32 %v37, %v65
  %v70 = vmul.f32 %v38, %v66
  %v71 = vmul.f32 %v39, %v67
  %v72 = vld [vmem:[%s1] sm:$0x1]
  %v74 = vlaneseq
  %v75 = vshrl.u32 %v74, 7
  %v76 = vsub.s32 0, %v75
  %v77 = vrot.slane %v72, %v76
  %v79 = vmul.f32 %v68, %v77
  %v80 = vmul.f32 %v69, %v77
  %v81 = vmul.f32 %v70, %v77
  %v82 = vmul.f32 %v71, %v77
  %v83 = vld [vmem:[%s2] sm:$0x1]
  %v85 = vlaneseq
  %v86 = vshrl.u32 %v85, 7
  %v87 = vsub.s32 0, %v86
  %v88 = vrot.slane %v83, %v87
  %v90 = vadd.f32 %v79, %v88
  %v91 = vadd.f32 %v80, %v88
  %v92 = vadd.f32 %v81, %v88
  %v93 = vadd.f32 %v82, %v88
  %94 = vst.msk [vmem:[%s3] sm:$0xff] %vm18, %v90
  %95 = vst.msk [vmem:[%s3 + $0x8] sm:$0xff] %vm18, %v91
  %96 = vst.msk [vmem:[%s3 + $0x10] sm:$0xff] %vm18, %v92
  %97 = vst.msk [vmem:[%s3 + $0x18] sm:$0xff] %vm18, %v93
  // Predicated region
  $region14: #{conformer_forward.45} parent=0 // pred_check
    _
  $region15: #{conformer_forward.45} parent=0 // pred_check_branch
    %99 = sbr.rel (0) target = $region17
  $region16: #{conformer_forward.45} parent=0 // pred_region
    _
  $region17: #{conformer_forward.45} parent=0 // pred_fallthru
    _
  // Predicated region
  $region18: #{conformer_forward.45} parent=0 // pred_check
    _
  $region19: #{conformer_forward.45} parent=0 // pred_check_branch
    %101 = sbr.rel (0) target = $region21
  $region20: #{conformer_forward.45} parent=0 // pred_region
    _
  $region21: #{conformer_forward.45} parent=0 // pred_fallthru
    _

// kernel: conformer_forward.46
$region0: #{conformer_forward.46}
  #allocation0 [shape = 'u32[]', space=smem, size = 0x4, offset = 0x4, fixed_abs, tag = 'smem constant byte address 0x4 - core index']
  #allocation1 [shape = 'u32[144,128]{1,0:T(1,128)}', space=vmem, size = 0x12000, scoped, tag = 'internal scratch']
  %s0 = inlined_call_operand.vmem [shape: f32[32,32], index: 0, kind: input, shape index: {}]
  %s1 = inlined_call_operand.vmem [shape: f32[32,64], index: 1, kind: input, shape index: {}]
  %s2 = inlined_call_operand.vmem [shape: f32[1,64], index: 2, kind: input, shape index: {}]
  %s3 = inlined_call_operand.vmem [shape: f32[32,64], index: 3, kind: output, shape index: {}]
  %s4 = sld [smem:[#allocation0]]
  $region22: #{conformer_forward.46} parent=0
    _
  %s6 = ssub.s32 1, %s4
  %s7 = scalar_select 0, %s6, %s4
  // Predicated region
  $region2: #{conformer_forward.46} parent=0 // pred_check
    _
  $region3: #{conformer_forward.46} parent=0 // pred_check_branch
    %9 = sbr.rel (0) target = $region5
  $region4: #{conformer_forward.46} parent=0 // pred_region
    _
  $region5: #{conformer_forward.46} parent=0 // pred_fallthru
    _
  // Predicated region
  $region6: #{conformer_forward.46} parent=0 // pred_check
    _
  $region7: #{conformer_forward.46} parent=0 // pred_check_branch
    %11 = sbr.rel (0) target = $region9
  $region8: #{conformer_forward.46} parent=0 // pred_region
    _
  $region9: #{conformer_forward.46} parent=0 // pred_fallthru
    _
  // Predicated region
  $region10: #{conformer_forward.46} parent=0 // pred_check
    _
  $region11: #{conformer_forward.46} parent=0 // pred_check_branch
    %13 = sbr.rel (0) target = $region13
  $region12: #{conformer_forward.46} parent=0 // pred_region
    _
  $region13: #{conformer_forward.46} parent=0 // pred_fallthru
    _
  %v15 = vld [vmem:[%s0] sm:$0xff]
  %v16 = vld [vmem:[%s0 + $0x8] sm:$0xff]
  %v17 = vld [vmem:[%s0 + $0x10] sm:$0xff]
  %v18 = vld [vmem:[%s0 + $0x18] sm:$0xff]
  %v19 = vpack.c.bf16 %v16, %v15
  %v20 = vpack.c.bf16 %v18, %v17
  %v21 = vld [vmem:[%s1] sm:$0xff]
  %v22 = vld [vmem:[%s1 + $0x8] sm:$0xff]
  %v23 = vld [vmem:[%s1 + $0x10] sm:$0xff]
  %v24 = vld [vmem:[%s1 + $0x18] sm:$0xff]
  %v25 = vpack.c.bf16 %v22, %v21
  %v26 = vpack.c.bf16 %v24, %v23
  %v27 = vld [vmem:[%s2] sm:$0x1]
  %v29 = vlaneseq
  %v30 = vshrl.u32 %v29, 7
  %v31 = vsub.s32 0, %v30
  %v32 = vrot.slane %v27, %v31
  %vm34 = vcmask 261120
  %v36 = vsel %vm34, %v19, 0
  %v39 = vsel %vm34, %v20, 0
  %41 = vmatprep.subr.bf16.mxu0 0
  %42 = vmatpush1.bf16.msra.mxu0 %v25
  %43 = vmatprep.subr.bf16.mxu0 0
  %44 = vmatpush1.bf16.msra.mxu0 %v26
  %45 = vmatprep.subr.bf16.mxu0 0
  %46 = vmatpush1.bf16.msra.mxu0 0
  %47 = vmatprep.subr.bf16.mxu0 0
  %48 = vmatpush1.bf16.msra.mxu0 0
  %49 = vmatprep.subr.bf16.mxu0 0
  %50 = vmatpush1.bf16.msra.mxu0 0
  %51 = vmatprep.subr.bf16.mxu0 0
  %52 = vmatpush1.bf16.msra.mxu0 0
  %53 = vmatprep.subr.bf16.mxu0 0
  %54 = vmatpush1.bf16.msra.mxu0 0
  %55 = vmatprep.subr.bf16.mxu0 0
  %56 = vmatpush1.bf16.msra.mxu0 0
  %57 = vmatprep.subr.bf16.mxu0 0
  %58 = vmatpush1.bf16.msra.mxu0 0
  %59 = vmatprep.subr.bf16.mxu0 0
  %60 = vmatpush1.bf16.msra.mxu0 0
  %61 = vmatprep.subr.bf16.mxu0 0
  %62 = vmatpush1.bf16.msra.mxu0 0
  %63 = vmatprep.subr.bf16.mxu0 0
  %64 = vmatpush1.bf16.msra.mxu0 0
  %65 = vmatprep.subr.bf16.mxu0 0
  %66 = vmatpush1.bf16.msra.mxu0 0
  %67 = vmatprep.subr.bf16.mxu0 0
  %68 = vmatpush1.bf16.msra.mxu0 0
  %69 = vmatprep.subr.bf16.mxu0 0
  %70 = vmatpush1.bf16.msra.mxu0 0
  %71 = vmatprep.subr.bf16.mxu0 0
  %72 = vmatpush1.bf16.msra.mxu0 0
  %73 = vmatprep.mubr.bf16.mxu0 0
  %74 = vmatmul.mubr.bf16.gmra.mrb[0].mxu0 %v36
  %v75 = vpop.f32.mrb[0].mxu0
  %v76 = vadd.f32 %v32, %v75
  %v77 = vpop.f32.mrb[0].mxu0
  %v78 = vpop.f32.mrb[0].mxu0
  %v79 = vadd.f32 %v32, %v78
  %v80 = vpop.f32.mrb[0].mxu0
  %81 = vmatprep.mubr.bf16.mxu0 0
  %82 = vmatmul.mubr.bf16.gmra.mrb[0].mxu0 %v39
  %v83 = vpop.f32.mrb[0].mxu0
  %v84 = vadd.f32 %v32, %v83
  %v85 = vpop.f32.mrb[0].mxu0
  %v86 = vpop.f32.mrb[0].mxu0
  %v87 = vadd.f32 %v32, %v86
  %v88 = vpop.f32.mrb[0].mxu0
  %89 = vdwg.mxu0
  %v90 = vmax.f32 %v76, 0.0
  %v91 = vmax.f32 %v79, 0.0
  %v92 = vmax.f32 %v84, 0.0
  %v93 = vmax.f32 %v87, 0.0
  %vm94 = vcmask 523264
  %95 = vst.msk [vmem:[%s3] sm:$0xff] %vm94, %v90
  %96 = vst.msk [vmem:[%s3 + $0x8] sm:$0xff] %vm94, %v91
  %97 = vst.msk [vmem:[%s3 + $0x10] sm:$0xff] %vm94, %v92
  %98 = vst.msk [vmem:[%s3 + $0x18] sm:$0xff] %vm94, %v93
  // Predicated region
  $region14: #{conformer_forward.46} parent=0 // pred_check
    _
  $region15: #{conformer_forward.46} parent=0 // pred_check_branch
    %100 = sbr.rel (0) target = $region17
  $region16: #{conformer_forward.46} parent=0 // pred_region
    _
  $region17: #{conformer_forward.46} parent=0 // pred_fallthru
    _
  // Predicated region
  $region18: #{conformer_forward.46} parent=0 // pred_check
    _
  $region19: #{conformer_forward.46} parent=0 // pred_check_branch
    %102 = sbr.rel (0) target = $region21
  $region20: #{conformer_forward.46} parent=0 // pred_region
    _
  $region21: #{conformer_forward.46} parent=0 // pred_fallthru
    _

// kernel: conformer_forward.32
$region0: #{conformer_forward.32}
  #allocation0 [shape = 'u32[]', space=smem, size = 0x4, offset = 0x4, fixed_abs, tag = 'smem constant byte address 0x4 - core index']
  #allocation1 [shape = 'u32[144,128]{1,0:T(1,128)}', space=vmem, size = 0x12000, scoped, tag = 'internal scratch']
  %s0 = inlined_call_operand.vmem [shape: f32[2,4,16,8], index: 0, kind: input, shape index: {}]
  %s1 = inlined_call_operand.vmem [shape: f32[2,4,16,8], index: 1, kind: input, shape index: {}]
  %s2 = inlined_call_operand.vmem [shape: f32[2,4,16,8], index: 2, kind: input, shape index: {}]
  %s3 = inlined_call_operand.vmem [shape: f32[2,1,16], index: 3, kind: input, shape index: {}]
  %s4 = inlined_call_operand.vmem [shape: f32[2,4,16,8], index: 4, kind: output, shape index: {}]
  %s5 = sld [smem:[#allocation0]]
  $region49: #{conformer_forward.32} parent=0
    _
  %s7 = ssub.s32 1, %s5
  %s8 = scalar_select 0, %s7, %s5
  loop: start=0, step=1, limit=4
  $region2: #{conformer_forward.32} parent=0 // loop_pre_header
    _
  $region3: #{conformer_forward.32} parent=0 // loop_header
    %s10 = sphi 0, %s14
    %p11 = scmp.ge.s32.totalorder %s10, 4
    %s20 = sphi 0, %s22
    %s23 = sphi 0, %s20
    %s24 = sphi 0, %s23
    %s40 = sphi 0, %s24
    %s46 = sphi 0, %s48
    %s49 = sphi 0, %s46
    %s50 = sphi 0, %s49
    %s66 = sphi 0, %s50
    %s72 = sphi 0, %s74
    %s75 = sphi 0, %s72
    %s76 = sphi 0, %s75
    %s92 = sphi 0, %s76
    %s98 = sphi 0, %s100
    %s101 = sphi 0, %s98
    %s102 = sphi 0, %s101
    %s118 = sphi 0, %s102
    %s124 = sphi 0, %s126
    %s127 = sphi 0, %s124
    %s128 = sphi 0, %s127
    %s144 = sphi 0, %s128
  $region4: #{conformer_forward.32} parent=0 // loop_header_branch
    %13 = sbr.rel (%p11) target = $region8
  $region5: #{conformer_forward.32} parent=0 // loop_body
    %s15 = ssub.s32 %s10, 1
    %s16 = ssub.s32 %s10, 2
    %s17 = sadd.s32 %s10, 1
    %s18 = ssub.s32 %s10, %s17
    %p19 = scmp.eq.s32.totalorder %s18, 0
    %s21 = sadd.s32 %s20, 1
    %s22 = scalar_select %p19, %s20, %s21
    %p25 = pneg %p19
    %p26 = scmp.eq.s32.totalorder %s10, 1
    %p27 = por %p25, %p26
    %p28 = scmp.ne.s32.totalorder %s20, %s23
    %p29 = scmp.eq.s32.totalorder %s10, 0
    %p30 = por %p28, %p29
    %p31 = scmp.ne.s32.totalorder %s20, %s23
    %p32 = scmp.eq.s32.totalorder %s15, 1
    %p33 = por %p31, %p32
    %p34 = scmp.ne.s32.totalorder %s23, %s24
    %p35 = scmp.eq.s32.totalorder %s15, 0
    %p36 = por %p34, %p35
    %p37 = scmp.ne.s32.totalorder %s23, %s24
    %p38 = scmp.eq.s32.totalorder %s16, 1
    %p39 = por %p37, %p38
    %p41 = scmp.ne.s32.totalorder %s24, %s40
    %p42 = scmp.eq.s32.totalorder %s16, 0
    %p43 = por %p41, %p42
    %s44 = ssub.s32 %s10, %s17
    %p45 = scmp.eq.s32.totalorder %s44, 0
    %s47 = sadd.s32 %s46, 1
    %s48 = scalar_select %p45, %s46, %s47
    %p51 = pneg %p45
    %p52 = scmp.eq.s32.totalorder %s10, 1
    %p53 = por %p51, %p52
    %p54 = scmp.ne.s32.totalorder %s46, %s49
    %p55 = scmp.eq.s32.totalorder %s10, 0
    %p56 = por %p54, %p55
    %p57 = scmp.ne.s32.totalorder %s46, %s49
    %p58 = scmp.eq.s32.totalorder %s15, 1
    %p59 = por %p57, %p58
    %p60 = scmp.ne.s32.totalorder %s49, %s50
    %p61 = scmp.eq.s32.totalorder %s15, 0
    %p62 = por %p60, %p61
    %p63 = scmp.ne.s32.totalorder %s49, %s50
    %p64 = scmp.eq.s32.totalorder %s16, 1
    %p65 = por %p63, %p64
    %p67 = scmp.ne.s32.totalorder %s50, %s66
    %p68 = scmp.eq.s32.totalorder %s16, 0
    %p69 = por %p67, %p68
    %s70 = ssub.s32 %s10, %s17
    %p71 = scmp.eq.s32.totalorder %s70, 0
    %s73 = sadd.s32 %s72, 1
    %s74 = scalar_select %p71, %s72, %s73
    %p77 = pneg %p71
    %p78 = scmp.eq.s32.totalorder %s10, 1
    %p79 = por %p77, %p78
    %p80 = scmp.ne.s32.totalorder %s72, %s75
    %p81 = scmp.eq.s32.totalorder %s10, 0
    %p82 = por %p80, %p81
    %p83 = scmp.ne.s32.totalorder %s72, %s75
    %p84 = scmp.eq.s32.totalorder %s15, 1
    %p85 = por %p83, %p84
    %p86 = scmp.ne.s32.totalorder %s75, %s76
    %p87 = scmp.eq.s32.totalorder %s15, 0
    %p88 = por %p86, %p87
    %p89 = scmp.ne.s32.totalorder %s75, %s76
    %p90 = scmp.eq.s32.totalorder %s16, 1
    %p91 = por %p89, %p90
    %p93 = scmp.ne.s32.totalorder %s76, %s92
    %p94 = scmp.eq.s32.totalorder %s16, 0
    %p95 = por %p93, %p94
    %s96 = ssub.s32 %s10, %s17
    %p97 = scmp.eq.s32.totalorder %s96, 0
    %s99 = sadd.s32 %s98, 1
    %s100 = scalar_select %p97, %s98, %s99
    %p103 = pneg %p97
    %p104 = scmp.eq.s32.totalorder %s10, 1
    %p105 = por %p103, %p104
    %p106 = scmp.ne.s32.totalorder %s98, %s101
    %p107 = scmp.eq.s32.totalorder %s10, 0
    %p108 = por %p106, %p107
    %p109 = scmp.ne.s32.totalorder %s98, %s101
    %p110 = scmp.eq.s32.totalorder %s15, 1
    %p111 = por %p109, %p110
    %p112 = scmp.ne.s32.totalorder %s101, %s102
    %p113 = scmp.eq.s32.totalorder %s15, 0
    %p114 = por %p112, %p113
    %p115 = scmp.ne.s32.totalorder %s101, %s102
    %p116 = scmp.eq.s32.totalorder %s16, 1
    %p117 = por %p115, %p116
    %p119 = scmp.ne.s32.totalorder %s102, %s118
    %p120 = scmp.eq.s32.totalorder %s16, 0
    %p121 = por %p119, %p120
    %s122 = ssub.s32 %s10, %s17
    %p123 = scmp.eq.s32.totalorder %s122, 0
    %s125 = sadd.s32 %s124, 1
    %s126 = scalar_select %p123, %s124, %s125
    %p129 = pneg %p123
    %p130 = scmp.eq.s32.totalorder %s10, 1
    %p131 = por %p129, %p130
    %p132 = scmp.ne.s32.totalorder %s124, %s127
    %p133 = scmp.eq.s32.totalorder %s10, 0
    %p134 = por %p132, %p133
    %p135 = scmp.ne.s32.totalorder %s124, %s127
    %p136 = scmp.eq.s32.totalorder %s15, 1
    %p137 = por %p135, %p136
    %p138 = scmp.ne.s32.totalorder %s127, %s128
    %p139 = scmp.eq.s32.totalorder %s15, 0
    %p140 = por %p138, %p139
    %p141 = scmp.ne.s32.totalorder %s127, %s128
    %p142 = scmp.eq.s32.totalorder %s16, 1
    %p143 = por %p141, %p142
    %p145 = scmp.ne.s32.totalorder %s128, %s144
    %p146 = scmp.eq.s32.totalorder %s16, 0
    %p147 = por %p145, %p146
    %p148 = scmp.le.s32.totalorder 1, %s10
    %p149 = scmp.lt.s32.totalorder %s10, 3
    %p150 = pnand %p148, %p149
    %p151 = pneg %p150
    // Predicated region
    $region9: #{conformer_forward.32} parent=5 // pred_check
      _
    $region10: #{conformer_forward.32} parent=5 // pred_check_branch
      %153 = sbr.rel (%p150) target = $region12
    $region11: #{conformer_forward.32} parent=5 // pred_region
      %s154 = ssub.s32 %s10, 1
    $region12: #{conformer_forward.32} parent=5 // pred_fallthru
      _
    %p155 = scmp.lt.s32.totalorder %s10, 2
    // Predicated region
    $region13: #{conformer_forward.32} parent=5 // pred_check
      %p156 = pneg %p155
    $region14: #{conformer_forward.32} parent=5 // pred_check_branch
      %158 = sbr.rel (%p156) target = $region16
    $region15: #{conformer_forward.32} parent=5 // pred_region
      // Predicated region
      $region17: #{conformer_forward.32} parent=15 // pred_check
        %p159 = pneg %p30
      $region18: #{conformer_forward.32} parent=15 // pred_check_branch
        %161 = sbr.rel (%p159) target = $region20
      $region19: #{conformer_forward.32} parent=15 // pred_region
        %p162 = scmp.lt.s32.totalorder %s10, 1
        %s163 = scalar_select %p162, %s10, 1
        %s164 = smul.addr %s163, 8
        %s165 = smul.addr %s164, 8
        %s166 = scalar_lea.vmem %s0, %s165
      $region20: #{conformer_forward.32} parent=15 // pred_fallthru
        _
      // Predicated region
      $region21: #{conformer_forward.32} parent=15 // pred_check
        %p167 = pneg %p56
      $region22: #{conformer_forward.32} parent=15 // pred_check_branch
        %169 = sbr.rel (%p167) target = $region24
      $region23: #{conformer_forward.32} parent=15 // pred_region
        %p170 = scmp.lt.s32.totalorder %s10, 1
        %s171 = scalar_select %p170, %s10, 1
        %s172 = smul.addr %s171, 8
        %s173 = smul.addr %s172, 8
        %s174 = scalar_lea.vmem %s1, %s173
      $region24: #{conformer_forward.32} parent=15 // pred_fallthru
        _
      // Predicated region
      $region25: #{conformer_forward.32} parent=15 // pred_check
        %p175 = pneg %p82
      $region26: #{conformer_forward.32} parent=15 // pred_check_branch
        %177 = sbr.rel (%p175) target = $region28
      $region27: #{conformer_forward.32} parent=15 // pred_region
        %p178 = scmp.lt.s32.totalorder %s10, 1
        %s179 = scalar_select %p178, %s10, 1
        %s180 = smul.addr %s179, 8
        %s181 = smul.addr %s180, 8
        %s182 = scalar_lea.vmem %s2, %s181
      $region28: #{conformer_forward.32} parent=15 // pred_fallthru
        _
      // Predicated region
      $region29: #{conformer_forward.32} parent=15 // pred_check
        %p183 = pneg %p108
      $region30: #{conformer_forward.32} parent=15 // pred_check_branch
        %185 = sbr.rel (%p183) target = $region32
      $region31: #{conformer_forward.32} parent=15 // pred_region
        %p186 = scmp.lt.s32.totalorder %s10, 1
        %s187 = scalar_select %p186, %s10, 1
        %s188 = scalar_lea.vmem %s3, %s187
      $region32: #{conformer_forward.32} parent=15 // pred_fallthru
        _
    $region16: #{conformer_forward.32} parent=5 // pred_fallthru
      _
    %p189 = scmp.le.s32.totalorder 1, %s10
    %p190 = scmp.lt.s32.totalorder %s10, 3
    %p191 = pnand %p189, %p190
    %p192 = pneg %p191
    // Predicated region
    $region33: #{conformer_forward.32} parent=5 // pred_check
      _
    $region34: #{conformer_forward.32} parent=5 // pred_check_branch
      %194 = sbr.rel (%p191) target = $region36
    $region35: #{conformer_forward.32} parent=5 // pred_region
      %s195 = ssub.s32 %s10, 1
      %p196 = scmp.lt.s32.totalorder %s15, 1
      %s197 = scalar_select %p196, %s15, 1
      %s198 = smul.addr %s197, 8
      %s199 = smul.addr %s198, 8
      %s200 = scalar_lea.vmem %s0, %s199
      %p201 = pneg %p36
      %p202 = pneg %p33
      %p203 = scmp.lt.s32.totalorder %s15, 1
      %s204 = scalar_select %p203, %s15, 1
      %s205 = smul.addr %s204, 8
      %s206 = smul.addr %s205, 8
      %s207 = scalar_lea.vmem %s1, %s206
      %p208 = pneg %p62
      %p209 = pneg %p59
      %p210 = scmp.lt.s32.totalorder %s15, 1
      %s211 = scalar_select %p210, %s15, 1
      %s212 = smul.addr %s211, 8
      %s213 = smul.addr %s212, 8
      %s214 = scalar_lea.vmem %s2, %s213
      %p215 = pneg %p88
      %p216 = pneg %p85
      %p217 = scmp.lt.s32.totalorder %s15, 1
      %s218 = scalar_select %p217, %s15, 1
      %s219 = scalar_lea.vmem %s3, %s218
      %p220 = pneg %p114
      %p221 = pneg %p111
      %p222 = pneg %p140
      %p223 = pneg %p137
      %p224 = scmp.lt.s32.totalorder %s15, 1
      %s225 = scalar_select %p224, %s15, 1
      %s226 = smul.addr %s225, 8
      %s227 = smul.addr %s226, 8
      %s228 = scalar_lea.vmem %s4, %s227
      %p229 = scmp.lt.s32.totalorder %s15, 1
      %s230 = scalar_select %p229, %s15, 1
      %s231 = smul.addr %s230, 8
      %s232 = smul.addr %s231, 8
      %s233 = scalar_lea.vmem %s0, %s232
      %p234 = scmp.lt.s32.totalorder %s15, 1
      %s235 = scalar_select %p234, %s15, 1
      %s236 = smul.addr %s235, 8
      %s237 = smul.addr %s236, 8
      %s238 = scalar_lea.vmem %s1, %s237
      %p239 = scmp.lt.s32.totalorder %s15, 1
      %s240 = scalar_select %p239, %s15, 1
      %s241 = smul.addr %s240, 8
      %s242 = smul.addr %s241, 8
      %s243 = scalar_lea.vmem %s2, %s242
      %p244 = scmp.lt.s32.totalorder %s15, 1
      %s245 = scalar_select %p244, %s15, 1
      %s246 = scalar_lea.vmem %s3, %s245
      %p247 = scmp.lt.s32.totalorder %s15, 1
      %s248 = scalar_select %p247, %s15, 1
      %s249 = smul.addr %s248, 8
      %s250 = smul.addr %s249, 8
      %s251 = scalar_lea.vmem %s4, %s250
      %v253 = vld [vmem:[%s233] sm:$0xff]
      %v254 = vld [vmem:[%s233 + $0x8] sm:$0xff]
      %v255 = vld [vmem:[%s233 + $0x10] sm:$0xff]
      %v256 = vld [vmem:[%s233 + $0x18] sm:$0xff]
      %v257 = vld [vmem:[%s233 + $0x20] sm:$0xff]
      %v258 = vld [vmem:[%s233 + $0x28] sm:$0xff]
      %v259 = vld [vmem:[%s233 + $0x30] sm:$0xff]
      %v260 = vld [vmem:[%s233 + $0x38] sm:$0xff]
      %v261 = vpack.c.bf16 %v254, %v253
      %v262 = vpack.c.bf16 %v256, %v255
      %v263 = vpack.c.bf16 %v258, %v257
      %v264 = vpack.c.bf16 %v260, %v259
      %v265 = vld [vmem:[%s238] sm:$0xff]
      %v266 = vld [vmem:[%s238 + $0x8] sm:$0xff]
      %v267 = vld [vmem:[%s238 + $0x10] sm:$0xff]
      %v268 = vld [vmem:[%s238 + $0x18] sm:$0xff]
      %v269 = vld [vmem:[%s238 + $0x20] sm:$0xff]
      %v270 = vld [vmem:[%s238 + $0x28] sm:$0xff]
      %v271 = vld [vmem:[%s238 + $0x30] sm:$0xff]
      %v272 = vld [vmem:[%s238 + $0x38] sm:$0xff]
      %v273 = vpack.c.bf16 %v266, %v265
      %v274 = vpack.c.bf16 %v268, %v267
      %v275 = vpack.c.bf16 %v270, %v269
      %v276 = vpack.c.bf16 %v272, %v271
      %v277 = vld [vmem:[%s243] sm:$0xff]
      %v278 = vld [vmem:[%s243 + $0x8] sm:$0xff]
      %v279 = vld [vmem:[%s243 + $0x10] sm:$0xff]
      %v280 = vld [vmem:[%s243 + $0x18] sm:$0xff]
      %v281 = vld [vmem:[%s243 + $0x20] sm:$0xff]
      %v282 = vld [vmem:[%s243 + $0x28] sm:$0xff]
      %v283 = vld [vmem:[%s243 + $0x30] sm:$0xff]
      %v284 = vld [vmem:[%s243 + $0x38] sm:$0xff]
      %v285 = vpack.c.bf16 %v278, %v277
      %v286 = vpack.c.bf16 %v280, %v279
      %v287 = vpack.c.bf16 %v282, %v281
      %v288 = vpack.c.bf16 %v284, %v283
      %vm289 = vcmask 64512
      %v291 = vsel %vm289, %v261, 0
      %v294 = vsel %vm289, %v273, 0
      %296 = vmatprep.subr.bf16.mxu0 0
      %297 = vmatpush1.bf16.xpose.msra.mxu0 %v294
      %298 = vmatprep.subr.bf16.mxu0 0
      %299 = vmatpush1.bf16.xpose.msra.mxu0 0
      %300 = vmatprep.subr.bf16.mxu0 0
      %301 = vmatpush1.bf16.xpose.msra.mxu0 0
      %302 = vmatprep.subr.bf16.mxu0 0
      %303 = vmatpush1.bf16.xpose.msra.mxu0 0
      %304 = vmatprep.subr.bf16.mxu0 0
      %305 = vmatpush1.bf16.xpose.msra.mxu0 0
      %306 = vmatprep.subr.bf16.mxu0 0
      %307 = vmatpush1.bf16.xpose.msra.mxu0 0
      %308 = vmatprep.subr.bf16.mxu0 0
      %309 = vmatpush1.bf16.xpose.msra.mxu0 0
      %310 = vmatprep.subr.bf16.mxu0 0
      %311 = vmatpush1.bf16.xpose.msra.mxu0 0
      %312 = vmatprep.subr.bf16.mxu0 0
      %313 = vmatpush1.bf16.xpose.msra.mxu0 0
      %314 = vmatprep.subr.bf16.mxu0 0
      %315 = vmatpush1.bf16.xpose.msra.mxu0 0
      %316 = vmatprep.subr.bf16.mxu0 0
      %317 = vmatpush1.bf16.xpose.msra.mxu0 0
      %318 = vmatprep.subr.bf16.mxu0 0
      %319 = vmatpush1.bf16.xpose.msra.mxu0 0
      %320 = vmatprep.subr.bf16.mxu0 0
      %321 = vmatpush1.bf16.xpose.msra.mxu0 0
      %322 = vmatprep.subr.bf16.mxu0 0
      %323 = vmatpush1.bf16.xpose.msra.mxu0 0
      %324 = vmatprep.subr.bf16.mxu0 0
      %325 = vmatpush1.bf16.xpose.msra.mxu0 0
      %326 = vmatprep.subr.bf16.mxu0 0
      %327 = vmatpush1.bf16.xpose.msra.mxu0 0
      %328 = vmatprep.mubr.bf16.mxu0 0
      %329 = vmatmul.mubr.bf16.gmra.mrb[0].mxu0 %v291
      %v330 = vpop.f32.mrb[0].mxu0
      %v331 = vadd.f32 0.0, %v330
      %v332 = vpop.f32.mrb[0].mxu0
      %v333 = vpop.f32.mrb[0].mxu0
      %v334 = vadd.f32 0.0, %v333
      %v335 = vpop.f32.mrb[0].mxu0
      %336 = vdwg.mxu0
      %v338 = vsel %vm289, %v262, 0
      %v341 = vsel %vm289, %v274, 0
      %343 = vmatprep.subr.bf16.mxu0 0
      %344 = vmatpush1.bf16.xpose.msra.mxu0 %v341
      %345 = vmatprep.subr.bf16.mxu0 0
      %346 = vmatpush1.bf16.xpose.msra.mxu0 0
      %347 = vmatprep.subr.bf16.mxu0 0
      %348 = vmatpush1.bf16.xpose.msra.mxu0 0
      %349 = vmatprep.subr.bf16.mxu0 0
      %350 = vmatpush1.bf16.xpose.msra.mxu0 0
      %351 = vmatprep.subr.bf16.mxu0 0
      %352 = vmatpush1.bf16.xpose.msra.mxu0 0
      %353 = vmatprep.subr.bf16.mxu0 0
      %354 = vmatpush1.bf16.xpose.msra.mxu0 0
      %355 = vmatprep.subr.bf16.mxu0 0
      %356 = vmatpush1.bf16.xpose.msra.mxu0 0
      %357 = vmatprep.subr.bf16.mxu0 0
      %358 = vmatpush1.bf16.xpose.msra.mxu0 0
      %359 = vmatprep.subr.bf16.mxu0 0
      %360 = vmatpush1.bf16.xpose.msra.mxu0 0
      %361 = vmatprep.subr.bf16.mxu0 0
      %362 = vmatpush1.bf16.xpose.msra.mxu0 0
      %363 = vmatprep.subr.bf16.mxu0 0
      %364 = vmatpush1.bf16.xpose.msra.mxu0 0
      %365 = vmatprep.subr.bf16.mxu0 0
      %366 = vmatpush1.bf16.xpose.msra.mxu0 0
      %367 = vmatprep.subr.bf16.mxu0 0
      %368 = vmatpush1.bf16.xpose.msra.mxu0 0
      %369 = vmatprep.subr.bf16.mxu0 0
      %370 = vmatpush1.bf16.xpose.msra.mxu0 0
      %371 = vmatprep.subr.bf16.mxu0 0
      %372 = vmatpush1.bf16.xpose.msra.mxu0 0
      %373 = vmatprep.subr.bf16.mxu0 0
      %374 = vmatpush1.bf16.xpose.msra.mxu0 0
      %375 = vmatprep.mubr.bf16.mxu0 0
      %376 = vmatmul.mubr.bf16.gmra.mrb[0].mxu0 %v338
      %v377 = vpop.f32.mrb[0].mxu0
      %v378 = vadd.f32 0.0, %v377
      %v379 = vpop.f32.mrb[0].mxu0
      %v380 = vpop.f32.mrb[0].mxu0
      %v381 = vadd.f32 0.0, %v380
      %v382 = vpop.f32.mrb[0].mxu0
      %383 = vdwg.mxu0
      %v385 = vsel %vm289, %v263, 0
      %v388 = vsel %vm289, %v275, 0
      %390 = vmatprep.subr.bf16.mxu0 0
      %391 = vmatpush1.bf16.xpose.msra.mxu0 %v388
      %392 = vmatprep.subr.bf16.mxu0 0
      %393 = vmatpush1.bf16.xpose.msra.mxu0 0
      %394 = vmatprep.subr.bf16.mxu0 0
      %395 = vmatpush1.bf16.xpose.msra.mxu0 0
      %396 = vmatprep.subr.bf16.mxu0 0
      %397 = vmatpush1.bf16.xpose.msra.mxu0 0
      %398 = vmatprep.subr.bf16.mxu0 0
      %399 = vmatpush1.bf16.xpose.msra.mxu0 0
      %400 = vmatprep.subr.bf16.mxu0 0
      %401 = vmatpush1.bf16.xpose.msra.mxu0 0
      %402 = vmatprep.subr.bf16.mxu0 0
      %403 = vmatpush1.bf16.xpose.msra.mxu0 0
      %404 = vmatprep.subr.bf16.mxu0 0
      %405 = vmatpush1.bf16.xpose.msra.mxu0 0
      %406 = vmatprep.subr.bf16.mxu0 0
      %407 = vmatpush1.bf16.xpose.msra.mxu0 0
      %408 = vmatprep.subr.bf16.mxu0 0
      %409 = vmatpush1.bf16.xpose.msra.mxu0 0
      %410 = vmatprep.subr.bf16.mxu0 0
      %411 = vmatpush1.bf16.xpose.msra.mxu0 0
      %412 = vmatprep.subr.bf16.mxu0 0
      %413 = vmatpush1.bf16.xpose.msra.mxu0 0
      %414 = vmatprep.subr.bf16.mxu0 0
      %415 = vmatpush1.bf16.xpose.msra.mxu0 0
      %416 = vmatprep.subr.bf16.mxu0 0
      %417 = vmatpush1.bf16.xpose.msra.mxu0 0
      %418 = vmatprep.subr.bf16.mxu0 0
      %419 = vmatpush1.bf16.xpose.msra.mxu0 0
      %420 = vmatprep.subr.bf16.mxu0 0
      %421 = vmatpush1.bf16.xpose.msra.mxu0 0
      %422 = vmatprep.mubr.bf16.mxu0 0
      %423 = vmatmul.mubr.bf16.gmra.mrb[0].mxu0 %v385
      %v424 = vpop.f32.mrb[0].mxu0
      %v425 = vadd.f32 0.0, %v424
      %v426 = vpop.f32.mrb[0].mxu0
      %v427 = vpop.f32.mrb[0].mxu0
      %v428 = vadd.f32 0.0, %v427
      %v429 = vpop.f32.mrb[0].mxu0
      %430 = vdwg.mxu0
      %v432 = vsel %vm289, %v264, 0
      %v435 = vsel %vm289, %v276, 0
      %437 = vmatprep.subr.bf16.mxu0 0
      %438 = vmatpush1.bf16.xpose.msra.mxu0 %v435
      %439 = vmatprep.subr.bf16.mxu0 0
      %440 = vmatpush1.bf16.xpose.msra.mxu0 0
      %441 = vmatprep.subr.bf16.mxu0 0
      %442 = vmatpush1.bf16.xpose.msra.mxu0 0
      %443 = vmatprep.subr.bf16.mxu0 0
      %444 = vmatpush1.bf16.xpose.msra.mxu0 0
      %445 = vmatprep.subr.bf16.mxu0 0
      %446 = vmatpush1.bf16.xpose.msra.mxu0 0
      %447 = vmatprep.subr.bf16.mxu0 0
      %448 = vmatpush1.bf16.xpose.msra.mxu0 0
      %449 = vmatprep.subr.bf16.mxu0 0
      %450 = vmatpush1.bf16.xpose.msra.mxu0 0
      %451 = vmatprep.subr.bf16.mxu0 0
      %452 = vmatpush1.bf16.xpose.msra.mxu0 0
      %453 = vmatprep.subr.bf16.mxu0 0
      %454 = vmatpush1.bf16.xpose.msra.mxu0 0
      %455 = vmatprep.subr.bf16.mxu0 0
      %456 = vmatpush1.bf16.xpose.msra.mxu0 0
      %457 = vmatprep.subr.bf16.mxu0 0
      %458 = vmatpush1.bf16.xpose.msra.mxu0 0
      %459 = vmatprep.subr.bf16.mxu0 0
      %460 = vmatpush1.bf16.xpose.msra.mxu0 0
      %461 = vmatprep.subr.bf16.mxu0 0
      %462 = vmatpush1.bf16.xpose.msra.mxu0 0
      %463 = vmatprep.subr.bf16.mxu0 0
      %464 = vmatpush1.bf16.xpose.msra.mxu0 0
      %465 = vmatprep.subr.bf16.mxu0 0
      %466 = vmatpush1.bf16.xpose.msra.mxu0 0
      %467 = vmatprep.subr.bf16.mxu0 0
      %468 = vmatpush1.bf16.xpose.msra.mxu0 0
      %469 = vmatprep.mubr.bf16.mxu0 0
      %470 = vmatmul.mubr.bf16.gmra.mrb[0].mxu0 %v432
      %v471 = vpop.f32.mrb[0].mxu0
      %v472 = vadd.f32 0.0, %v471
      %v473 = vpop.f32.mrb[0].mxu0
      %v474 = vpop.f32.mrb[0].mxu0
      %v475 = vadd.f32 0.0, %v474
      %v476 = vpop.f32.mrb[0].mxu0
      %477 = vdwg.mxu0
      %v478 = vmul.f32 %v331, 0.35355338
      %v479 = vmul.f32 %v334, 0.35355338
      %v480 = vmul.f32 %v378, 0.35355338
      %v481 = vmul.f32 %v381, 0.35355338
      %v482 = vmul.f32 %v425, 0.35355338
      %v483 = vmul.f32 %v428, 0.35355338
      %v484 = vmul.f32 %v472, 0.35355338
      %v485 = vmul.f32 %v475, 0.35355338
      %v486 = vld [vmem:[%s246] sm:$0x1]
      %v488 = vlaneseq
      %v489 = vshrl.u32 %v488, 7
      %v490 = vsub.s32 0, %v489
      %v491 = vrot.slane %v486, %v490
      %v493 = vadd.f32 %v478, %v491
      %v494 = vadd.f32 %v479, %v491
      %v495 = vadd.f32 %v480, %v491
      %v496 = vadd.f32 %v481, %v491
      %v497 = vadd.f32 %v482, %v491
      %v498 = vadd.f32 %v483, %v491
      %v499 = vadd.f32 %v484, %v491
      %v500 = vadd.f32 %v485, %v491
      %vm501 = vcmask 130048
      %v502 = vsel %vm501, %v493, -inf
      %503 = vmax.xlane.f32.xlu0 %v502
      %v504 = vpop.xlane.xlu0 %503
      %v505 = vsel %vm501, %v494, -inf
      %506 = vmax.xlane.f32.xlu0 %v505
      %v507 = vpop.xlane.xlu0 %506
      %v508 = vsel %vm501, %v495, -inf
      %509 = vmax.xlane.f32.xlu0 %v508
      %v510 = vpop.xlane.xlu0 %509
      %v511 = vsel %vm501, %v496, -inf
      %512 = vmax.xlane.f32.xlu0 %v511
      %v513 = vpop.xlane.xlu0 %512
      %v514 = vsel %vm501, %v497, -inf
      %515 = vmax.xlane.f32.xlu0 %v514
      %v516 = vpop.xlane.xlu0 %515
      %v517 = vsel %vm501, %v498, -inf
      %518 = vmax.xlane.f32.xlu0 %v517
      %v519 = vpop.xlane.xlu0 %518
      %v520 = vsel %vm501, %v499, -inf
      %521 = vmax.xlane.f32.xlu0 %v520
      %v522 = vpop.xlane.xlu0 %521
      %v523 = vsel %vm501, %v500, -inf
      %524 = vmax.xlane.f32.xlu0 %v523
      %v525 = vpop.xlane.xlu0 %524
      %v526 = vsub.f32 %v493, %v504
      %v527 = vsub.f32 %v494, %v507
      %v528 = vsub.f32 %v495, %v510
      %v529 = vsub.f32 %v496, %v513
      %v530 = vsub.f32 %v497, %v516
      %v531 = vsub.f32 %v498, %v519
      %v532 = vsub.f32 %v499, %v522
      %v533 = vsub.f32 %v500, %v525
      %v534 = vmul.f32 %v526, 1.442695
      %v535 = vpow.pop %v534
      %v536 = vmul.f32 %v527, 1.442695
      %v537 = vpow.pop %v536
      %v538 = vmul.f32 %v528, 1.442695
      %v539 = vpow.pop %v538
      %v540 = vmul.f32 %v529, 1.442695
      %v541 = vpow.pop %v540
      %v542 = vmul.f32 %v530, 1.442695
      %v543 = vpow.pop %v542
      %v544 = vmul.f32 %v531, 1.442695
      %v545 = vpow.pop %v544
      %v546 = vmul.f32 %v532, 1.442695
      %v547 = vpow.pop %v546
      %v548 = vmul.f32 %v533, 1.442695
      %v549 = vpow.pop %v548
      %v550 = vsel %vm501, %v535, 0.0
      %551 = vadd.xlane.f32.xlu0 %v550
      %v552 = vpop.xlane.xlu0 %551
      %v553 = vsel %vm501, %v537, 0.0
      %554 = vadd.xlane.f32.xlu0 %v553
      %v555 = vpop.xlane.xlu0 %554
      %v556 = vsel %vm501, %v539, 0.0
      %557 = vadd.xlane.f32.xlu0 %v556
      %v558 = vpop.xlane.xlu0 %557
      %v559 = vsel %vm501, %v541, 0.0
      %560 = vadd.xlane.f32.xlu0 %v559
      %v561 = vpop.xlane.xlu0 %560
      %v562 = vsel %vm501, %v543, 0.0
      %563 = vadd.xlane.f32.xlu0 %v562
      %v564 = vpop.xlane.xlu0 %563
      %v565 = vsel %vm501, %v545, 0.0
      %566 = vadd.xlane.f32.xlu0 %v565
      %v567 = vpop.xlane.xlu0 %566
      %v568 = vsel %vm501, %v547, 0.0
      %569 = vadd.xlane.f32.xlu0 %v568
      %v570 = vpop.xlane.xlu0 %569
      %v571 = vsel %vm501, %v549, 0.0
      %572 = vadd.xlane.f32.xlu0 %v571
      %v573 = vpop.xlane.xlu0 %572
      %v574 = vrcp.pop %v552
      %v575 = vrcp.pop %v555
      %v576 = vrcp.pop %v558
      %v577 = vrcp.pop %v561
      %v578 = vrcp.pop %v564
      %v579 = vrcp.pop %v567
      %v580 = vrcp.pop %v570
      %v581 = vrcp.pop %v573
      %v582 = vmul.f32 %v535, %v574
      %v583 = vmul.f32 %v537, %v575
      %v584 = vmul.f32 %v539, %v576
      %v585 = vmul.f32 %v541, %v577
      %v586 = vmul.f32 %v543, %v578
      %v587 = vmul.f32 %v545, %v579
      %v588 = vmul.f32 %v547, %v580
      %v589 = vmul.f32 %v549, %v581
      %v590 = vpack.c.bf16 %v583, %v582
      %v591 = vpack.c.bf16 %v585, %v584
      %v592 = vpack.c.bf16 %v587, %v586
      %v593 = vpack.c.bf16 %v589, %v588
      %v595 = vsel %vm501, %v590, 0
      %597 = vmatprep.subr.bf16.mxu0 0
      %598 = vmatpush1.bf16.msra.mxu0 %v285
      %599 = vmatprep.subr.bf16.mxu0 0
      %600 = vmatpush1.bf16.msra.mxu0 0
      %601 = vmatprep.subr.bf16.mxu0 0
      %602 = vmatpush1.bf16.msra.mxu0 0
      %603 = vmatprep.subr.bf16.mxu0 0
      %604 = vmatpush1.bf16.msra.mxu0 0
      %605 = vmatprep.subr.bf16.mxu0 0
      %606 = vmatpush1.bf16.msra.mxu0 0
      %607 = vmatprep.subr.bf16.mxu0 0
      %608 = vmatpush1.bf16.msra.mxu0 0
      %609 = vmatprep.subr.bf16.mxu0 0
      %610 = vmatpush1.bf16.msra.mxu0 0
      %611 = vmatprep.subr.bf16.mxu0 0
      %612 = vmatpush1.bf16.msra.mxu0 0
      %613 = vmatprep.subr.bf16.mxu0 0
      %614 = vmatpush1.bf16.msra.mxu0 0
      %615 = vmatprep.subr.bf16.mxu0 0
      %616 = vmatpush1.bf16.msra.mxu0 0
      %617 = vmatprep.subr.bf16.mxu0 0
      %618 = vmatpush1.bf16.msra.mxu0 0
      %619 = vmatprep.subr.bf16.mxu0 0
      %620 = vmatpush1.bf16.msra.mxu0 0
      %621 = vmatprep.subr.bf16.mxu0 0
      %622 = vmatpush1.bf16.msra.mxu0 0
      %623 = vmatprep.subr.bf16.mxu0 0
      %624 = vmatpush1.bf16.msra.mxu0 0
      %625 = vmatprep.subr.bf16.mxu0 0
      %626 = vmatpush1.bf16.msra.mxu0 0
      %627 = vmatprep.subr.bf16.mxu0 0
      %628 = vmatpush1.bf16.msra.mxu0 0
      %629 = vmatprep.mubr.bf16.mxu0 0
      %630 = vmatmul.mubr.bf16.gmra.mrb[0].mxu0 %v595
      %v631 = vpop.f32.mrb[0].mxu0
      %v632 = vadd.f32 0.0, %v631
      %v633 = vpop.f32.mrb[0].mxu0
      %v634 = vpop.f32.mrb[0].mxu0
      %v635 = vadd.f32 0.0, %v634
      %v636 = vpop.f32.mrb[0].mxu0
      %637 = vdwg.mxu0
      %v639 = vsel %vm501, %v591, 0
      %641 = vmatprep.subr.bf16.mxu0 0
      %642 = vmatpush1.bf16.msra.mxu0 %v286
      %643 = vmatprep.subr.bf16.mxu0 0
      %644 = vmatpush1.bf16.msra.mxu0 0
      %645 = vmatprep.subr.bf16.mxu0 0
      %646 = vmatpush1.bf16.msra.mxu0 0
      %647 = vmatprep.subr.bf16.mxu0 0
      %648 = vmatpush1.bf16.msra.mxu0 0
      %649 = vmatprep.subr.bf16.mxu0 0
      %650 = vmatpush1.bf16.msra.mxu0 0
      %651 = vmatprep.subr.bf16.mxu0 0
      %652 = vmatpush1.bf16.msra.mxu0 0
      %653 = vmatprep.subr.bf16.mxu0 0
      %654 = vmatpush1.bf16.msra.mxu0 0
      %655 = vmatprep.subr.bf16.mxu0 0
      %656 = vmatpush1.bf16.msra.mxu0 0
      %657 = vmatprep.subr.bf16.mxu0 0
      %658 = vmatpush1.bf16.msra.mxu0 0
      %659 = vmatprep.subr.bf16.mxu0 0
      %660 = vmatpush1.bf16.msra.mxu0 0
      %661 = vmatprep.subr.bf16.mxu0 0
      %662 = vmatpush1.bf16.msra.mxu0 0
      %663 = vmatprep.subr.bf16.mxu0 0
      %664 = vmatpush1.bf16.msra.mxu0 0
      %665 = vmatprep.subr.bf16.mxu0 0
      %666 = vmatpush1.bf16.msra.mxu0 0
      %667 = vmatprep.subr.bf16.mxu0 0
      %668 = vmatpush1.bf16.msra.mxu0 0
      %669 = vmatprep.subr.bf16.mxu0 0
      %670 = vmatpush1.bf16.msra.mxu0 0
      %671 = vmatprep.subr.bf16.mxu0 0
      %672 = vmatpush1.bf16.msra.mxu0 0
      %673 = vmatprep.mubr.bf16.mxu0 0
      %674 = vmatmul.mubr.bf16.gmra.mrb[0].mxu0 %v639
      %v675 = vpop.f32.mrb[0].mxu0
      %v676 = vadd.f32 0.0, %v675
      %v677 = vpop.f32.mrb[0].mxu0
      %v678 = vpop.f32.mrb[0].mxu0
      %v679 = vadd.f32 0.0, %v678
      %v680 = vpop.f32.mrb[0].mxu0
      %681 = vdwg.mxu0
      %v683 = vsel %vm501, %v592, 0
      %685 = vmatprep.subr.bf16.mxu0 0
      %686 = vmatpush1.bf16.msra.mxu0 %v287
      %687 = vmatprep.subr.bf16.mxu0 0
      %688 = vmatpush1.bf16.msra.mxu0 0
      %689 = vmatprep.subr.bf16.mxu0 0
      %690 = vmatpush1.bf16.msra.mxu0 0
      %691 = vmatprep.subr.bf16.mxu0 0
      %692 = vmatpush1.bf16.msra.mxu0 0
      %693 = vmatprep.subr.bf16.mxu0 0
      %694 = vmatpush1.bf16.msra.mxu0 0
      %695 = vmatprep.subr.bf16.mxu0 0
      %696 = vmatpush1.bf16.msra.mxu0 0
      %697 = vmatprep.subr.bf16.mxu0 0
      %698 = vmatpush1.bf16.msra.mxu0 0
      %699 = vmatprep.subr.bf16.mxu0 0
      %700 = vmatpush1.bf16.msra.mxu0 0
      %701 = vmatprep.subr.bf16.mxu0 0
      %702 = vmatpush1.bf16.msra.mxu0 0
      %703 = vmatprep.subr.bf16.mxu0 0
      %704 = vmatpush1.bf16.msra.mxu0 0
      %705 = vmatprep.subr.bf16.mxu0 0
      %706 = vmatpush1.bf16.msra.mxu0 0
      %707 = vmatprep.subr.bf16.mxu0 0
      %708 = vmatpush1.bf16.msra.mxu0 0
      %709 = vmatprep.subr.bf16.mxu0 0
      %710 = vmatpush1.bf16.msra.mxu0 0
      %711 = vmatprep.subr.bf16.mxu0 0
      %712 = vmatpush1.bf16.msra.mxu0 0
      %713 = vmatprep.subr.bf16.mxu0 0
      %714 = vmatpush1.bf16.msra.mxu0 0
      %715 = vmatprep.subr.bf16.mxu0 0
      %716 = vmatpush1.bf16.msra.mxu0 0
      %717 = vmatprep.mubr.bf16.mxu0 0
      %718 = vmatmul.mubr.bf16.gmra.mrb[0].mxu0 %v683
      %v719 = vpop.f32.mrb[0].mxu0
      %v720 = vadd.f32 0.0, %v719
      %v721 = vpop.f32.mrb[0].mxu0
      %v722 = vpop.f32.mrb[0].mxu0
      %v723 = vadd.f32 0.0, %v722
      %v724 = vpop.f32.mrb[0].mxu0
      %725 = vdwg.mxu0
      %v727 = vsel %vm501, %v593, 0
      %729 = vmatprep.subr.bf16.mxu0 0
      %730 = vmatpush1.bf16.msra.mxu0 %v288
      %731 = vmatprep.subr.bf16.mxu0 0
      %732 = vmatpush1.bf16.msra.mxu0 0
      %733 = vmatprep.subr.bf16.mxu0 0
      %734 = vmatpush1.bf16.msra.mxu0 0
      %735 = vmatprep.subr.bf16.mxu0 0
      %736 = vmatpush1.bf16.msra.mxu0 0
      %737 = vmatprep.subr.bf16.mxu0 0
      %738 = vmatpush1.bf16.msra.mxu0 0
      %739 = vmatprep.subr.bf16.mxu0 0
      %740 = vmatpush1.bf16.msra.mxu0 0
      %741 = vmatprep.subr.bf16.mxu0 0
      %742 = vmatpush1.bf16.msra.mxu0 0
      %743 = vmatprep.subr.bf16.mxu0 0
      %744 = vmatpush1.bf16.msra.mxu0 0
      %745 = vmatprep.subr.bf16.mxu0 0
      %746 = vmatpush1.bf16.msra.mxu0 0
      %747 = vmatprep.subr.bf16.mxu0 0
      %748 = vmatpush1.bf16.msra.mxu0 0
      %749 = vmatprep.subr.bf16.mxu0 0
      %750 = vmatpush1.bf16.msra.mxu0 0
      %751 = vmatprep.subr.bf16.mxu0 0
      %752 = vmatpush1.bf16.msra.mxu0 0
      %753 = vmatprep.subr.bf16.mxu0 0
      %754 = vmatpush1.bf16.msra.mxu0 0
      %755 = vmatprep.subr.bf16.mxu0 0
      %756 = vmatpush1.bf16.msra.mxu0 0
      %757 = vmatprep.subr.bf16.mxu0 0
      %758 = vmatpush1.bf16.msra.mxu0 0
      %759 = vmatprep.subr.bf16.mxu0 0
      %760 = vmatpush1.bf16.msra.mxu0 0
      %761 = vmatprep.mubr.bf16.mxu0 0
      %762 = vmatmul.mubr.bf16.gmra.mrb[0].mxu0 %v727
      %v763 = vpop.f32.mrb[0].mxu0
      %v764 = vadd.f32 0.0, %v763
      %v765 = vpop.f32.mrb[0].mxu0
      %v766 = vpop.f32.mrb[0].mxu0
      %v767 = vadd.f32 0.0, %v766
      %v768 = vpop.f32.mrb[0].mxu0
      %769 = vdwg.mxu0
      %770 = vst.msk [vmem:[%s251] sm:$0xff] %vm289, %v632
      %771 = vst.msk [vmem:[%s251 + $0x8] sm:$0xff] %vm289, %v635
      %772 = vst.msk [vmem:[%s251 + $0x10] sm:$0xff] %vm289, %v676
      %773 = vst.msk [vmem:[%s251 + $0x18] sm:$0xff] %vm289, %v679
      %774 = vst.msk [vmem:[%s251 + $0x20] sm:$0xff] %vm289, %v720
      %775 = vst.msk [vmem:[%s251 + $0x28] sm:$0xff] %vm289, %v723
      %776 = vst.msk [vmem:[%s251 + $0x30] sm:$0xff] %vm289, %v764
      %777 = vst.msk [vmem:[%s251 + $0x38] sm:$0xff] %vm289, %v767
      %p778 = scmp.lt.s32.totalorder %s15, 1
      %s779 = scalar_select %p778, %s15, 1
      %s780 = smul.addr %s779, 8
      %s781 = smul.addr %s780, 8
      %s782 = scalar_lea.vmem %s4, %s781
      // Predicated region
      $region37: #{conformer_forward.32} parent=35 // pred_check
        %p783 = pneg %p137
      $region38: #{conformer_forward.32} parent=35 // pred_check_branch
        %785 = sbr.rel (%p783) target = $region40
      $region39: #{conformer_forward.32} parent=35 // pred_region
        _
      $region40: #{conformer_forward.32} parent=35 // pred_fallthru
        _
    $region36: #{conformer_forward.32} parent=5 // pred_fallthru
      _
    %p786 = scmp.le.s32.totalorder 2, %s10
    // Predicated region
    $region41: #{conformer_forward.32} parent=5 // pred_check
      %p787 = pneg %p786
    $region42: #{conformer_forward.32} parent=5 // pred_check_branch
      %789 = sbr.rel (%p787) target = $region44
    $region43: #{conformer_forward.32} parent=5 // pred_region
      %s790 = ssub.s32 %s10, 2
      // Predicated region
      $region45: #{conformer_forward.32} parent=43 // pred_check
        %p791 = pneg %p143
      $region46: #{conformer_forward.32} parent=43 // pred_check_branch
        %793 = sbr.rel (%p791) target = $region48
      $region47: #{conformer_forward.32} parent=43 // pred_region
        %p794 = scmp.lt.s32.totalorder %s16, 1
        %s795 = scalar_select %p794, %s16, 1
        %s796 = smul.addr %s795, 8
        %s797 = smul.addr %s796, 8
        %s798 = scalar_lea.vmem %s4, %s797
      $region48: #{conformer_forward.32} parent=43 // pred_fallthru
        _
    $region44: #{conformer_forward.32} parent=5 // pred_fallthru
      _
  $region6: #{conformer_forward.32} parent=0 // loop_footer
    %s14 = sadd.s32 1, %s10
  $region7: #{conformer_forward.32} parent=0 // loop_footer_branch
    %9 = sbr.rel target = $region3
  $region8: #{conformer_forward.32} parent=0 // loop_exit
    _

// kernel: conformer_forward.34
$region0: #{conformer_forward.34}
  #allocation0 [shape = 'u32[]', space=smem, size = 0x4, offset = 0x4, fixed_abs, tag = 'smem constant byte address 0x4 - core index']
  #allocation1 [shape = 'u32[144,128]{1,0:T(1,128)}', space=vmem, size = 0x12000, scoped, tag = 'internal scratch']
  %s0 = inlined_call_operand.vmem [shape: f32[2,18,32], index: 0, kind: input, shape index: {}]
  %s1 = inlined_call_operand.vmem [shape: f32[1,3,32], index: 1, kind: input, shape index: {}]
  %s2 = inlined_call_operand.vmem [shape: f32[1,1,32], index: 2, kind: input, shape index: {}]
  %s3 = inlined_call_operand.vmem [shape: f32[32,32], index: 3, kind: input, shape index: {}]
  %s4 = inlined_call_operand.vmem [shape: f32[1,32], index: 4, kind: input, shape index: {}]
  %s5 = inlined_call_operand.vmem [shape: f32[2,16,32], index: 5, kind: output, shape index: {}]
  %s6 = sld [smem:[#allocation0]]
  $region53: #{conformer_forward.34} parent=0
    _
  %s8 = ssub.s32 1, %s6
  %s9 = scalar_select 0, %s8, %s6
  loop: start=0, step=1, limit=4
  $region2: #{conformer_forward.34} parent=0 // loop_pre_header
    _
  $region3: #{conformer_forward.34} parent=0 // loop_header
    %s11 = sphi 0, %s15
    %p12 = scmp.ge.s32.totalorder %s11, 4
    %s21 = sphi 0, %s23
    %s24 = sphi 0, %s21
    %s25 = sphi 0, %s24
    %s41 = sphi 0, %s25
    %s45 = sphi 0, %s45
    %s47 = sphi 0, %s45
    %s48 = sphi 0, %s47
    %s62 = sphi 0, %s48
    %s66 = sphi 0, %s66
    %s68 = sphi 0, %s66
    %s69 = sphi 0, %s68
    %s83 = sphi 0, %s69
    %s87 = sphi 0, %s87
    %s89 = sphi 0, %s87
    %s90 = sphi 0, %s89
    %s104 = sphi 0, %s90
    %s108 = sphi 0, %s108
    %s110 = sphi 0, %s108
    %s111 = sphi 0, %s110
    %s125 = sphi 0, %s111
    %s131 = sphi 0, %s133
    %s134 = sphi 0, %s131
    %s135 = sphi 0, %s134
    %s151 = sphi 0, %s135
  $region4: #{conformer_forward.34} parent=0 // loop_header_branch
    %14 = sbr.rel (%p12) target = $region8
  $region5: #{conformer_forward.34} parent=0 // loop_body
    %s16 = ssub.s32 %s11, 1
    %s17 = ssub.s32 %s11, 2
    %s18 = sadd.s32 %s11, 1
    %s19 = ssub.s32 %s11, %s18
    %p20 = scmp.eq.s32.totalorder %s19, 0
    %s22 = sadd.s32 %s21, 1
    %s23 = scalar_select %p20, %s21, %s22
    %p26 = pneg %p20
    %p27 = scmp.eq.s32.totalorder %s11, 1
    %p28 = por %p26, %p27
    %p29 = scmp.ne.s32.totalorder %s21, %s24
    %p30 = scmp.eq.s32.totalorder %s11, 0
    %p31 = por %p29, %p30
    %p32 = scmp.ne.s32.totalorder %s21, %s24
    %p33 = scmp.eq.s32.totalorder %s16, 1
    %p34 = por %p32, %p33
    %p35 = scmp.ne.s32.totalorder %s24, %s25
    %p36 = scmp.eq.s32.totalorder %s16, 0
    %p37 = por %p35, %p36
    %p38 = scmp.ne.s32.totalorder %s24, %s25
    %p39 = scmp.eq.s32.totalorder %s17, 1
    %p40 = por %p38, %p39
    %p42 = scmp.ne.s32.totalorder %s25, %s41
    %p43 = scmp.eq.s32.totalorder %s17, 0
    %p44 = por %p42, %p43
    %s46 = sadd.s32 %s45, 1
    %p49 = scmp.eq.s32.totalorder %s11, 1
    %p50 = scmp.ne.s32.totalorder %s45, %s47
    %p51 = scmp.eq.s32.totalorder %s11, 0
    %p52 = por %p50, %p51
    %p53 = scmp.ne.s32.totalorder %s45, %s47
    %p54 = scmp.eq.s32.totalorder %s16, 1
    %p55 = por %p53, %p54
    %p56 = scmp.ne.s32.totalorder %s47, %s48
    %p57 = scmp.eq.s32.totalorder %s16, 0
    %p58 = por %p56, %p57
    %p59 = scmp.ne.s32.totalorder %s47, %s48
    %p60 = scmp.eq.s32.totalorder %s17, 1
    %p61 = por %p59, %p60
    %p63 = scmp.ne.s32.totalorder %s48, %s62
    %p64 = scmp.eq.s32.totalorder %s17, 0
    %p65 = por %p63, %p64
    %s67 = sadd.s32 %s66, 1
    %p70 = scmp.eq.s32.totalorder %s11, 1
    %p71 = scmp.ne.s32.totalorder %s66, %s68
    %p72 = scmp.eq.s32.totalorder %s11, 0
    %p73 = por %p71, %p72
    %p74 = scmp.ne.s32.totalorder %s66, %s68
    %p75 = scmp.eq.s32.totalorder %s16, 1
    %p76 = por %p74, %p75
    %p77 = scmp.ne.s32.totalorder %s68, %s69
    %p78 = scmp.eq.s32.totalorder %s16, 0
    %p79 = por %p77, %p78
    %p80 = scmp.ne.s32.totalorder %s68, %s69
    %p81 = scmp.eq.s32.totalorder %s17, 1
    %p82 = por %p80, %p81
    %p84 = scmp.ne.s32.totalorder %s69, %s83
    %p85 = scmp.eq.s32.totalorder %s17, 0
    %p86 = por %p84, %p85
    %s88 = sadd.s32 %s87, 1
    %p91 = scmp.eq.s32.totalorder %s11, 1
    %p92 = scmp.ne.s32.totalorder %s87, %s89
    %p93 = scmp.eq.s32.totalorder %s11, 0
    %p94 = por %p92, %p93
    %p95 = scmp.ne.s32.totalorder %s87, %s89
    %p96 = scmp.eq.s32.totalorder %s16, 1
    %p97 = por %p95, %p96
    %p98 = scmp.ne.s32.totalorder %s89, %s90
    %p99 = scmp.eq.s32.totalorder %s16, 0
    %p100 = por %p98, %p99
    %p101 = scmp.ne.s32.totalorder %s89, %s90
    %p102 = scmp.eq.s32.totalorder %s17, 1
    %p103 = por %p101, %p102
    %p105 = scmp.ne.s32.totalorder %s90, %s104
    %p106 = scmp.eq.s32.totalorder %s17, 0
    %p107 = por %p105, %p106
    %s109 = sadd.s32 %s108, 1
    %p112 = scmp.eq.s32.totalorder %s11, 1
    %p113 = scmp.ne.s32.totalorder %s108, %s110
    %p114 = scmp.eq.s32.totalorder %s11, 0
    %p115 = por %p113, %p114
    %p116 = scmp.ne.s32.totalorder %s108, %s110
    %p117 = scmp.eq.s32.totalorder %s16, 1
    %p118 = por %p116, %p117
    %p119 = scmp.ne.s32.totalorder %s110, %s111
    %p120 = scmp.eq.s32.totalorder %s16, 0
    %p121 = por %p119, %p120
    %p122 = scmp.ne.s32.totalorder %s110, %s111
    %p123 = scmp.eq.s32.totalorder %s17, 1
    %p124 = por %p122, %p123
    %p126 = scmp.ne.s32.totalorder %s111, %s125
    %p127 = scmp.eq.s32.totalorder %s17, 0
    %p128 = por %p126, %p127
    %s129 = ssub.s32 %s11, %s18
    %p130 = scmp.eq.s32.totalorder %s129, 0
    %s132 = sadd.s32 %s131, 1
    %s133 = scalar_select %p130, %s131, %s132
    %p136 = pneg %p130
    %p137 = scmp.eq.s32.totalorder %s11, 1
    %p138 = por %p136, %p137
    %p139 = scmp.ne.s32.totalorder %s131, %s134
    %p140 = scmp.eq.s32.totalorder %s11, 0
    %p141 = por %p139, %p140
    %p142 = scmp.ne.s32.totalorder %s131, %s134
    %p143 = scmp.eq.s32.totalorder %s16, 1
    %p144 = por %p142, %p143
    %p145 = scmp.ne.s32.totalorder %s134, %s135
    %p146 = scmp.eq.s32.totalorder %s16, 0
    %p147 = por %p145, %p146
    %p148 = scmp.ne.s32.totalorder %s134, %s135
    %p149 = scmp.eq.s32.totalorder %s17, 1
    %p150 = por %p148, %p149
    %p152 = scmp.ne.s32.totalorder %s135, %s151
    %p153 = scmp.eq.s32.totalorder %s17, 0
    %p154 = por %p152, %p153
    %p155 = scmp.le.s32.totalorder 1, %s11
    %p156 = scmp.lt.s32.totalorder %s11, 3
    %p157 = pnand %p155, %p156
    %p158 = pneg %p157
    // Predicated region
    $region9: #{conformer_forward.34} parent=5 // pred_check
      _
    $region10: #{conformer_forward.34} parent=5 // pred_check_branch
      %160 = sbr.rel (%p157) target = $region12
    $region11: #{conformer_forward.34} parent=5 // pred_region
      %s161 = ssub.s32 %s11, 1
      // Predicated region
      $region13: #{conformer_forward.34} parent=11 // pred_check
        %p162 = pneg %p58
      $region14: #{conformer_forward.34} parent=11 // pred_check_branch
        %164 = sbr.rel (%p162) target = $region16
      $region15: #{conformer_forward.34} parent=11 // pred_region
        _
      $region16: #{conformer_forward.34} parent=11 // pred_fallthru
        _
      // Predicated region
      $region17: #{conformer_forward.34} parent=11 // pred_check
        %p165 = pneg %p79
      $region18: #{conformer_forward.34} parent=11 // pred_check_branch
        %167 = sbr.rel (%p165) target = $region20
      $region19: #{conformer_forward.34} parent=11 // pred_region
        _
      $region20: #{conformer_forward.34} parent=11 // pred_fallthru
        _
      // Predicated region
      $region21: #{conformer_forward.34} parent=11 // pred_check
        %p168 = pneg %p100
      $region22: #{conformer_forward.34} parent=11 // pred_check_branch
        %170 = sbr.rel (%p168) target = $region24
      $region23: #{conformer_forward.34} parent=11 // pred_region
        _
      $region24: #{conformer_forward.34} parent=11 // pred_fallthru
        _
      // Predicated region
      $region25: #{conformer_forward.34} parent=11 // pred_check
        %p171 = pneg %p121
      $region26: #{conformer_forward.34} parent=11 // pred_check_branch
        %173 = sbr.rel (%p171) target = $region28
      $region27: #{conformer_forward.34} parent=11 // pred_region
        _
      $region28: #{conformer_forward.34} parent=11 // pred_fallthru
        _
    $region12: #{conformer_forward.34} parent=5 // pred_fallthru
      _
    %p174 = scmp.lt.s32.totalorder %s11, 2
    // Predicated region
    $region29: #{conformer_forward.34} parent=5 // pred_check
      %p175 = pneg %p174
    $region30: #{conformer_forward.34} parent=5 // pred_check_branch
      %177 = sbr.rel (%p175) target = $region32
    $region31: #{conformer_forward.34} parent=5 // pred_region
      // Predicated region
      $region33: #{conformer_forward.34} parent=31 // pred_check
        %p178 = pneg %p31
      $region34: #{conformer_forward.34} parent=31 // pred_check_branch
        %180 = sbr.rel (%p178) target = $region36
      $region35: #{conformer_forward.34} parent=31 // pred_region
        %p181 = scmp.lt.s32.totalorder %s11, 1
        %s182 = scalar_select %p181, %s11, 1
        %s183 = smul.addr %s182, 3
        %s184 = smul.addr %s183, 8
        %s185 = scalar_lea.vmem %s0, %s184
      $region36: #{conformer_forward.34} parent=31 // pred_fallthru
        _
    $region32: #{conformer_forward.34} parent=5 // pred_fallthru
      _
    %p186 = scmp.le.s32.totalorder 1, %s11
    %p187 = scmp.lt.s32.totalorder %s11, 3
    %p188 = pnand %p186, %p187
    %p189 = pneg %p188
    // Predicated region
    $region37: #{conformer_forward.34} parent=5 // pred_check
      _
    $region38: #{conformer_forward.34} parent=5 // pred_check_branch
      %191 = sbr.rel (%p188) target = $region40
    $region39: #{conformer_forward.34} parent=5 // pred_region
      %s192 = ssub.s32 %s11, 1
      %p193 = scmp.lt.s32.totalorder %s16, 1
      %s194 = scalar_select %p193, %s16, 1
      %s195 = smul.addr %s194, 3
      %s196 = smul.addr %s195, 8
      %s197 = scalar_lea.vmem %s0, %s196
      %p198 = pneg %p37
      %p199 = pneg %p34
      %p200 = pneg %p58
      %p201 = pneg %p55
      %p202 = pneg %p79
      %p203 = pneg %p76
      %p204 = pneg %p100
      %p205 = pneg %p97
      %p206 = pneg %p121
      %p207 = pneg %p118
      %p208 = pneg %p147
      %p209 = pneg %p144
      %p210 = scmp.lt.s32.totalorder %s16, 1
      %s211 = scalar_select %p210, %s16, 1
      %s212 = smul.addr %s211, 2
      %s213 = smul.addr %s212, 8
      %s214 = scalar_lea.vmem %s5, %s213
      %p215 = scmp.lt.s32.totalorder %s16, 1
      %s216 = scalar_select %p215, %s16, 1
      %s217 = smul.addr %s216, 3
      %s218 = smul.addr %s217, 8
      %s219 = scalar_lea.vmem %s0, %s218
      %p220 = scmp.lt.s32.totalorder %s16, 1
      %s221 = scalar_select %p220, %s16, 1
      %s222 = smul.addr %s221, 2
      %s223 = smul.addr %s222, 8
      %s224 = scalar_lea.vmem %s5, %s223
      %v226 = vld [vmem:[%s219] sm:$0xff]
      %v227 = vld [vmem:[%s219 + $0x8] sm:$0xff]
      %v228 = vld [vmem:[%s219 + $0x10] sm:$0x3]
      %v229 = vld [vmem:[%s1] sm:$0x7]
      %v230 = vlaneseq
      %v231 = vshrl.u32 %v230, 7
      %v232 = vsub.s32 0, %v231
      %v233 = vrot.slane %v229, %v232
      %v234 = vmul.f32 %v226, %v233
      %v235 = vmul.f32 %v227, %v233
      %v236 = vlaneseq
      %v237 = vshrl.u32 %v236, 7
      %v238 = vsub.s32 1, %v237
      %v239 = vrot.slane %v229, %v238
      %v240 = vmul.f32 %v226, %v239
      %v241 = vmul.f32 %v227, %v239
      %v242 = vmul.f32 %v228, %v239
      %vm246 = vcmask 1046528
      %v247 = vrot.slane %v240, 1
      %v248 = vrot.slane %v241, 1
      %v249 = vsel %vm246, %v247, %v248
      %v250 = vrot.slane %v242, 1
      %v251 = vsel %vm246, %v248, %v250
      %v254 = vadd.f32 %v234, %v249
      %v255 = vadd.f32 %v235, %v251
      %v256 = vlaneseq
      %v257 = vshrl.u32 %v256, 7
      %v258 = vsub.s32 2, %v257
      %v259 = vrot.slane %v229, %v258
      %v260 = vmul.f32 %v226, %v259
      %v261 = vmul.f32 %v227, %v259
      %v262 = vmul.f32 %v228, %v259
      %vm266 = vcmask 1045504
      %v267 = vrot.slane %v260, 2
      %v268 = vrot.slane %v261, 2
      %v269 = vsel %vm266, %v267, %v268
      %v270 = vrot.slane %v262, 2
      %v271 = vsel %vm266, %v268, %v270
      %v274 = vadd.f32 %v254, %v269
      %v275 = vadd.f32 %v255, %v271
      %v276 = vld [vmem:[%s2] sm:$0x1]
      %v278 = vlaneseq
      %v279 = vshrl.u32 %v278, 7
      %v280 = vsub.s32 0, %v279
      %v281 = vrot.slane %v276, %v280
      %v283 = vadd.f32 %v274, %v281
      %v284 = vadd.f32 %v275, %v281
      %v285 = vpack.c.bf16 %v284, %v283
      %v286 = vld [vmem:[%s3] sm:$0xff]
      %v287 = vld [vmem:[%s3 + $0x8] sm:$0xff]
      %v288 = vld [vmem:[%s3 + $0x10] sm:$0xff]
      %v289 = vld [vmem:[%s3 + $0x18] sm:$0xff]
      %v290 = vpack.c.bf16 %v287, %v286
      %v291 = vpack.c.bf16 %v289, %v288
      %v292 = vld [vmem:[%s4] sm:$0x1]
      %v294 = vlaneseq
      %v295 = vshrl.u32 %v294, 7
      %v296 = vsub.s32 0, %v295
      %v297 = vrot.slane %v292, %v296
      %vm299 = vcmask 261120
      %v301 = vsel %vm299, %v285, 0
      %303 = vmatprep.subr.bf16.mxu0 0
      %304 = vmatpush1.bf16.msra.mxu0 %v290
      %305 = vmatprep.subr.bf16.mxu0 0
      %306 = vmatpush1.bf16.msra.mxu0 %v291
      %307 = vmatprep.subr.bf16.mxu0 0
      %308 = vmatpush1.bf16.msra.mxu0 0
      %309 = vmatprep.subr.bf16.mxu0 0
      %310 = vmatpush1.bf16.msra.mxu0 0
      %311 = vmatprep.subr.bf16.mxu0 0
      %312 = vmatpush1.bf16.msra.mxu0 0
      %313 = vmatprep.subr.bf16.mxu0 0
      %314 = vmatpush1.bf16.msra.mxu0 0
      %315 = vmatprep.subr.bf16.mxu0 0
      %316 = vmatpush1.bf16.msra.mxu0 0
      %317 = vmatprep.subr.bf16.mxu0 0
      %318 = vmatpush1.bf16.msra.mxu0 0
      %319 = vmatprep.subr.bf16.mxu0 0
      %320 = vmatpush1.bf16.msra.mxu0 0
      %321 = vmatprep.subr.bf16.mxu0 0
      %322 = vmatpush1.bf16.msra.mxu0 0
      %323 = vmatprep.subr.bf16.mxu0 0
      %324 = vmatpush1.bf16.msra.mxu0 0
      %325 = vmatprep.subr.bf16.mxu0 0
      %326 = vmatpush1.bf16.msra.mxu0 0
      %327 = vmatprep.subr.bf16.mxu0 0
      %328 = vmatpush1.bf16.msra.mxu0 0
      %329 = vmatprep.subr.bf16.mxu0 0
      %330 = vmatpush1.bf16.msra.mxu0 0
      %331 = vmatprep.subr.bf16.mxu0 0
      %332 = vmatpush1.bf16.msra.mxu0 0
      %333 = vmatprep.subr.bf16.mxu0 0
      %334 = vmatpush1.bf16.msra.mxu0 0
      %335 = vmatprep.mubr.bf16.mxu0 0
      %336 = vmatmul.mubr.bf16.gmra.mrb[0].mxu0 %v301
      %v337 = vpop.f32.mrb[0].mxu0
      %v338 = vadd.f32 %v297, %v337
      %v339 = vpop.f32.mrb[0].mxu0
      %v340 = vpop.f32.mrb[0].mxu0
      %v341 = vadd.f32 %v297, %v340
      %v342 = vpop.f32.mrb[0].mxu0
      %343 = vdwg.mxu0
      %v344 = vmax.f32 %v338, 0.0
      %v345 = vmax.f32 %v341, 0.0
      %346 = vst.msk [vmem:[%s224] sm:$0xff] %vm299, %v344
      %347 = vst.msk [vmem:[%s224 + $0x8] sm:$0xff] %vm299, %v345
      %p348 = scmp.lt.s32.totalorder %s16, 1
      %s349 = scalar_select %p348, %s16, 1
      %s350 = smul.addr %s349, 2
      %s351 = smul.addr %s350, 8
      %s352 = scalar_lea.vmem %s5, %s351
      // Predicated region
      $region41: #{conformer_forward.34} parent=39 // pred_check
        %p353 = pneg %p144
      $region42: #{conformer_forward.34} parent=39 // pred_check_branch
        %355 = sbr.rel (%p353) target = $region44
      $region43: #{conformer_forward.34} parent=39 // pred_region
        _
      $region44: #{conformer_forward.34} parent=39 // pred_fallthru
        _
    $region40: #{conformer_forward.34} parent=5 // pred_fallthru
      _
    %p356 = scmp.le.s32.totalorder 2, %s11
    // Predicated region
    $region45: #{conformer_forward.34} parent=5 // pred_check
      %p357 = pneg %p356
    $region46: #{conformer_forward.34} parent=5 // pred_check_branch
      %359 = sbr.rel (%p357) target = $region48
    $region47: #{conformer_forward.34} parent=5 // pred_region
      %s360 = ssub.s32 %s11, 2
      // Predicated region
      $region49: #{conformer_forward.34} parent=47 // pred_check
        %p361 = pneg %p150
      $region50: #{conformer_forward.34} parent=47 // pred_check_branch
        %363 = sbr.rel (%p361) target = $region52
      $region51: #{conformer_forward.34} parent=47 // pred_region
        %p364 = scmp.lt.s32.totalorder %s17, 1
        %s365 = scalar_select %p364, %s17, 1
        %s366 = smul.addr %s365, 2
        %s367 = smul.addr %s366, 8
        %s368 = scalar_lea.vmem %s5, %s367
      $region52: #{conformer_forward.34} parent=47 // pred_fallthru
        _
    $region48: #{conformer_forward.34} parent=5 // pred_fallthru
      _
  $region6: #{conformer_forward.34} parent=0 // loop_footer
    %s15 = sadd.s32 1, %s11
  $region7: #{conformer_forward.34} parent=0 // loop_footer_branch
    %10 = sbr.rel target = $region3
  $region8: #{conformer_forward.34} parent=0 // loop_exit
    _

// kernel: conformer_forward.47
$region0: #{conformer_forward.47}
  #allocation0 [shape = 'u32[]', space=smem, size = 0x4, offset = 0x4, fixed_abs, tag = 'smem constant byte address 0x4 - core index']
  #allocation1 [shape = 'u32[144,128]{1,0:T(1,128)}', space=vmem, size = 0x12000, scoped, tag = 'internal scratch']
  %s0 = inlined_call_operand.vmem [shape: f32[32,64], index: 0, kind: input, shape index: {}]
  %s1 = inlined_call_operand.vmem [shape: f32[64,64], index: 1, kind: input, shape index: {}]
  %s2 = inlined_call_operand.vmem [shape: f32[1,64], index: 2, kind: input, shape index: {}]
  %s3 = inlined_call_operand.vmem [shape: f32[32,64], index: 3, kind: output, shape index: {}]
  %s4 = sld [smem:[#allocation0]]
  $region22: #{conformer_forward.47} parent=0
    _
  %s6 = ssub.s32 1, %s4
  %s7 = scalar_select 0, %s6, %s4
  // Predicated region
  $region2: #{conformer_forward.47} parent=0 // pred_check
    _
  $region3: #{conformer_forward.47} parent=0 // pred_check_branch
    %9 = sbr.rel (0) target = $region5
  $region4: #{conformer_forward.47} parent=0 // pred_region
    _
  $region5: #{conformer_forward.47} parent=0 // pred_fallthru
    _
  // Predicated region
  $region6: #{conformer_forward.47} parent=0 // pred_check
    _
  $region7: #{conformer_forward.47} parent=0 // pred_check_branch
    %11 = sbr.rel (0) target = $region9
  $region8: #{conformer_forward.47} parent=0 // pred_region
    _
  $region9: #{conformer_forward.47} parent=0 // pred_fallthru
    _
  // Predicated region
  $region10: #{conformer_forward.47} parent=0 // pred_check
    _
  $region11: #{conformer_forward.47} parent=0 // pred_check_branch
    %13 = sbr.rel (0) target = $region13
  $region12: #{conformer_forward.47} parent=0 // pred_region
    _
  $region13: #{conformer_forward.47} parent=0 // pred_fallthru
    _
  %v15 = vld [vmem:[%s0] sm:$0xff]
  %v16 = vld [vmem:[%s0 + $0x8] sm:$0xff]
  %v17 = vld [vmem:[%s0 + $0x10] sm:$0xff]
  %v18 = vld [vmem:[%s0 + $0x18] sm:$0xff]
  %v19 = vpack.c.bf16 %v16, %v15
  %v20 = vpack.c.bf16 %v18, %v17
  %v21 = vld [vmem:[%s1] sm:$0xff]
  %v22 = vld [vmem:[%s1 + $0x8] sm:$0xff]
  %v23 = vld [vmem:[%s1 + $0x10] sm:$0xff]
  %v24 = vld [vmem:[%s1 + $0x18] sm:$0xff]
  %v25 = vld [vmem:[%s1 + $0x20] sm:$0xff]
  %v26 = vld [vmem:[%s1 + $0x28] sm:$0xff]
  %v27 = vld [vmem:[%s1 + $0x30] sm:$0xff]
  %v28 = vld [vmem:[%s1 + $0x38] sm:$0xff]
  %v29 = vpack.c.bf16 %v22, %v21
  %v30 = vpack.c.bf16 %v24, %v23
  %v31 = vpack.c.bf16 %v26, %v25
  %v32 = vpack.c.bf16 %v28, %v27
  %v33 = vld [vmem:[%s2] sm:$0x1]
  %v35 = vlaneseq
  %v36 = vshrl.u32 %v35, 7
  %v37 = vsub.s32 0, %v36
  %v38 = vrot.slane %v33, %v37
  %vm40 = vcmask 523264
  %v42 = vsel %vm40, %v19, 0
  %v45 = vsel %vm40, %v20, 0
  %47 = vmatprep.subr.bf16.mxu0 0
  %48 = vmatpush1.bf16.msra.mxu0 %v29
  %49 = vmatprep.subr.bf16.mxu0 0
  %50 = vmatpush1.bf16.msra.mxu0 %v30
  %51 = vmatprep.subr.bf16.mxu0 0
  %52 = vmatpush1.bf16.msra.mxu0 %v31
  %53 = vmatprep.subr.bf16.mxu0 0
  %54 = vmatpush1.bf16.msra.mxu0 %v32
  %55 = vmatprep.subr.bf16.mxu0 0
  %56 = vmatpush1.bf16.msra.mxu0 0
  %57 = vmatprep.subr.bf16.mxu0 0
  %58 = vmatpush1.bf16.msra.mxu0 0
  %59 = vmatprep.subr.bf16.mxu0 0
  %60 = vmatpush1.bf16.msra.mxu0 0
  %61 = vmatprep.subr.bf16.mxu0 0
  %62 = vmatpush1.bf16.msra.mxu0 0
  %63 = vmatprep.subr.bf16.mxu0 0
  %64 = vmatpush1.bf16.msra.mxu0 0
  %65 = vmatprep.subr.bf16.mxu0 0
  %66 = vmatpush1.bf16.msra.mxu0 0
  %67 = vmatprep.subr.bf16.mxu0 0
  %68 = vmatpush1.bf16.msra.mxu0 0
  %69 = vmatprep.subr.bf16.mxu0 0
  %70 = vmatpush1.bf16.msra.mxu0 0
  %71 = vmatprep.subr.bf16.mxu0 0
  %72 = vmatpush1.bf16.msra.mxu0 0
  %73 = vmatprep.subr.bf16.mxu0 0
  %74 = vmatpush1.bf16.msra.mxu0 0
  %75 = vmatprep.subr.bf16.mxu0 0
  %76 = vmatpush1.bf16.msra.mxu0 0
  %77 = vmatprep.subr.bf16.mxu0 0
  %78 = vmatpush1.bf16.msra.mxu0 0
  %79 = vmatprep.mubr.bf16.mxu0 0
  %80 = vmatmul.mubr.bf16.gmra.mrb[0].mxu0 %v42
  %v81 = vpop.f32.mrb[0].mxu0
  %v82 = vadd.f32 %v38, %v81
  %v83 = vpop.f32.mrb[0].mxu0
  %v84 = vpop.f32.mrb[0].mxu0
  %v85 = vadd.f32 %v38, %v84
  %v86 = vpop.f32.mrb[0].mxu0
  %87 = vmatprep.mubr.bf16.mxu0 0
  %88 = vmatmul.mubr.bf16.gmra.mrb[0].mxu0 %v45
  %v89 = vpop.f32.mrb[0].mxu0
  %v90 = vadd.f32 %v38, %v89
  %v91 = vpop.f32.mrb[0].mxu0
  %v92 = vpop.f32.mrb[0].mxu0
  %v93 = vadd.f32 %v38, %v92
  %v94 = vpop.f32.mrb[0].mxu0
  %95 = vdwg.mxu0
  %v96 = vmax.f32 %v82, 0.0
  %v97 = vmax.f32 %v85, 0.0
  %v98 = vmax.f32 %v90, 0.0
  %v99 = vmax.f32 %v93, 0.0
  %100 = vst.msk [vmem:[%s3] sm:$0xff] %vm40, %v96
  %101 = vst.msk [vmem:[%s3 + $0x8] sm:$0xff] %vm40, %v97
  %102 = vst.msk [vmem:[%s3 + $0x10] sm:$0xff] %vm40, %v98
  %103 = vst.msk [vmem:[%s3 + $0x18] sm:$0xff] %vm40, %v99
  // Predicated region
  $region14: #{conformer_forward.47} parent=0 // pred_check
    _
  $region15: #{conformer_forward.47} parent=0 // pred_check_branch
    %105 = sbr.rel (0) target = $region17
  $region16: #{conformer_forward.47} parent=0 // pred_region
    _
  $region17: #{conformer_forward.47} parent=0 // pred_fallthru
    _
  // Predicated region
  $region18: #{conformer_forward.47} parent=0 // pred_check
    _
  $region19: #{conformer_forward.47} parent=0 // pred_check_branch
    %107 = sbr.rel (0) target = $region21
  $region20: #{conformer_forward.47} parent=0 // pred_region
    _
  $region21: #{conformer_forward.47} parent=0 // pred_fallthru
    _

// kernel: conformer_forward.48
$region0: #{conformer_forward.48}
  #allocation0 [shape = 'u32[]', space=smem, size = 0x4, offset = 0x4, fixed_abs, tag = 'smem constant byte address 0x4 - core index']
  #allocation1 [shape = 'u32[144,128]{1,0:T(1,128)}', space=vmem, size = 0x12000, scoped, tag = 'internal scratch']
  %s0 = inlined_call_operand.vmem [shape: f32[32,64], index: 0, kind: input, shape index: {}]
  %s1 = inlined_call_operand.vmem [shape: f32[64,8], index: 1, kind: input, shape index: {}]
  %s2 = inlined_call_operand.vmem [shape: f32[1,8], index: 2, kind: input, shape index: {}]
  %s3 = inlined_call_operand.vmem [shape: f32[32,8], index: 3, kind: output, shape index: {}]
  %s4 = sld [smem:[#allocation0]]
  $region22: #{conformer_forward.48} parent=0
    _
  %s6 = ssub.s32 1, %s4
  %s7 = scalar_select 0, %s6, %s4
  // Predicated region
  $region2: #{conformer_forward.48} parent=0 // pred_check
    _
  $region3: #{conformer_forward.48} parent=0 // pred_check_branch
    %9 = sbr.rel (0) target = $region5
  $region4: #{conformer_forward.48} parent=0 // pred_region
    _
  $region5: #{conformer_forward.48} parent=0 // pred_fallthru
    _
  // Predicated region
  $region6: #{conformer_forward.48} parent=0 // pred_check
    _
  $region7: #{conformer_forward.48} parent=0 // pred_check_branch
    %11 = sbr.rel (0) target = $region9
  $region8: #{conformer_forward.48} parent=0 // pred_region
    _
  $region9: #{conformer_forward.48} parent=0 // pred_fallthru
    _
  // Predicated region
  $region10: #{conformer_forward.48} parent=0 // pred_check
    _
  $region11: #{conformer_forward.48} parent=0 // pred_check_branch
    %13 = sbr.rel (0) target = $region13
  $region12: #{conformer_forward.48} parent=0 // pred_region
    _
  $region13: #{conformer_forward.48} parent=0 // pred_fallthru
    _
  %v15 = vld [vmem:[%s0] sm:$0xff]
  %v16 = vld [vmem:[%s0 + $0x8] sm:$0xff]
  %v17 = vld [vmem:[%s0 + $0x10] sm:$0xff]
  %v18 = vld [vmem:[%s0 + $0x18] sm:$0xff]
  %v19 = vpack.c.bf16 %v16, %v15
  %v20 = vpack.c.bf16 %v18, %v17
  %v21 = vld [vmem:[%s1] sm:$0xff]
  %v22 = vld [vmem:[%s1 + $0x8] sm:$0xff]
  %v23 = vld [vmem:[%s1 + $0x10] sm:$0xff]
  %v24 = vld [vmem:[%s1 + $0x18] sm:$0xff]
  %v25 = vld [vmem:[%s1 + $0x20] sm:$0xff]
  %v26 = vld [vmem:[%s1 + $0x28] sm:$0xff]
  %v27 = vld [vmem:[%s1 + $0x30] sm:$0xff]
  %v28 = vld [vmem:[%s1 + $0x38] sm:$0xff]
  %v29 = vpack.c.bf16 %v22, %v21
  %v30 = vpack.c.bf16 %v24, %v23
  %v31 = vpack.c.bf16 %v26, %v25
  %v32 = vpack.c.bf16 %v28, %v27
  %v33 = vld [vmem:[%s2] sm:$0x1]
  %v35 = vlaneseq
  %v36 = vshrl.u32 %v35, 7
  %v37 = vsub.s32 0, %v36
  %v38 = vrot.slane %v33, %v37
  %vm40 = vcmask 523264
  %v42 = vsel %vm40, %v19, 0
  %v45 = vsel %vm40, %v20, 0
  %47 = vmatprep.subr.bf16.mxu0 0
  %48 = vmatpush1.bf16.msra.mxu0 %v29
  %49 = vmatprep.subr.bf16.mxu0 0
  %50 = vmatpush1.bf16.msra.mxu0 %v30
  %51 = vmatprep.subr.bf16.mxu0 0
  %52 = vmatpush1.bf16.msra.mxu0 %v31
  %53 = vmatprep.subr.bf16.mxu0 0
  %54 = vmatpush1.bf16.msra.mxu0 %v32
  %55 = vmatprep.subr.bf16.mxu0 0
  %56 = vmatpush1.bf16.msra.mxu0 0
  %57 = vmatprep.subr.bf16.mxu0 0
  %58 = vmatpush1.bf16.msra.mxu0 0
  %59 = vmatprep.subr.bf16.mxu0 0
  %60 = vmatpush1.bf16.msra.mxu0 0
  %61 = vmatprep.subr.bf16.mxu0 0
  %62 = vmatpush1.bf16.msra.mxu0 0
  %63 = vmatprep.subr.bf16.mxu0 0
  %64 = vmatpush1.bf16.msra.mxu0 0
  %65 = vmatprep.subr.bf16.mxu0 0
  %66 = vmatpush1.bf16.msra.mxu0 0
  %67 = vmatprep.subr.bf16.mxu0 0
  %68 = vmatpush1.bf16.msra.mxu0 0
  %69 = vmatprep.subr.bf16.mxu0 0
  %70 = vmatpush1.bf16.msra.mxu0 0
  %71 = vmatprep.subr.bf16.mxu0 0
  %72 = vmatpush1.bf16.msra.mxu0 0
  %73 = vmatprep.subr.bf16.mxu0 0
  %74 = vmatpush1.bf16.msra.mxu0 0
  %75 = vmatprep.subr.bf16.mxu0 0
  %76 = vmatpush1.bf16.msra.mxu0 0
  %77 = vmatprep.subr.bf16.mxu0 0
  %78 = vmatpush1.bf16.msra.mxu0 0
  %79 = vmatprep.mubr.bf16.mxu0 0
  %80 = vmatmul.mubr.bf16.gmra.mrb[0].mxu0 %v42
  %v81 = vpop.f32.mrb[0].mxu0
  %v82 = vadd.f32 %v38, %v81
  %v83 = vpop.f32.mrb[0].mxu0
  %v84 = vpop.f32.mrb[0].mxu0
  %v85 = vadd.f32 %v38, %v84
  %v86 = vpop.f32.mrb[0].mxu0
  %87 = vmatprep.mubr.bf16.mxu0 0
  %88 = vmatmul.mubr.bf16.gmra.mrb[0].mxu0 %v45
  %v89 = vpop.f32.mrb[0].mxu0
  %v90 = vadd.f32 %v38, %v89
  %v91 = vpop.f32.mrb[0].mxu0
  %v92 = vpop.f32.mrb[0].mxu0
  %v93 = vadd.f32 %v38, %v92
  %v94 = vpop.f32.mrb[0].mxu0
  %95 = vdwg.mxu0
  %vm96 = vcmask 64512
  %97 = vst.msk [vmem:[%s3] sm:$0xff] %vm96, %v82
  %98 = vst.msk [vmem:[%s3 + $0x8] sm:$0xff] %vm96, %v85
  %99 = vst.msk [vmem:[%s3 + $0x10] sm:$0xff] %vm96, %v90
  %100 = vst.msk [vmem:[%s3 + $0x18] sm:$0xff] %vm96, %v93
  // Predicated region
  $region14: #{conformer_forward.48} parent=0 // pred_check
    _
  $region15: #{conformer_forward.48} parent=0 // pred_check_branch
    %102 = sbr.rel (0) target = $region17
  $region16: #{conformer_forward.48} parent=0 // pred_region
    _
  $region17: #{conformer_forward.48} parent=0 // pred_fallthru
    _
  // Predicated region
  $region18: #{conformer_forward.48} parent=0 // pred_check
    _
  $region19: #{conformer_forward.48} parent=0 // pred_check_branch
    %104 = sbr.rel (0) target = $region21
  $region20: #{conformer_forward.48} parent=0 // pred_region
    _
  $region21: #{conformer_forward.48} parent=0 // pred_fallthru
    _

// kernel: conformer_forward.49
$region0: #{conformer_forward.49}
  #allocation0 [shape = 'u32[]', space=smem, size = 0x4, offset = 0x4, fixed_abs, tag = 'smem constant byte address 0x4 - core index']
  #allocation1 [shape = 'u32[144,128]{1,0:T(1,128)}', space=vmem, size = 0x12000, scoped, tag = 'internal scratch']
  %s0 = inlined_call_operand.vmem [shape: f32[2,16,8,1], index: 0, kind: input, shape index: {}]
  %s1 = inlined_call_operand.vmem [shape: f32[2,16,8,1], index: 1, kind: input, shape index: {}]
  %s2 = inlined_call_operand.vmem [shape: f32[2,16,32], index: 2, kind: input, shape index: {}]
  %s3 = inlined_call_operand.vmem [shape: f32[32,16], index: 3, kind: input, shape index: {}]
  %s4 = inlined_call_operand.vmem [shape: f32[1,1,16], index: 4, kind: input, shape index: {}]
  %s5 = inlined_call_operand.vmem [shape: f32[1,1,16], index: 5, kind: input, shape index: {}]
  %s6 = inlined_call_operand.vmem [shape: f32[1,1,16], index: 6, kind: input, shape index: {}]
  %s7 = inlined_call_operand.vmem [shape: f32[2,16,8,16], index: 7, kind: output, shape index: {}]
  %s8 = sld [smem:[#allocation0]]
  $region61: #{conformer_forward.49} parent=0
    _
  %s10 = ssub.s32 1, %s8
  %s11 = scalar_select 0, %s10, %s8
  loop: start=0, step=1, limit=4
  $region2: #{conformer_forward.49} parent=0 // loop_pre_header
    _
  $region3: #{conformer_forward.49} parent=0 // loop_header
    %s13 = sphi 0, %s17
    %p14 = scmp.ge.s32.totalorder %s13, 4
    %s23 = sphi 0, %s25
    %s26 = sphi 0, %s23
    %s27 = sphi 0, %s26
    %s43 = sphi 0, %s27
    %s49 = sphi 0, %s51
    %s52 = sphi 0, %s49
    %s53 = sphi 0, %s52
    %s69 = sphi 0, %s53
    %s75 = sphi 0, %s77
    %s78 = sphi 0, %s75
    %s79 = sphi 0, %s78
    %s95 = sphi 0, %s79
    %s99 = sphi 0, %s99
    %s101 = sphi 0, %s99
    %s102 = sphi 0, %s101
    %s116 = sphi 0, %s102
    %s120 = sphi 0, %s120
    %s122 = sphi 0, %s120
    %s123 = sphi 0, %s122
    %s137 = sphi 0, %s123
    %s141 = sphi 0, %s141
    %s143 = sphi 0, %s141
    %s144 = sphi 0, %s143
    %s158 = sphi 0, %s144
    %s162 = sphi 0, %s162
    %s164 = sphi 0, %s162
    %s165 = sphi 0, %s164
    %s179 = sphi 0, %s165
    %s185 = sphi 0, %s187
    %s188 = sphi 0, %s185
    %s189 = sphi 0, %s188
    %s205 = sphi 0, %s189
  $region4: #{conformer_forward.49} parent=0 // loop_header_branch
    %16 = sbr.rel (%p14) target = $region8
  $region5: #{conformer_forward.49} parent=0 // loop_body
    %s18 = ssub.s32 %s13, 1
    %s19 = ssub.s32 %s13, 2
    %s20 = sadd.s32 %s13, 1
    %s21 = ssub.s32 %s13, %s20
    %p22 = scmp.eq.s32.totalorder %s21, 0
    %s24 = sadd.s32 %s23, 1
    %s25 = scalar_select %p22, %s23, %s24
    %p28 = pneg %p22
    %p29 = scmp.eq.s32.totalorder %s13, 1
    %p30 = por %p28, %p29
    %p31 = scmp.ne.s32.totalorder %s23, %s26
    %p32 = scmp.eq.s32.totalorder %s13, 0
    %p33 = por %p31, %p32
    %p34 = scmp.ne.s32.totalorder %s23, %s26
    %p35 = scmp.eq.s32.totalorder %s18, 1
    %p36 = por %p34, %p35
    %p37 = scmp.ne.s32.totalorder %s26, %s27
    %p38 = scmp.eq.s32.totalorder %s18, 0
    %p39 = por %p37, %p38
    %p40 = scmp.ne.s32.totalorder %s26, %s27
    %p41 = scmp.eq.s32.totalorder %s19, 1
    %p42 = por %p40, %p41
    %p44 = scmp.ne.s32.totalorder %s27, %s43
    %p45 = scmp.eq.s32.totalorder %s19, 0
    %p46 = por %p44, %p45
    %s47 = ssub.s32 %s13, %s20
    %p48 = scmp.eq.s32.totalorder %s47, 0
    %s50 = sadd.s32 %s49, 1
    %s51 = scalar_select %p48, %s49, %s50
    %p54 = pneg %p48
    %p55 = scmp.eq.s32.totalorder %s13, 1
    %p56 = por %p54, %p55
    %p57 = scmp.ne.s32.totalorder %s49, %s52
    %p58 = scmp.eq.s32.totalorder %s13, 0
    %p59 = por %p57, %p58
    %p60 = scmp.ne.s32.totalorder %s49, %s52
    %p61 = scmp.eq.s32.totalorder %s18, 1
    %p62 = por %p60, %p61
    %p63 = scmp.ne.s32.totalorder %s52, %s53
    %p64 = scmp.eq.s32.totalorder %s18, 0
    %p65 = por %p63, %p64
    %p66 = scmp.ne.s32.totalorder %s52, %s53
    %p67 = scmp.eq.s32.totalorder %s19, 1
    %p68 = por %p66, %p67
    %p70 = scmp.ne.s32.totalorder %s53, %s69
    %p71 = scmp.eq.s32.totalorder %s19, 0
    %p72 = por %p70, %p71
    %s73 = ssub.s32 %s13, %s20
    %p74 = scmp.eq.s32.totalorder %s73, 0
    %s76 = sadd.s32 %s75, 1
    %s77 = scalar_select %p74, %s75, %s76
    %p80 = pneg %p74
    %p81 = scmp.eq.s32.totalorder %s13, 1
    %p82 = por %p80, %p81
    %p83 = scmp.ne.s32.totalorder %s75, %s78
    %p84 = scmp.eq.s32.totalorder %s13, 0
    %p85 = por %p83, %p84
    %p86 = scmp.ne.s32.totalorder %s75, %s78
    %p87 = scmp.eq.s32.totalorder %s18, 1
    %p88 = por %p86, %p87
    %p89 = scmp.ne.s32.totalorder %s78, %s79
    %p90 = scmp.eq.s32.totalorder %s18, 0
    %p91 = por %p89, %p90
    %p92 = scmp.ne.s32.totalorder %s78, %s79
    %p93 = scmp.eq.s32.totalorder %s19, 1
    %p94 = por %p92, %p93
    %p96 = scmp.ne.s32.totalorder %s79, %s95
    %p97 = scmp.eq.s32.totalorder %s19, 0
    %p98 = por %p96, %p97
    %s100 = sadd.s32 %s99, 1
    %p103 = scmp.eq.s32.totalorder %s13, 1
    %p104 = scmp.ne.s32.totalorder %s99, %s101
    %p105 = scmp.eq.s32.totalorder %s13, 0
    %p106 = por %p104, %p105
    %p107 = scmp.ne.s32.totalorder %s99, %s101
    %p108 = scmp.eq.s32.totalorder %s18, 1
    %p109 = por %p107, %p108
    %p110 = scmp.ne.s32.totalorder %s101, %s102
    %p111 = scmp.eq.s32.totalorder %s18, 0
    %p112 = por %p110, %p111
    %p113 = scmp.ne.s32.totalorder %s101, %s102
    %p114 = scmp.eq.s32.totalorder %s19, 1
    %p115 = por %p113, %p114
    %p117 = scmp.ne.s32.totalorder %s102, %s116
    %p118 = scmp.eq.s32.totalorder %s19, 0
    %p119 = por %p117, %p118
    %s121 = sadd.s32 %s120, 1
    %p124 = scmp.eq.s32.totalorder %s13, 1
    %p125 = scmp.ne.s32.totalorder %s120, %s122
    %p126 = scmp.eq.s32.totalorder %s13, 0
    %p127 = por %p125, %p126
    %p128 = scmp.ne.s32.totalorder %s120, %s122
    %p129 = scmp.eq.s32.totalorder %s18, 1
    %p130 = por %p128, %p129
    %p131 = scmp.ne.s32.totalorder %s122, %s123
    %p132 = scmp.eq.s32.totalorder %s18, 0
    %p133 = por %p131, %p132
    %p134 = scmp.ne.s32.totalorder %s122, %s123
    %p135 = scmp.eq.s32.totalorder %s19, 1
    %p136 = por %p134, %p135
    %p138 = scmp.ne.s32.totalorder %s123, %s137
    %p139 = scmp.eq.s32.totalorder %s19, 0
    %p140 = por %p138, %p139
    %s142 = sadd.s32 %s141, 1
    %p145 = scmp.eq.s32.totalorder %s13, 1
    %p146 = scmp.ne.s32.totalorder %s141, %s143
    %p147 = scmp.eq.s32.totalorder %s13, 0
    %p148 = por %p146, %p147
    %p149 = scmp.ne.s32.totalorder %s141, %s143
    %p150 = scmp.eq.s32.totalorder %s18, 1
    %p151 = por %p149, %p150
    %p152 = scmp.ne.s32.totalorder %s143, %s144
    %p153 = scmp.eq.s32.totalorder %s18, 0
    %p154 = por %p152, %p153
    %p155 = scmp.ne.s32.totalorder %s143, %s144
    %p156 = scmp.eq.s32.totalorder %s19, 1
    %p157 = por %p155, %p156
    %p159 = scmp.ne.s32.totalorder %s144, %s158
    %p160 = scmp.eq.s32.totalorder %s19, 0
    %p161 = por %p159, %p160
    %s163 = sadd.s32 %s162, 1
    %p166 = scmp.eq.s32.totalorder %s13, 1
    %p167 = scmp.ne.s32.totalorder %s162, %s164
    %p168 = scmp.eq.s32.totalorder %s13, 0
    %p169 = por %p167, %p168
    %p170 = scmp.ne.s32.totalorder %s162, %s164
    %p171 = scmp.eq.s32.totalorder %s18, 1
    %p172 = por %p170, %p171
    %p173 = scmp.ne.s32.totalorder %s164, %s165
    %p174 = scmp.eq.s32.totalorder %s18, 0
    %p175 = por %p173, %p174
    %p176 = scmp.ne.s32.totalorder %s164, %s165
    %p177 = scmp.eq.s32.totalorder %s19, 1
    %p178 = por %p176, %p177
    %p180 = scmp.ne.s32.totalorder %s165, %s179
    %p181 = scmp.eq.s32.totalorder %s19, 0
    %p182 = por %p180, %p181
    %s183 = ssub.s32 %s13, %s20
    %p184 = scmp.eq.s32.totalorder %s183, 0
    %s186 = sadd.s32 %s185, 1
    %s187 = scalar_select %p184, %s185, %s186
    %p190 = pneg %p184
    %p191 = scmp.eq.s32.totalorder %s13, 1
    %p192 = por %p190, %p191
    %p193 = scmp.ne.s32.totalorder %s185, %s188
    %p194 = scmp.eq.s32.totalorder %s13, 0
    %p195 = por %p193, %p194
    %p196 = scmp.ne.s32.totalorder %s185, %s188
    %p197 = scmp.eq.s32.totalorder %s18, 1
    %p198 = por %p196, %p197
    %p199 = scmp.ne.s32.totalorder %s188, %s189
    %p200 = scmp.eq.s32.totalorder %s18, 0
    %p201 = por %p199, %p200
    %p202 = scmp.ne.s32.totalorder %s188, %s189
    %p203 = scmp.eq.s32.totalorder %s19, 1
    %p204 = por %p202, %p203
    %p206 = scmp.ne.s32.totalorder %s189, %s205
    %p207 = scmp.eq.s32.totalorder %s19, 0
    %p208 = por %p206, %p207
    %p209 = scmp.le.s32.totalorder 1, %s13
    %p210 = scmp.lt.s32.totalorder %s13, 3
    %p211 = pnand %p209, %p210
    %p212 = pneg %p211
    // Predicated region
    $region9: #{conformer_forward.49} parent=5 // pred_check
      _
    $region10: #{conformer_forward.49} parent=5 // pred_check_branch
      %214 = sbr.rel (%p211) target = $region12
    $region11: #{conformer_forward.49} parent=5 // pred_region
      %s215 = ssub.s32 %s13, 1
      // Predicated region
      $region13: #{conformer_forward.49} parent=11 // pred_check
        %p216 = pneg %p112
      $region14: #{conformer_forward.49} parent=11 // pred_check_branch
        %218 = sbr.rel (%p216) target = $region16
      $region15: #{conformer_forward.49} parent=11 // pred_region
        _
      $region16: #{conformer_forward.49} parent=11 // pred_fallthru
        _
      // Predicated region
      $region17: #{conformer_forward.49} parent=11 // pred_check
        %p219 = pneg %p133
      $region18: #{conformer_forward.49} parent=11 // pred_check_branch
        %221 = sbr.rel (%p219) target = $region20
      $region19: #{conformer_forward.49} parent=11 // pred_region
        _
      $region20: #{conformer_forward.49} parent=11 // pred_fallthru
        _
      // Predicated region
      $region21: #{conformer_forward.49} parent=11 // pred_check
        %p222 = pneg %p154
      $region22: #{conformer_forward.49} parent=11 // pred_check_branch
        %224 = sbr.rel (%p222) target = $region24
      $region23: #{conformer_forward.49} parent=11 // pred_region
        _
      $region24: #{conformer_forward.49} parent=11 // pred_fallthru
        _
      // Predicated region
      $region25: #{conformer_forward.49} parent=11 // pred_check
        %p225 = pneg %p175
      $region26: #{conformer_forward.49} parent=11 // pred_check_branch
        %227 = sbr.rel (%p225) target = $region28
      $region27: #{conformer_forward.49} parent=11 // pred_region
        _
      $region28: #{conformer_forward.49} parent=11 // pred_fallthru
        _
    $region12: #{conformer_forward.49} parent=5 // pred_fallthru
      _
    %p228 = scmp.lt.s32.totalorder %s13, 2
    // Predicated region
    $region29: #{conformer_forward.49} parent=5 // pred_check
      %p229 = pneg %p228
    $region30: #{conformer_forward.49} parent=5 // pred_check_branch
      %231 = sbr.rel (%p229) target = $region32
    $region31: #{conformer_forward.49} parent=5 // pred_region
      // Predicated region
      $region33: #{conformer_forward.49} parent=31 // pred_check
        %p232 = pneg %p33
      $region34: #{conformer_forward.49} parent=31 // pred_check_branch
        %234 = sbr.rel (%p232) target = $region36
      $region35: #{conformer_forward.49} parent=31 // pred_region
        %p235 = scmp.lt.s32.totalorder %s13, 1
        %s236 = scalar_select %p235, %s13, 1
        %s237 = smul.addr %s236, 16
        %s238 = smul.addr %s237, 8
        %s239 = scalar_lea.vmem %s0, %s238
      $region36: #{conformer_forward.49} parent=31 // pred_fallthru
        _
      // Predicated region
      $region37: #{conformer_forward.49} parent=31 // pred_check
        %p240 = pneg %p59
      $region38: #{conformer_forward.49} parent=31 // pred_check_branch
        %242 = sbr.rel (%p240) target = $region40
      $region39: #{conformer_forward.49} parent=31 // pred_region
        %p243 = scmp.lt.s32.totalorder %s13, 1
        %s244 = scalar_select %p243, %s13, 1
        %s245 = smul.addr %s244, 16
        %s246 = smul.addr %s245, 8
        %s247 = scalar_lea.vmem %s1, %s246
      $region40: #{conformer_forward.49} parent=31 // pred_fallthru
        _
      // Predicated region
      $region41: #{conformer_forward.49} parent=31 // pred_check
        %p248 = pneg %p85
      $region42: #{conformer_forward.49} parent=31 // pred_check_branch
        %250 = sbr.rel (%p248) target = $region44
      $region43: #{conformer_forward.49} parent=31 // pred_region
        %p251 = scmp.lt.s32.totalorder %s13, 1
        %s252 = scalar_select %p251, %s13, 1
        %s253 = smul.addr %s252, 2
        %s254 = smul.addr %s253, 8
        %s255 = scalar_lea.vmem %s2, %s254
      $region44: #{conformer_forward.49} parent=31 // pred_fallthru
        _
    $region32: #{conformer_forward.49} parent=5 // pred_fallthru
      _
    %p256 = scmp.le.s32.totalorder 1, %s13
    %p257 = scmp.lt.s32.totalorder %s13, 3
    %p258 = pnand %p256, %p257
    %p259 = pneg %p258
    // Predicated region
    $region45: #{conformer_forward.49} parent=5 // pred_check
      _
    $region46: #{conformer_forward.49} parent=5 // pred_check_branch
      %261 = sbr.rel (%p258) target = $region48
    $region47: #{conformer_forward.49} parent=5 // pred_region
      %s262 = ssub.s32 %s13, 1
      %p263 = scmp.lt.s32.totalorder %s18, 1
      %s264 = scalar_select %p263, %s18, 1
      %s265 = smul.addr %s264, 16
      %s266 = smul.addr %s265, 8
      %s267 = scalar_lea.vmem %s0, %s266
      %p268 = pneg %p39
      %p269 = pneg %p36
      %p270 = scmp.lt.s32.totalorder %s18, 1
      %s271 = scalar_select %p270, %s18, 1
      %s272 = smul.addr %s271, 16
      %s273 = smul.addr %s272, 8
      %s274 = scalar_lea.vmem %s1, %s273
      %p275 = pneg %p65
      %p276 = pneg %p62
      %p277 = scmp.lt.s32.totalorder %s18, 1
      %s278 = scalar_select %p277, %s18, 1
      %s279 = smul.addr %s278, 2
      %s280 = smul.addr %s279, 8
      %s281 = scalar_lea.vmem %s2, %s280
      %p282 = pneg %p91
      %p283 = pneg %p88
      %p284 = pneg %p112
      %p285 = pneg %p109
      %p286 = pneg %p133
      %p287 = pneg %p130
      %p288 = pneg %p154
      %p289 = pneg %p151
      %p290 = pneg %p175
      %p291 = pneg %p172
      %p292 = pneg %p201
      %p293 = pneg %p198
      %p294 = scmp.lt.s32.totalorder %s18, 1
      %s295 = scalar_select %p294, %s18, 1
      %s296 = smul.addr %s295, 16
      %s297 = smul.addr %s296, 8
      %s298 = scalar_lea.vmem %s7, %s297
      %p299 = scmp.lt.s32.totalorder %s18, 1
      %s300 = scalar_select %p299, %s18, 1
      %s301 = smul.addr %s300, 16
      %s302 = smul.addr %s301, 8
      %s303 = scalar_lea.vmem %s0, %s302
      %p304 = scmp.lt.s32.totalorder %s18, 1
      %s305 = scalar_select %p304, %s18, 1
      %s306 = smul.addr %s305, 16
      %s307 = smul.addr %s306, 8
      %s308 = scalar_lea.vmem %s1, %s307
      %p309 = scmp.lt.s32.totalorder %s18, 1
      %s310 = scalar_select %p309, %s18, 1
      %s311 = smul.addr %s310, 2
      %s312 = smul.addr %s311, 8
      %s313 = scalar_lea.vmem %s2, %s312
      %p314 = scmp.lt.s32.totalorder %s18, 1
      %s315 = scalar_select %p314, %s18, 1
      %s316 = smul.addr %s315, 16
      %s317 = smul.addr %s316, 8
      %s318 = scalar_lea.vmem %s7, %s317
      %v320 = vld [vmem:[%s303] sm:$0xff]
      %v321 = vld [vmem:[%s303 + $0x8] sm:$0xff]
      %v322 = vld [vmem:[%s303 + $0x10] sm:$0xff]
      %v323 = vld [vmem:[%s303 + $0x18] sm:$0xff]
      %v324 = vld [vmem:[%s303 + $0x20] sm:$0xff]
      %v325 = vld [vmem:[%s303 + $0x28] sm:$0xff]
      %v326 = vld [vmem:[%s303 + $0x30] sm:$0xff]
      %v327 = vld [vmem:[%s303 + $0x38] sm:$0xff]
      %v328 = vld [vmem:[%s303 + $0x40] sm:$0xff]
      %v329 = vld [vmem:[%s303 + $0x48] sm:$0xff]
      %v330 = vld [vmem:[%s303 + $0x50] sm:$0xff]
      %v331 = vld [vmem:[%s303 + $0x58] sm:$0xff]
      %v332 = vld [vmem:[%s303 + $0x60] sm:$0xff]
      %v333 = vld [vmem:[%s303 + $0x68] sm:$0xff]
      %v334 = vld [vmem:[%s303 + $0x70] sm:$0xff]
      %v335 = vld [vmem:[%s303 + $0x78] sm:$0xff]
      %v336 = vmax.f32 %v320, -5.0
      %v337 = vmax.f32 %v321, -5.0
      %v338 = vmax.f32 %v322, -5.0
      %v339 = vmax.f32 %v323, -5.0
      %v340 = vmax.f32 %v324, -5.0
      %v341 = vmax.f32 %v325, -5.0
      %v342 = vmax.f32 %v326, -5.0
      %v343 = vmax.f32 %v327, -5.0
      %v344 = vmax.f32 %v328, -5.0
      %v345 = vmax.f32 %v329, -5.0
      %v346 = vmax.f32 %v330, -5.0
      %v347 = vmax.f32 %v331, -5.0
      %v348 = vmax.f32 %v332, -5.0
      %v349 = vmax.f32 %v333, -5.0
      %v350 = vmax.f32 %v334, -5.0
      %v351 = vmax.f32 %v335, -5.0
      %v352 = vmin.f32 %v336, 5.0
      %v353 = vmin.f32 %v337, 5.0
      %v354 = vmin.f32 %v338, 5.0
      %v355 = vmin.f32 %v339, 5.0
      %v356 = vmin.f32 %v340, 5.0
      %v357 = vmin.f32 %v341, 5.0
      %v358 = vmin.f32 %v342, 5.0
      %v359 = vmin.f32 %v343, 5.0
      %v360 = vmin.f32 %v344, 5.0
      %v361 = vmin.f32 %v345, 5.0
      %v362 = vmin.f32 %v346, 5.0
      %v363 = vmin.f32 %v347, 5.0
      %v364 = vmin.f32 %v348, 5.0
      %v365 = vmin.f32 %v349, 5.0
      %v366 = vmin.f32 %v350, 5.0
      %v367 = vmin.f32 %v351, 5.0
      %v368 = vld [vmem:[%s308] sm:$0xff]
      %v369 = vld [vmem:[%s308 + $0x8] sm:$0xff]
      %v370 = vld [vmem:[%s308 + $0x10] sm:$0xff]
      %v371 = vld [vmem:[%s308 + $0x18] sm:$0xff]
      %v372 = vld [vmem:[%s308 + $0x20] sm:$0xff]
      %v373 = vld [vmem:[%s308 + $0x28] sm:$0xff]
      %v374 = vld [vmem:[%s308 + $0x30] sm:$0xff]
      %v375 = vld [vmem:[%s308 + $0x38] sm:$0xff]
      %v376 = vld [vmem:[%s308 + $0x40] sm:$0xff]
      %v377 = vld [vmem:[%s308 + $0x48] sm:$0xff]
      %v378 = vld [vmem:[%s308 + $0x50] sm:$0xff]
      %v379 = vld [vmem:[%s308 + $0x58] sm:$0xff]
      %v380 = vld [vmem:[%s308 + $0x60] sm:$0xff]
      %v381 = vld [vmem:[%s308 + $0x68] sm:$0xff]
      %v382 = vld [vmem:[%s308 + $0x70] sm:$0xff]
      %v383 = vld [vmem:[%s308 + $0x78] sm:$0xff]
      %v384 = vld [vmem:[%s313] sm:$0xff]
      %v385 = vld [vmem:[%s313 + $0x8] sm:$0xff]
      %v386 = vpack.c.bf16 %v385, %v384
      %v387 = vld [vmem:[%s3] sm:$0xff]
      %v388 = vld [vmem:[%s3 + $0x8] sm:$0xff]
      %v389 = vld [vmem:[%s3 + $0x10] sm:$0xff]
      %v390 = vld [vmem:[%s3 + $0x18] sm:$0xff]
      %v391 = vpack.c.bf16 %v388, %v387
      %v392 = vpack.c.bf16 %v390, %v389
      %v393 = vld [vmem:[%s4] sm:$0x1]
      %v395 = vlaneseq
      %v396 = vshrl.u32 %v395, 7
      %v397 = vsub.s32 0, %v396
      %v398 = vrot.slane %v393, %v397
      %vm400 = vcmask 261120
      %v402 = vsel %vm400, %v386, 0
      %404 = vmatprep.subr.bf16.mxu0 0
      %405 = vmatpush1.bf16.msra.mxu0 %v391
      %406 = vmatprep.subr.bf16.mxu0 0
      %407 = vmatpush1.bf16.msra.mxu0 %v392
      %408 = vmatprep.subr.bf16.mxu0 0
      %409 = vmatpush1.bf16.msra.mxu0 0
      %410 = vmatprep.subr.bf16.mxu0 0
      %411 = vmatpush1.bf16.msra.mxu0 0
      %412 = vmatprep.subr.bf16.mxu0 0
      %413 = vmatpush1.bf16.msra.mxu0 0
      %414 = vmatprep.subr.bf16.mxu0 0
      %415 = vmatpush1.bf16.msra.mxu0 0
      %416 = vmatprep.subr.bf16.mxu0 0
      %417 = vmatpush1.bf16.msra.mxu0 0
      %418 = vmatprep.subr.bf16.mxu0 0
      %419 = vmatpush1.bf16.msra.mxu0 0
      %420 = vmatprep.subr.bf16.mxu0 0
      %421 = vmatpush1.bf16.msra.mxu0 0
      %422 = vmatprep.subr.bf16.mxu0 0
      %423 = vmatpush1.bf16.msra.mxu0 0
      %424 = vmatprep.subr.bf16.mxu0 0
      %425 = vmatpush1.bf16.msra.mxu0 0
      %426 = vmatprep.subr.bf16.mxu0 0
      %427 = vmatpush1.bf16.msra.mxu0 0
      %428 = vmatprep.subr.bf16.mxu0 0
      %429 = vmatpush1.bf16.msra.mxu0 0
      %430 = vmatprep.subr.bf16.mxu0 0
      %431 = vmatpush1.bf16.msra.mxu0 0
      %432 = vmatprep.subr.bf16.mxu0 0
      %433 = vmatpush1.bf16.msra.mxu0 0
      %434 = vmatprep.subr.bf16.mxu0 0
      %435 = vmatpush1.bf16.msra.mxu0 0
      %436 = vmatprep.mubr.bf16.mxu0 0
      %437 = vmatmul.mubr.bf16.gmra.mrb[0].mxu0 %v402
      %v438 = vpop.f32.mrb[0].mxu0
      %v439 = vadd.f32 %v398, %v438
      %v440 = vpop.f32.mrb[0].mxu0
      %v441 = vpop.f32.mrb[0].mxu0
      %v442 = vadd.f32 %v398, %v441
      %v443 = vpop.f32.mrb[0].mxu0
      %444 = vdwg.mxu0
      %v445 = vld [vmem:[%s5] sm:$0x1]
      %447 = vset.pattern.permute.xlu0 0
      %448 = vperm.xlu0 %447, %v352
      %v449 = vpop.permute.xlu0 %448
      %452 = vset.pattern.permute.xlu0 0
      %453 = vperm.xlu0 %452, %v353
      %v454 = vpop.permute.xlu0 %453
      %457 = vset.pattern.permute.xlu0 0
      %458 = vperm.xlu0 %457, %v354
      %v459 = vpop.permute.xlu0 %458
      %462 = vset.pattern.permute.xlu0 0
      %463 = vperm.xlu0 %462, %v355
      %v464 = vpop.permute.xlu0 %463
      %467 = vset.pattern.permute.xlu0 0
      %468 = vperm.xlu0 %467, %v356
      %v469 = vpop.permute.xlu0 %468
      %472 = vset.pattern.permute.xlu0 0
      %473 = vperm.xlu0 %472, %v357
      %v474 = vpop.permute.xlu0 %473
      %477 = vset.pattern.permute.xlu0 0
      %478 = vperm.xlu0 %477, %v358
      %v479 = vpop.permute.xlu0 %478
      %482 = vset.pattern.permute.xlu0 0
      %483 = vperm.xlu0 %482, %v359
      %v484 = vpop.permute.xlu0 %483
      %487 = vset.pattern.permute.xlu0 0
      %488 = vperm.xlu0 %487, %v360
      %v489 = vpop.permute.xlu0 %488
      %492 = vset.pattern.permute.xlu0 0
      %493 = vperm.xlu0 %492, %v361
      %v494 = vpop.permute.xlu0 %493
      %497 = vset.pattern.permute.xlu0 0
      %498 = vperm.xlu0 %497, %v362
      %v499 = vpop.permute.xlu0 %498
      %502 = vset.pattern.permute.xlu0 0
      %503 = vperm.xlu0 %502, %v363
      %v504 = vpop.permute.xlu0 %503
      %507 = vset.pattern.permute.xlu0 0
      %508 = vperm.xlu0 %507, %v364
      %v509 = vpop.permute.xlu0 %508
      %512 = vset.pattern.permute.xlu0 0
      %513 = vperm.xlu0 %512, %v365
      %v514 = vpop.permute.xlu0 %513
      %517 = vset.pattern.permute.xlu0 0
      %518 = vperm.xlu0 %517, %v366
      %v519 = vpop.permute.xlu0 %518
      %522 = vset.pattern.permute.xlu0 0
      %523 = vperm.xlu0 %522, %v367
      %v524 = vpop.permute.xlu0 %523
      %v527 = vlaneseq
      %v528 = vshrl.u32 %v527, 7
      %v529 = vsub.s32 0, %v528
      %v530 = vrot.slane %v445, %v529
      %v532 = vmul.f32 %v449, %v530
      %v533 = vmul.f32 %v454, %v530
      %v534 = vmul.f32 %v459, %v530
      %v535 = vmul.f32 %v464, %v530
      %v536 = vmul.f32 %v469, %v530
      %v537 = vmul.f32 %v474, %v530
      %v538 = vmul.f32 %v479, %v530
      %v539 = vmul.f32 %v484, %v530
      %v540 = vmul.f32 %v489, %v530
      %v541 = vmul.f32 %v494, %v530
      %v542 = vmul.f32 %v499, %v530
      %v543 = vmul.f32 %v504, %v530
      %v544 = vmul.f32 %v509, %v530
      %v545 = vmul.f32 %v514, %v530
      %v546 = vmul.f32 %v519, %v530
      %v547 = vmul.f32 %v524, %v530
      %v548 = vld [vmem:[%s6] sm:$0x1]
      %550 = vset.pattern.permute.xlu0 0
      %551 = vperm.xlu0 %550, %v368
      %v552 = vpop.permute.xlu0 %551
      %555 = vset.pattern.permute.xlu0 0
      %556 = vperm.xlu0 %555, %v369
      %v557 = vpop.permute.xlu0 %556
      %560 = vset.pattern.permute.xlu0 0
      %561 = vperm.xlu0 %560, %v370
      %v562 = vpop.permute.xlu0 %561
      %565 = vset.pattern.permute.xlu0 0
      %566 = vperm.xlu0 %565, %v371
      %v567 = vpop.permute.xlu0 %566
      %570 = vset.pattern.permute.xlu0 0
      %571 = vperm.xlu0 %570, %v372
      %v572 = vpop.permute.xlu0 %571
      %575 = vset.pattern.permute.xlu0 0
      %576 = vperm.xlu0 %575, %v373
      %v577 = vpop.permute.xlu0 %576
      %580 = vset.pattern.permute.xlu0 0
      %581 = vperm.xlu0 %580, %v374
      %v582 = vpop.permute.xlu0 %581
      %585 = vset.pattern.permute.xlu0 0
      %586 = vperm.xlu0 %585, %v375
      %v587 = vpop.permute.xlu0 %586
      %590 = vset.pattern.permute.xlu0 0
      %591 = vperm.xlu0 %590, %v376
      %v592 = vpop.permute.xlu0 %591
      %595 = vset.pattern.permute.xlu0 0
      %596 = vperm.xlu0 %595, %v377
      %v597 = vpop.permute.xlu0 %596
      %600 = vset.pattern.permute.xlu0 0
      %601 = vperm.xlu0 %600, %v378
      %v602 = vpop.permute.xlu0 %601
      %605 = vset.pattern.permute.xlu0 0
      %606 = vperm.xlu0 %605, %v379
      %v607 = vpop.permute.xlu0 %606
      %610 = vset.pattern.permute.xlu0 0
      %611 = vperm.xlu0 %610, %v380
      %v612 = vpop.permute.xlu0 %611
      %615 = vset.pattern.permute.xlu0 0
      %616 = vperm.xlu0 %615, %v381
      %v617 = vpop.permute.xlu0 %616
      %620 = vset.pattern.permute.xlu0 0
      %621 = vperm.xlu0 %620, %v382
      %v622 = vpop.permute.xlu0 %621
      %625 = vset.pattern.permute.xlu0 0
      %626 = vperm.xlu0 %625, %v383
      %v627 = vpop.permute.xlu0 %626
      %v630 = vlaneseq
      %v631 = vshrl.u32 %v630, 7
      %v632 = vsub.s32 0, %v631
      %v633 = vrot.slane %v548, %v632
      %v635 = vmul.f32 %v552, %v633
      %v636 = vmul.f32 %v557, %v633
      %v637 = vmul.f32 %v562, %v633
      %v638 = vmul.f32 %v567, %v633
      %v639 = vmul.f32 %v572, %v633
      %v640 = vmul.f32 %v577, %v633
      %v641 = vmul.f32 %v582, %v633
      %v642 = vmul.f32 %v587, %v633
      %v643 = vmul.f32 %v592, %v633
      %v644 = vmul.f32 %v597, %v633
      %v645 = vmul.f32 %v602, %v633
      %v646 = vmul.f32 %v607, %v633
      %v647 = vmul.f32 %v612, %v633
      %v648 = vmul.f32 %v617, %v633
      %v649 = vmul.f32 %v622, %v633
      %v650 = vmul.f32 %v627, %v633
      %v651 = vadd.f32 %v532, %v635
      %v652 = vadd.f32 %v533, %v636
      %v653 = vadd.f32 %v534, %v637
      %v654 = vadd.f32 %v535, %v638
      %v655 = vadd.f32 %v536, %v639
      %v656 = vadd.f32 %v537, %v640
      %v657 = vadd.f32 %v538, %v641
      %v658 = vadd.f32 %v539, %v642
      %v659 = vadd.f32 %v540, %v643
      %v660 = vadd.f32 %v541, %v644
      %v661 = vadd.f32 %v542, %v645
      %v662 = vadd.f32 %v543, %v646
      %v663 = vadd.f32 %v544, %v647
      %v664 = vadd.f32 %v545, %v648
      %v665 = vadd.f32 %v546, %v649
      %v666 = vadd.f32 %v547, %v650
      %v669 = vcombine.high %v439, %v439
      %v671 = vunpack.c.l.s4 1966171168
      %v672 = vunpack.c.0.s8 %v671
      %v673 = vlaneseq
      %v674 = vshrl.u32 %v673, 7
      %v675 = vsub.s32 %v672, %v674
      %v676 = vrot.slane %v439, %v675
      %v678 = vunpack.c.l.s4 1966171168
      %v679 = vunpack.c.0.s8 %v678
      %v680 = vlaneseq
      %v681 = vshrl.u32 %v680, 7
      %v682 = vsub.s32 %v679, %v681
      %v683 = vrot.slane %v669, %v682
      %v684 = vcombine.high %v676, %v676
      %v685 = vcombine.high %v683, %v683
      %v687 = vunpack.c.l.s4 1966171168
      %v688 = vunpack.c.0.s8 %v687
      %v689 = vlaneseq
      %v690 = vshrl.u32 %v689, 7
      %v691 = vsub.s32 %v688, %v690
      %v692 = vrot.slane %v676, %v691
      %v694 = vunpack.c.l.s4 1966171168
      %v695 = vunpack.c.0.s8 %v694
      %v696 = vlaneseq
      %v697 = vshrl.u32 %v696, 7
      %v698 = vsub.s32 %v695, %v697
      %v699 = vrot.slane %v683, %v698
      %v701 = vunpack.c.l.s4 1966171168
      %v702 = vunpack.c.0.s8 %v701
      %v703 = vlaneseq
      %v704 = vshrl.u32 %v703, 7
      %v705 = vsub.s32 %v702, %v704
      %v706 = vrot.slane %v684, %v705
      %v708 = vunpack.c.l.s4 1966171168
      %v709 = vunpack.c.0.s8 %v708
      %v710 = vlaneseq
      %v711 = vshrl.u32 %v710, 7
      %v712 = vsub.s32 %v709, %v711
      %v713 = vrot.slane %v685, %v712
      %v714 = vcombine.high %v692, %v692
      %v715 = vcombine.high %v699, %v699
      %v716 = vcombine.high %v706, %v706
      %v717 = vcombine.high %v713, %v713
      %v718 = vcombine.high %v442, %v442
      %v720 = vunpack.c.l.s4 1966171168
      %v721 = vunpack.c.0.s8 %v720
      %v722 = vlaneseq
      %v723 = vshrl.u32 %v722, 7
      %v724 = vsub.s32 %v721, %v723
      %v725 = vrot.slane %v442, %v724
      %v727 = vunpack.c.l.s4 1966171168
      %v728 = vunpack.c.0.s8 %v727
      %v729 = vlaneseq
      %v730 = vshrl.u32 %v729, 7
      %v731 = vsub.s32 %v728, %v730
      %v732 = vrot.slane %v718, %v731
      %v733 = vcombine.high %v725, %v725
      %v734 = vcombine.high %v732, %v732
      %v736 = vunpack.c.l.s4 1966171168
      %v737 = vunpack.c.0.s8 %v736
      %v738 = vlaneseq
      %v739 = vshrl.u32 %v738, 7
      %v740 = vsub.s32 %v737, %v739
      %v741 = vrot.slane %v725, %v740
      %v743 = vunpack.c.l.s4 1966171168
      %v744 = vunpack.c.0.s8 %v743
      %v745 = vlaneseq
      %v746 = vshrl.u32 %v745, 7
      %v747 = vsub.s32 %v744, %v746
      %v748 = vrot.slane %v732, %v747
      %v750 = vunpack.c.l.s4 1966171168
      %v751 = vunpack.c.0.s8 %v750
      %v752 = vlaneseq
      %v753 = vshrl.u32 %v752, 7
      %v754 = vsub.s32 %v751, %v753
      %v755 = vrot.slane %v733, %v754
      %v757 = vunpack.c.l.s4 1966171168
      %v758 = vunpack.c.0.s8 %v757
      %v759 = vlaneseq
      %v760 = vshrl.u32 %v759, 7
      %v761 = vsub.s32 %v758, %v760
      %v762 = vrot.slane %v734, %v761
      %v763 = vcombine.high %v741, %v741
      %v764 = vcombine.high %v748, %v748
      %v765 = vcombine.high %v755, %v755
      %v766 = vcombine.high %v762, %v762
      %v767 = vlaneseq
      %v768 = vshrl.u32 %v767, 7
      %v769 = vsub.s32 0, %v768
      %v770 = vrot.slane %v692, %v769
      %v771 = vlaneseq
      %v772 = vshrl.u32 %v771, 7
      %v773 = vsub.s32 0, %v772
      %v774 = vrot.slane %v706, %v773
      %v775 = vlaneseq
      %v776 = vshrl.u32 %v775, 7
      %v777 = vsub.s32 0, %v776
      %v778 = vrot.slane %v714, %v777
      %v779 = vlaneseq
      %v780 = vshrl.u32 %v779, 7
      %v781 = vsub.s32 0, %v780
      %v782 = vrot.slane %v716, %v781
      %v783 = vlaneseq
      %v784 = vshrl.u32 %v783, 7
      %v785 = vsub.s32 0, %v784
      %v786 = vrot.slane %v699, %v785
      %v787 = vlaneseq
      %v788 = vshrl.u32 %v787, 7
      %v789 = vsub.s32 0, %v788
      %v790 = vrot.slane %v713, %v789
      %v791 = vlaneseq
      %v792 = vshrl.u32 %v791, 7
      %v793 = vsub.s32 0, %v792
      %v794 = vrot.slane %v715, %v793
      %v795 = vlaneseq
      %v796 = vshrl.u32 %v795, 7
      %v797 = vsub.s32 0, %v796
      %v798 = vrot.slane %v717, %v797
      %v799 = vlaneseq
      %v800 = vshrl.u32 %v799, 7
      %v801 = vsub.s32 0, %v800
      %v802 = vrot.slane %v741, %v801
      %v803 = vlaneseq
      %v804 = vshrl.u32 %v803, 7
      %v805 = vsub.s32 0, %v804
      %v806 = vrot.slane %v755, %v805
      %v807 = vlaneseq
      %v808 = vshrl.u32 %v807, 7
      %v809 = vsub.s32 0, %v808
      %v810 = vrot.slane %v763, %v809
      %v811 = vlaneseq
      %v812 = vshrl.u32 %v811, 7
      %v813 = vsub.s32 0, %v812
      %v814 = vrot.slane %v765, %v813
      %v815 = vlaneseq
      %v816 = vshrl.u32 %v815, 7
      %v817 = vsub.s32 0, %v816
      %v818 = vrot.slane %v748, %v817
      %v819 = vlaneseq
      %v820 = vshrl.u32 %v819, 7
      %v821 = vsub.s32 0, %v820
      %v822 = vrot.slane %v762, %v821
      %v823 = vlaneseq
      %v824 = vshrl.u32 %v823, 7
      %v825 = vsub.s32 0, %v824
      %v826 = vrot.slane %v764, %v825
      %v827 = vlaneseq
      %v828 = vshrl.u32 %v827, 7
      %v829 = vsub.s32 0, %v828
      %v830 = vrot.slane %v766, %v829
      %v847 = vadd.f32 %v651, %v770
      %v848 = vadd.f32 %v652, %v774
      %v849 = vadd.f32 %v653, %v778
      %v850 = vadd.f32 %v654, %v782
      %v851 = vadd.f32 %v655, %v786
      %v852 = vadd.f32 %v656, %v790
      %v853 = vadd.f32 %v657, %v794
      %v854 = vadd.f32 %v658, %v798
      %v855 = vadd.f32 %v659, %v802
      %v856 = vadd.f32 %v660, %v806
      %v857 = vadd.f32 %v661, %v810
      %v858 = vadd.f32 %v662, %v814
      %v859 = vadd.f32 %v663, %v818
      %v860 = vadd.f32 %v664, %v822
      %v861 = vadd.f32 %v665, %v826
      %v862 = vadd.f32 %v666, %v830
      %vm863 = vcmask 130048
      %864 = vst.msk [vmem:[%s318] sm:$0xff] %vm863, %v847
      %865 = vst.msk [vmem:[%s318 + $0x8] sm:$0xff] %vm863, %v848
      %866 = vst.msk [vmem:[%s318 + $0x10] sm:$0xff] %vm863, %v849
      %867 = vst.msk [vmem:[%s318 + $0x18] sm:$0xff] %vm863, %v850
      %868 = vst.msk [vmem:[%s318 + $0x20] sm:$0xff] %vm863, %v851
      %869 = vst.msk [vmem:[%s318 + $0x28] sm:$0xff] %vm863, %v852
      %870 = vst.msk [vmem:[%s318 + $0x30] sm:$0xff] %vm863, %v853
      %871 = vst.msk [vmem:[%s318 + $0x38] sm:$0xff] %vm863, %v854
      %872 = vst.msk [vmem:[%s318 + $0x40] sm:$0xff] %vm863, %v855
      %873 = vst.msk [vmem:[%s318 + $0x48] sm:$0xff] %vm863, %v856
      %874 = vst.msk [vmem:[%s318 + $0x50] sm:$0xff] %vm863, %v857
      %875 = vst.msk [vmem:[%s318 + $0x58] sm:$0xff] %vm863, %v858
      %876 = vst.msk [vmem:[%s318 + $0x60] sm:$0xff] %vm863, %v859
      %877 = vst.msk [vmem:[%s318 + $0x68] sm:$0xff] %vm863, %v860
      %878 = vst.msk [vmem:[%s318 + $0x70] sm:$0xff] %vm863, %v861
      %879 = vst.msk [vmem:[%s318 + $0x78] sm:$0xff] %vm863, %v862
      %p880 = scmp.lt.s32.totalorder %s18, 1
      %s881 = scalar_select %p880, %s18, 1
      %s882 = smul.addr %s881, 16
      %s883 = smul.addr %s882, 8
      %s884 = scalar_lea.vmem %s7, %s883
      // Predicated region
      $region49: #{conformer_forward.49} parent=47 // pred_check
        %p885 = pneg %p198
      $region50: #{conformer_forward.49} parent=47 // pred_check_branch
        %887 = sbr.rel (%p885) target = $region52
      $region51: #{conformer_forward.49} parent=47 // pred_region
        _
      $region52: #{conformer_forward.49} parent=47 // pred_fallthru
        _
    $region48: #{conformer_forward.49} parent=5 // pred_fallthru
      _
    %p888 = scmp.le.s32.totalorder 2, %s13
    // Predicated region
    $region53: #{conformer_forward.49} parent=5 // pred_check
      %p889 = pneg %p888
    $region54: #{conformer_forward.49} parent=5 // pred_check_branch
      %891 = sbr.rel (%p889) target = $region56
    $region55: #{conformer_forward.49} parent=5 // pred_region
      %s892 = ssub.s32 %s13, 2
      // Predicated region
      $region57: #{conformer_forward.49} parent=55 // pred_check
        %p893 = pneg %p204
      $region58: #{conformer_forward.49} parent=55 // pred_check_branch
        %895 = sbr.rel (%p893) target = $region60
      $region59: #{conformer_forward.49} parent=55 // pred_region
        %p896 = scmp.lt.s32.totalorder %s19, 1
        %s897 = scalar_select %p896, %s19, 1
        %s898 = smul.addr %s897, 16
        %s899 = smul.addr %s898, 8
        %s900 = scalar_lea.vmem %s7, %s899
      $region60: #{conformer_forward.49} parent=55 // pred_fallthru
        _
    $region56: #{conformer_forward.49} parent=5 // pred_fallthru
      _
  $region6: #{conformer_forward.49} parent=0 // loop_footer
    %s17 = sadd.s32 1, %s13
  $region7: #{conformer_forward.49} parent=0 // loop_footer_branch
    %12 = sbr.rel target = $region3
  $region8: #{conformer_forward.49} parent=0 // loop_exit
    _

</llo_original>
